<compile_context>
chip_gen: v6e
topology: v6e:2x2x1
jax: 0.10.0
libtpu: 0.0.40
codegen_flags: <defaults>
</compile_context>

<pallas_src>
from functools import partial

import numpy as np
import jax
import jax.numpy as jnp
from jax import lax
from jax.experimental import pallas as pl
from jax.experimental.pallas import tpu as pltpu


# ----------------------------------------------------------------------------
# Config (synthetic "DefaultConfig")
# ----------------------------------------------------------------------------
CLASS_NUM = 3
FPN_OUT = 32
STRIDES = [8, 16, 32]
SCORE_THRESHOLD = 0.3
NMS_IOU_THRESHOLD = 0.5
MAX_DETECTION_BOXES_NUM = 50
NORM_REG_TARGETS = False
ADD_CENTERNESS = True
CENTERNESS_LOSS_SQRT = True

HEAD_OUT = CLASS_NUM + 1 + 4          # fused cls | cnt | reg channel width (= 8)
MAX_TM = 1024                         # row tile for backbone-stage matmul kernels
MAX_HEAD_TM = 2048                    # location tile for merged head/detect kernel
VMEM_LIMIT = 32 * 1024 * 1024         # fits v5e/v6e (128 MiB) and v7x (64 MiB physical)


def _round_up(x, m):
    return ((x + m - 1) // m) * m


# ----------------------------------------------------------------------------
# Pallas kernel 1: grouped (both modalities) backbone stage
#   matmul + bias + relu, plus fused FPN lateral 1x1 conv written lane-dense.
#   grid = (group, M tile)
# ----------------------------------------------------------------------------
def _stage_kernel(x_ref, w_ref, b_ref, wl_ref, bl_ref, *out_refs, emit_feature):
    acc = jnp.dot(x_ref[...], w_ref[...], preferred_element_type=jnp.float32)
    acc = jnp.maximum(acc + b_ref[...], 0.0)
    feat = acc.astype(jnp.bfloat16)
    if emit_feature:
        out_refs[0][...] = feat
        lat_ref = out_refs[1]
    else:
        lat_ref = out_refs[0]
    lat = jnp.dot(feat, wl_ref[...], preferred_element_type=jnp.float32) + bl_ref[...]
    # lane-dense [F, TM] writeback (XLU transpose), bf16 to halve HBM traffic
    lat_ref[...] = jnp.transpose(lat).astype(lat_ref.dtype)


def pallas_stage(x, w, b, wl, bl, *, emit_feature=True):
    """x: [G, M, K], w: [G, K, N], b: [G, N], wl: [N, F], bl: [F].
    Returns (feature [G, M, N] bf16 or None, lateral^T [G, F, M] bf16)."""
    G, M, K = x.shape
    N = w.shape[-1]
    F = wl.shape[-1]

    # Pad K up to a 128 multiple for MXU alignment (only when K > 128).
    if K > 128 and K % 128 != 0:
        Kp = _round_up(K, 128)
        x = jnp.pad(x, ((0, 0), (0, 0), (0, Kp - K)))
        w = jnp.pad(w, ((0, 0), (0, Kp - K), (0, 0)))
        K = Kp

    x = x.astype(jnp.bfloat16)
    w = w.astype(jnp.bfloat16)
    b = b.astype(jnp.float32).reshape(G, 1, N)
    wl = wl.astype(jnp.bfloat16)
    bl = bl.astype(jnp.float32).reshape(1, F)

    TM = min(MAX_TM, M)
    grid = (G, pl.cdiv(M, TM))

    lat_shape = jax.ShapeDtypeStruct((G, F, M), jnp.bfloat16)
    lat_spec = pl.BlockSpec((None, F, TM), lambda g, i: (g, 0, i))
    if emit_feature:
        out_shape = (jax.ShapeDtypeStruct((G, M, N), jnp.bfloat16), lat_shape)
        out_specs = (pl.BlockSpec((None, TM, N), lambda g, i: (g, i, 0)), lat_spec)
    else:
        out_shape = lat_shape
        out_specs = lat_spec

    flops = 2 * G * M * N * (K + F)
    bytes_acc = ((x.size + w.size + wl.size) * 2 + (b.size + bl.size) * 4
                 + G * F * M * 2 + (G * M * N * 2 if emit_feature else 0))

    out = pl.pallas_call(
        partial(_stage_kernel, emit_feature=emit_feature),
        out_shape=out_shape,
        grid=grid,
        in_specs=[
            pl.BlockSpec((None, TM, K), lambda g, i: (g, i, 0)),
            pl.BlockSpec((None, K, N), lambda g, i: (g, 0, 0)),
            pl.BlockSpec((None, 1, N), lambda g, i: (g, 0, 0)),
            pl.BlockSpec((N, F), lambda g, i: (0, 0)),
            pl.BlockSpec((1, F), lambda g, i: (0, 0)),
        ],
        out_specs=out_specs,
        compiler_params=pltpu.CompilerParams(
            dimension_semantics=("parallel", "parallel"),
            vmem_limit_bytes=VMEM_LIMIT),
        cost_estimate=pl.CostEstimate(
            flops=int(flops), transcendentals=0, bytes_accessed=int(bytes_acc)),
    )(x, w, b, wl, bl)

    if emit_feature:
        return out[0], out[1]
    return None, out


def conv_stage(x_pair, w_pair, b_pair, wl, bl, k, *, emit_feature=True):
    """Non-overlapping kxk stride-k conv for both modalities + fused FPN lateral.
    x_pair: [2, B, H, W, C] -> (feature [2, B, H/k, W/k, N] or None,
                                lateral^T [2, FPN_OUT, B*(H/k)*(W/k)])."""
    G, B, H, W, C = x_pair.shape
    Ho, Wo = H // k, W // k
    # TODO(synk): space-to-depth is still materialized by XLA; folding it into the
    # kernel DMA (kxk reduction grid axis) would remove one HBM round-trip of xp.
    xp = (x_pair.reshape(G, B, Ho, k, Wo, k, C)
                 .transpose(0, 1, 2, 4, 3, 5, 6)
                 .reshape(G, B * Ho * Wo, k * k * C))
    y, latT = pallas_stage(xp, w_pair, b_pair, wl, bl, emit_feature=emit_feature)
    feat = None if y is None else y.reshape(G, B, Ho, Wo, -1)
    return feat, latT


# ----------------------------------------------------------------------------
# Pallas kernel 2: merged FPN/DMAF-mix/head/detect kernel (all levels, both
# modalities).  Everything lane-dense over the location axis.
#   grid = (location tile,)  ["parallel"]
# ----------------------------------------------------------------------------
def _head_detect_kernel(lat_ref, whr_ref, bhr_ref, whi_ref, bhi_ref, meta_ref,
                        score_ref, class_ref, box_ref):
    lr = lat_ref[0].astype(jnp.float32)           # [F, TM] lateral (bias included)
    li = lat_ref[1].astype(jnp.float32)
    # TODO(synk): exact DMAF cross-modal fusion unspecified; symmetric mix stand-in.
    pr = jnp.maximum(lr + 0.5 * li, 0.0).astype(jnp.bfloat16)
    pi = jnp.maximum(li + 0.5 * lr, 0.0).astype(jnp.bfloat16)
    # heads computed directly in lane-dense [8, TM] orientation
    hr = jnp.dot(whr_ref[...], pr, preferred_element_type=jnp.float32) + bhr_ref[...]
    hi = jnp.dot(whi_ref[...], pi, preferred_element_type=jnp.float32) + bhi_ref[...]

    meta = meta_ref[...]                          # [4, TM]: x, y, scale_exp, valid
    cx, cy = meta[0:1, :], meta[1:2, :]
    scale, valid = meta[2:3, :], meta[3:4, :]

    def detect(h):
        cls_logit = h[0:CLASS_NUM, :]                        # [C, TM]
        cnt_logit = h[CLASS_NUM:CLASS_NUM + 1, :]            # [1, TM]
        reg = jnp.exp(scale * h[CLASS_NUM + 1:, :])          # [4, TM] (exp only on reg)
        # first-occurrence argmax over the small static class dim
        max_l = cls_logit[0:1, :]
        idx = jnp.zeros_like(max_l, dtype=jnp.int32)
        for c in range(1, CLASS_NUM):
            cur = cls_logit[c:c + 1, :]
            idx = jnp.where(cur > max_l, jnp.int32(c), idx)
            max_l = jnp.maximum(max_l, cur)
        # sigmoid commutes with max; add_centerness + centerness_loss_sqrt
        score = jnp.sqrt(jax.nn.sigmoid(max_l) * jax.nn.sigmoid(cnt_logit)) * valid
        cls_id = idx + 1
        box = jnp.concatenate(
            [cx - reg[0:1, :], cy - reg[1:2, :], cx + reg[2:3, :], cy + reg[3:4, :]],
            axis=0)                                          # [4, TM]
        return score, cls_id, box

    sr, kr, br = detect(hr)
    si, ki, bi = detect(hi)
    score_ref[...] = jnp.concatenate([sr, si], axis=0)       # [2, TM]  single store
    class_ref[...] = jnp.concatenate([kr, ki], axis=0)       # [2, TM]
    box_ref[...] = jnp.stack([br, bi], axis=0)               # [2, 4, TM] single store


def pallas_head_detect(lat_all, meta, whrT, bhr, whiT, bhi, tm):
    """lat_all: [2, F, Mp] bf16, meta: [4, Mp] f32, whrT/whiT: [8, F], bhr/bhi: [8, 1].
    Returns (scores [2, Mp] f32, classes [2, Mp] i32, boxes [2, 4, Mp] f32)."""
    _, F, Mp = lat_all.shape
    grid = (Mp // tm,)

    flops = 2 * 2 * HEAD_OUT * F * Mp + 64 * Mp
    transcendentals = 12 * Mp                      # 2 sigmoid + 4 exp per modality / loc
    bytes_acc = (lat_all.size * 2 + meta.size * 4
                 + (whrT.size + whiT.size) * 2 + (bhr.size + bhi.size) * 4
                 + (2 + 2 + 8) * Mp * 4)

    return pl.pallas_call(
        _head_detect_kernel,
        out_shape=(
            jax.ShapeDtypeStruct((2, Mp), jnp.float32),
            jax.ShapeDtypeStruct((2, Mp), jnp.int32),
            jax.ShapeDtypeStruct((2, 4, Mp), jnp.float32),
        ),
        grid=grid,
        in_specs=[
            pl.BlockSpec((2, F, tm), lambda i: (0, 0, i)),
            pl.BlockSpec((HEAD_OUT, F), lambda i: (0, 0)),
            pl.BlockSpec((HEAD_OUT, 1), lambda i: (0, 0)),
            pl.BlockSpec((HEAD_OUT, F), lambda i: (0, 0)),
            pl.BlockSpec((HEAD_OUT, 1), lambda i: (0, 0)),
            pl.BlockSpec((4, tm), lambda i: (0, i)),
        ],
        out_specs=(
            pl.BlockSpec((2, tm), lambda i: (0, i)),
            pl.BlockSpec((2, tm), lambda i: (0, i)),
            pl.BlockSpec((2, 4, tm), lambda i: (0, 0, i)),
        ),
        compiler_params=pltpu.CompilerParams(
            dimension_semantics=("parallel",),
            vmem_limit_bytes=VMEM_LIMIT),
        cost_estimate=pl.CostEstimate(
            flops=int(flops), transcendentals=int(transcendentals),
            bytes_accessed=int(bytes_acc)),
    )(lat_all.astype(jnp.bfloat16), whrT.astype(jnp.bfloat16),
      bhr.astype(jnp.float32), whiT.astype(jnp.bfloat16),
      bhi.astype(jnp.float32), meta.astype(jnp.float32))


# ----------------------------------------------------------------------------
# Parameters (synthetic backbone / FPN / head stand-ins)
# ----------------------------------------------------------------------------
def init_params(key):
    ks = iter(jax.random.split(key, 32))

    def w(shape, scale=0.1):
        return scale * jax.random.normal(next(ks), shape, jnp.float32)

    def backbone_params():
        return dict(
            w1=w((8 * 8 * 3, 32)), b1=w((32,)),
            w2=w((2 * 2 * 32, 64)), b2=w((64,)),
            w3=w((2 * 2 * 64, 128)), b3=w((128,)),
        )

    def head_params():
        return dict(
            wc=w((FPN_OUT, CLASS_NUM)), bc=w((CLASS_NUM,)),
            wn=w((FPN_OUT, 1)), bn=w((1,)),
            wr=w((FPN_OUT, 4)), br=w((4,)),
        )

    return dict(
        bb_rgb=backbone_params(),
        bb_ir=backbone_params(),
        fpn=dict(
            wl=[w((32, FPN_OUT)), w((64, FPN_OUT)), w((128, FPN_OUT))],
            bl=[w((FPN_OUT,)), w((FPN_OUT,)), w((FPN_OUT,))],
        ),
        head_rgb=head_params(),
        head_ir=head_params(),
        # per-level FCOS ScaleExp for the reg branch, init 1.0
        scale_exp=jnp.ones((len(STRIDES),), jnp.float32),
    )


# ----------------------------------------------------------------------------
# FCOS body (backbones + fused lateral convs), built from the Pallas kernels
# ----------------------------------------------------------------------------
def fcos_body_forward(params, x_rgb_nhwc, x_ir_nhwc):
    B, H, W, _ = x_rgb_nhwc.shape
    x_pair = jnp.stack([x_rgb_nhwc, x_ir_nhwc], axis=0).astype(jnp.bfloat16)

    bb_r, bb_i = params["bb_rgb"], params["bb_ir"]

    def stacked(name):
        return jnp.stack([bb_r[name], bb_i[name]], axis=0)

    fpn = params["fpn"]
    # TODO(synk): real resnet50 replaced by strided patch-conv stand-ins.
    c3, lat0 = conv_stage(x_pair, stacked("w1"), stacked("b1"),
                          fpn["wl"][0], fpn["bl"][0], 8)                 # stride 8
    c4, lat1 = conv_stage(c3, stacked("w2"), stacked("b2"),
                          fpn["wl"][1], fpn["bl"][1], 2)                 # stride 16
    _, lat2 = conv_stage(c4, stacked("w3"), stacked("b3"),
                         fpn["wl"][2], fpn["bl"][2], 2, emit_feature=False)  # stride 32

    shapes = [(H // s, W // s) for s in STRIDES]
    return [lat0, lat1, lat2], shapes


# ----------------------------------------------------------------------------
# DetectHead_multispectral (glue around the merged Pallas head/detect kernel)
# ----------------------------------------------------------------------------
def coords_fmap2orig(h, w, stride):
    shifts_x = jnp.arange(0, w * stride, stride, dtype=jnp.float32) + stride // 2
    shifts_y = jnp.arange(0, h * stride, stride, dtype=jnp.float32) + stride // 2
    sy, sx = jnp.meshgrid(shifts_y, shifts_x, indexing="ij")
    return jnp.stack([sx.reshape(-1), sy.reshape(-1)], axis=0)   # [2, h*w]


def detect_head_device(params, lats, shapes, B):
    scales = params["scale_exp"]

    metas, hw_list = [], []
    for lvl, ((h, w), stride) in enumerate(zip(shapes, STRIDES)):
        hw = h * w
        coords = coords_fmap2orig(h, w, stride)                  # [2, hw]
        coords_b = jnp.tile(coords, (1, B))                      # [2, B*hw]  (m = b*hw + loc)
        scale_row = jnp.full((1, B * hw), scales[lvl], jnp.float32)
        valid_row = jnp.ones((1, B * hw), jnp.float32)
        metas.append(jnp.concatenate([coords_b, scale_row, valid_row], axis=0))
        hw_list.append(hw)

    meta = jnp.concatenate(metas, axis=1)                        # [4, M_total]
    lat_all = jnp.concatenate(lats, axis=2)                      # [2, F, M_total]
    M_total = meta.shape[1]

    # location tile: at least 2 "parallel" grid steps when possible (v7x megacore)
    tm = max(128, min(MAX_HEAD_TM, _round_up(-(-M_total // 2), 128)))
    Mp = _round_up(M_total, tm)
    pad = Mp - M_total
    if pad:
        lat_all = jnp.pad(lat_all, ((0, 0), (0, 0), (0, pad)))
        meta = jnp.pad(meta, ((0, 0), (0, pad)))                 # valid row -> 0 for padding

    # fuse each head's cls|cnt|reg 1x1 convs into one [8, FPN_OUT] weight (transposed)
    hr, hi = params["head_rgb"], params["head_ir"]
    whrT = jnp.concatenate([hr["wc"], hr["wn"], hr["wr"]], axis=1).T
    bhr = jnp.concatenate([hr["bc"], hr["bn"], hr["br"]], axis=0).reshape(HEAD_OUT, 1)
    whiT = jnp.concatenate([hi["wc"], hi["wn"], hi["wr"]], axis=1).T
    bhi = jnp.concatenate([hi["bc"], hi["bn"], hi["br"]], axis=0).reshape(HEAD_OUT, 1)

    scores2, classes2, boxes2 = pallas_head_detect(lat_all, meta, whrT, bhr, whiT, bhi, tm)

    def gather_mod(mod):
        off = 0
        ss, cs, bs = [], [], []
        for hw in hw_list:
            n = B * hw
            ss.append(scores2[mod, off:off + n].reshape(B, hw))
            cs.append(classes2[mod, off:off + n].reshape(B, hw))
            bseg = boxes2[mod, :, off:off + n].reshape(4, B, hw)
            bs.append(jnp.transpose(bseg, (1, 0, 2)))            # [B, 4, hw]
            off += n
        return (jnp.concatenate(ss, axis=1),
                jnp.concatenate(cs, axis=1),
                jnp.concatenate(bs, axis=2))

    sr, cr, br = gather_mod(0)
    si, ci, bi = gather_mod(1)
    scores = jnp.concatenate([sr, si], axis=1)                   # [B, 2L] rgb then ir
    classes = jnp.concatenate([cr, ci], axis=1)
    boxes_t = jnp.concatenate([br, bi], axis=2)                  # [B, 4, 2L]

    L2 = scores.shape[1]
    max_num = min(MAX_DETECTION_BOXES_NUM, L2)
    topk_scores, topk_ind = lax.top_k(scores, max_num)
    classes_topk = jnp.take_along_axis(classes, topk_ind, axis=1)
    idx_b = jnp.broadcast_to(topk_ind[:, None, :], (scores.shape[0], 4, max_num))
    boxes_topk = jnp.transpose(jnp.take_along_axis(boxes_t, idx_b, axis=2), (0, 2, 1))
    return topk_scores, classes_topk, boxes_topk


@jax.jit
def _device_forward(params, batch_rgb_nchw, batch_ir_nchw):
    x_rgb = jnp.transpose(batch_rgb_nchw, (0, 2, 3, 1))  # NCHW -> NHWC
    x_ir = jnp.transpose(batch_ir_nchw, (0, 2, 3, 1))
    lats, shapes = fcos_body_forward(params, x_rgb, x_ir)
    return detect_head_device(params, lats, shapes, x_rgb.shape[0])


# ------------------------- host-side post-processing -------------------------
def box_nms_np(boxes, scores, thr):
    if boxes.shape[0] == 0:
        return np.zeros((0,), dtype=np.int64)
    x1, y1, x2, y2 = boxes[:, 0], boxes[:, 1], boxes[:, 2], boxes[:, 3]
    areas = (x2 - x1 + 1) * (y2 - y1 + 1)
    order = np.argsort(-scores, kind="stable")
    keep = []
    while order.size > 0:
        i = int(order[0])
        keep.append(i)
        if order.size == 1:
            break
        xmin = np.maximum(x1[order[1:]], x1[i])
        ymin = np.maximum(y1[order[1:]], y1[i])
        xmax = np.minimum(x2[order[1:]], x2[i])
        ymax = np.minimum(y2[order[1:]], y2[i])
        inter = np.clip(xmax - xmin + 1, 0, None) * np.clip(ymax - ymin + 1, 0, None)
        iou = inter / (areas[i] + areas[order[1:]] - inter)
        idx = np.nonzero(iou <= thr)[0]
        if idx.size == 0:
            break
        order = order[idx + 1]
    return np.array(keep, dtype=np.int64)


def batched_nms_np(boxes, scores, idxs, iou_threshold):
    if boxes.size == 0:
        return np.zeros((0,), dtype=np.int64)
    max_coordinate = boxes.max()
    offsets = idxs.astype(boxes.dtype) * (max_coordinate + 1)
    return box_nms_np(boxes + offsets[:, None], scores, iou_threshold)


def post_process_and_clip(scores_topk, classes_topk, boxes_topk, img_h, img_w):
    scores_np = np.asarray(scores_topk)
    classes_np = np.asarray(classes_topk)
    boxes_np = np.asarray(boxes_topk)
    s_out, c_out, b_out = [], [], []
    for bi in range(scores_np.shape[0]):
        mask = scores_np[bi] >= SCORE_THRESHOLD
        sb, cb, bb = scores_np[bi][mask], classes_np[bi][mask], boxes_np[bi][mask]
        keep = batched_nms_np(bb, sb, cb, NMS_IOU_THRESHOLD)
        sb, cb, bb = sb[keep], cb[keep], bb[keep]
        # ClipBoxes
        bb = np.clip(bb, 0, None)
        bb[..., [0, 2]] = np.clip(bb[..., [0, 2]], None, img_w - 1)
        bb[..., [1, 3]] = np.clip(bb[..., [1, 3]], None, img_h - 1)
        s_out.append(sb)
        c_out.append(cb)
        b_out.append(bb)
    return s_out, c_out, b_out


# ----------------------------------------------------------------------------
# FCOSDetector (inference mode) wrapper
# ----------------------------------------------------------------------------
def fcos_detector_inference(params, batch_rgb_imgs_nchw, batch_ir_imgs_nchw):
    topk_scores, topk_classes, topk_boxes = _device_forward(
        params, batch_rgb_imgs_nchw, batch_ir_imgs_nchw)
    jax.block_until_ready((topk_scores, topk_classes, topk_boxes))
    H, W = batch_rgb_imgs_nchw.shape[2], batch_rgb_imgs_nchw.shape[3]
    # NORM_REG_TARGETS is False -> no per-stride box rescaling
    return post_process_and_clip(topk_scores, topk_classes, topk_boxes, H, W)


if __name__ == "__main__":
    key = jax.random.PRNGKey(0)
    k_param, k_rgb, k_ir = jax.random.split(key, 3)

    params = init_params(k_param)
    batch_rgb = jax.random.normal(k_rgb, (2, 3, 64, 64), jnp.float32)
    batch_ir = jax.random.normal(k_ir, (2, 3, 64, 64), jnp.float32)

    scores, classes, boxes = fcos_detector_inference(params, batch_rgb, batch_ir)

    # sanity: per-batch lists, boxes have last dim 4
    assert len(scores) == 2 and len(classes) == 2 and len(boxes) == 2
    for b in boxes:
        assert (b.ndim == 2 and b.shape[-1] == 4) or b.size == 0

    print("KERNEL_OK")
</pallas_src>

<mosaic_0001>
module attributes {stable_mosaic.version = 11 : i64} {
  func.func @_stage_kernel(%arg0: i32, %arg1: i32, %arg2: memref<1x128x256xbf16, #tpu.memory_space<vmem>>, %arg3: memref<1x256x32xbf16, #tpu.memory_space<vmem>>, %arg4: memref<1x1x32xf32, #tpu.memory_space<vmem>>, %arg5: memref<32x32xbf16, #tpu.memory_space<vmem>>, %arg6: memref<1x32xf32, #tpu.memory_space<vmem>>, %arg7: memref<1x128x32xbf16, #tpu.memory_space<vmem>>, %arg8: memref<1x32x128xbf16, #tpu.memory_space<vmem>>) attributes {dimension_semantics = [#tpu.dimension_semantics<parallel>, #tpu.dimension_semantics<parallel>], iteration_bounds = array<i64: 2, 1>, scalar_prefetch = 0 : i64, scratch_operands = 0 : i64, tpu.core_type = #tpu.core_type<tc>, window_params = [{transform_indices = @transform_0, window_bounds = array<i64: 1, 128, 256>}, {transform_indices = @transform_1, window_bounds = array<i64: 1, 256, 32>}, {transform_indices = @transform_2, window_bounds = array<i64: 1, 1, 32>}, {pipeline_mode = #tpu.pipeline_mode<synchronous>, transform_indices = @transform_3, window_bounds = array<i64: 32, 32>}, {pipeline_mode = #tpu.pipeline_mode<synchronous>, transform_indices = @transform_4, window_bounds = array<i64: 1, 32>}, {transform_indices = @transform_5, window_bounds = array<i64: 1, 128, 32>}, {transform_indices = @transform_6, window_bounds = array<i64: 1, 32, 128>}]} {
    %c0 = arith.constant 0 : index
    %c0_0 = arith.constant 0 : index
    %c0_1 = arith.constant 0 : index
    %0 = vector.load %arg2[%c0, %c0_0, %c0_1] : memref<1x128x256xbf16, #tpu.memory_space<vmem>>, vector<1x128x256xbf16>
    %1 = vector.shape_cast %0 : vector<1x128x256xbf16> to vector<128x256xbf16>
    %c0_2 = arith.constant 0 : index
    %c0_3 = arith.constant 0 : index
    %c0_4 = arith.constant 0 : index
    %2 = vector.load %arg3[%c0_2, %c0_3, %c0_4] : memref<1x256x32xbf16, #tpu.memory_space<vmem>>, vector<1x256x32xbf16>
    %3 = vector.shape_cast %2 : vector<1x256x32xbf16> to vector<256x32xbf16>
    %cst = arith.constant dense<0.000000e+00> : vector<128x32xf32>
    %4 = tpu.matmul %1, %3, %cst {dimension_numbers = #tpu.dot_dimension_numbers<[1], [0], [0], [1], [0, 0, 1, 1], [], []>} : vector<128x256xbf16>, vector<256x32xbf16>, vector<128x32xf32> -> vector<128x32xf32>
    %c0_5 = arith.constant 0 : index
    %c0_6 = arith.constant 0 : index
    %c0_7 = arith.constant 0 : index
    %5 = vector.load %arg4[%c0_5, %c0_6, %c0_7] : memref<1x1x32xf32, #tpu.memory_space<vmem>>, vector<1x1x32xf32>
    %6 = vector.shape_cast %5 : vector<1x1x32xf32> to vector<1x32xf32>
    %7 = vector.broadcast %6 : vector<1x32xf32> to vector<128x32xf32>
    %8 = arith.addf %4, %7 : vector<128x32xf32>
    %cst_8 = arith.constant 0.000000e+00 : f32
    %9 = vector.broadcast %cst_8 : f32 to vector<128x32xf32>
    %10 = arith.maximumf %8, %9 : vector<128x32xf32>
    %11 = arith.truncf %10 : vector<128x32xf32> to vector<128x32xbf16>
    %c0_9 = arith.constant 0 : index
    %c0_10 = arith.constant 0 : index
    %c0_11 = arith.constant 0 : index
    %12 = vector.load %arg7[%c0_9, %c0_10, %c0_11] : memref<1x128x32xbf16, #tpu.memory_space<vmem>>, vector<1x128x32xbf16>
    %13 = vector.shape_cast %12 : vector<1x128x32xbf16> to vector<128x32xbf16>
    %14 = vector.shape_cast %11 : vector<128x32xbf16> to vector<1x128x32xbf16>
    tpu.vector_store %arg7[%c0_9, %c0_10, %c0_11], %14 {strides = array<i32>} : memref<1x128x32xbf16, #tpu.memory_space<vmem>>, vector<1x128x32xbf16>,
    %c0_12 = arith.constant 0 : index
    %c0_13 = arith.constant 0 : index
    %15 = vector.load %arg5[%c0_12, %c0_13] : memref<32x32xbf16, #tpu.memory_space<vmem>>, vector<32x32xbf16>
    %cst_14 = arith.constant dense<0.000000e+00> : vector<128x32xf32>
    %16 = tpu.matmul %11, %15, %cst_14 {dimension_numbers = #tpu.dot_dimension_numbers<[1], [0], [0], [1], [0, 0, 1, 1], [], []>} : vector<128x32xbf16>, vector<32x32xbf16>, vector<128x32xf32> -> vector<128x32xf32>
    %c0_15 = arith.constant 0 : index
    %c0_16 = arith.constant 0 : index
    %17 = vector.load %arg6[%c0_15, %c0_16] : memref<1x32xf32, #tpu.memory_space<vmem>>, vector<1x32xf32>
    %18 = vector.broadcast %17 : vector<1x32xf32> to vector<128x32xf32>
    %19 = arith.addf %16, %18 : vector<128x32xf32>
    %20 = tpu.transpose %19, [1, 0] : vector<128x32xf32> -> vector<32x128xf32>
    %21 = arith.truncf %20 : vector<32x128xf32> to vector<32x128xbf16>
    %c0_17 = arith.constant 0 : index
    %c0_18 = arith.constant 0 : index
    %c0_19 = arith.constant 0 : index
    %22 = vector.load %arg8[%c0_17, %c0_18, %c0_19] : memref<1x32x128xbf16, #tpu.memory_space<vmem>>, vector<1x32x128xbf16>
    %23 = vector.shape_cast %22 : vector<1x32x128xbf16> to vector<32x128xbf16>
    %24 = vector.shape_cast %21 : vector<32x128xbf16> to vector<1x32x128xbf16>
    tpu.vector_store %arg8[%c0_17, %c0_18, %c0_19], %24 {strides = array<i32>} : memref<1x32x128xbf16, #tpu.memory_space<vmem>>, vector<1x32x128xbf16>,
    return
  }
  func.func @transform_0(%arg0: i32, %arg1: i32) -> (i32, i32, i32) {
    %c0_i32 = arith.constant 0 : i32
    %c0_i32_0 = arith.constant 0 : i32
    return %arg0, %arg1, %c0_i32 : i32, i32, i32
  }
  func.func @transform_1(%arg0: i32, %arg1: i32) -> (i32, i32, i32) {
    %c0_i32 = arith.constant 0 : i32
    %c0_i32_0 = arith.constant 0 : i32
    %c0_i32_1 = arith.constant 0 : i32
    return %arg0, %c0_i32, %c0_i32_0 : i32, i32, i32
  }
  func.func @transform_2(%arg0: i32, %arg1: i32) -> (i32, i32, i32) {
    %c0_i32 = arith.constant 0 : i32
    %c0_i32_0 = arith.constant 0 : i32
    %c0_i32_1 = arith.constant 0 : i32
    return %arg0, %c0_i32, %c0_i32_0 : i32, i32, i32
  }
  func.func @transform_3(%arg0: i32, %arg1: i32) -> (i32, i32) {
    %c0_i32 = arith.constant 0 : i32
    %c0_i32_0 = arith.constant 0 : i32
    %c0_i32_1 = arith.constant 0 : i32
    return %c0_i32, %c0_i32_0 : i32, i32
  }
  func.func @transform_4(%arg0: i32, %arg1: i32) -> (i32, i32) {
    %c0_i32 = arith.constant 0 : i32
    %c0_i32_0 = arith.constant 0 : i32
    %c0_i32_1 = arith.constant 0 : i32
    return %c0_i32, %c0_i32_0 : i32, i32
  }
  func.func @transform_5(%arg0: i32, %arg1: i32) -> (i32, i32, i32) {
    %c0_i32 = arith.constant 0 : i32
    %c0_i32_0 = arith.constant 0 : i32
    return %arg0, %arg1, %c0_i32 : i32, i32, i32
  }
  func.func @transform_6(%arg0: i32, %arg1: i32) -> (i32, i32, i32) {
    %c0_i32 = arith.constant 0 : i32
    %c0_i32_0 = arith.constant 0 : i32
    return %arg0, %c0_i32, %arg1 : i32, i32, i32
  }
}

module attributes {stable_mosaic.version = 11 : i64} {
  func.func @_stage_kernel(%arg0: i32, %arg1: i32, %arg2: memref<1x32x128xbf16, #tpu.memory_space<vmem>>, %arg3: memref<1x128x64xbf16, #tpu.memory_space<vmem>>, %arg4: memref<1x1x64xf32, #tpu.memory_space<vmem>>, %arg5: memref<64x32xbf16, #tpu.memory_space<vmem>>, %arg6: memref<1x32xf32, #tpu.memory_space<vmem>>, %arg7: memref<1x32x64xbf16, #tpu.memory_space<vmem>>, %arg8: memref<1x32x32xbf16, #tpu.memory_space<vmem>>) attributes {dimension_semantics = [#tpu.dimension_semantics<parallel>, #tpu.dimension_semantics<parallel>], iteration_bounds = array<i64: 2, 1>, scalar_prefetch = 0 : i64, scratch_operands = 0 : i64, tpu.core_type = #tpu.core_type<tc>, window_params = [{transform_indices = @transform_0, window_bounds = array<i64: 1, 32, 128>}, {transform_indices = @transform_1, window_bounds = array<i64: 1, 128, 64>}, {transform_indices = @transform_2, window_bounds = array<i64: 1, 1, 64>}, {pipeline_mode = #tpu.pipeline_mode<synchronous>, transform_indices = @transform_3, window_bounds = array<i64: 64, 32>}, {pipeline_mode = #tpu.pipeline_mode<synchronous>, transform_indices = @transform_4, window_bounds = array<i64: 1, 32>}, {transform_indices = @transform_5, window_bounds = array<i64: 1, 32, 64>}, {transform_indices = @transform_6, window_bounds = array<i64: 1, 32, 32>}]} {
    %c0 = arith.constant 0 : index
    %c0_0 = arith.constant 0 : index
    %c0_1 = arith.constant 0 : index
    %0 = vector.load %arg2[%c0, %c0_0, %c0_1] : memref<1x32x128xbf16, #tpu.memory_space<vmem>>, vector<1x32x128xbf16>
    %1 = vector.shape_cast %0 : vector<1x32x128xbf16> to vector<32x128xbf16>
    %c0_2 = arith.constant 0 : index
    %c0_3 = arith.constant 0 : index
    %c0_4 = arith.constant 0 : index
    %2 = vector.load %arg3[%c0_2, %c0_3, %c0_4] : memref<1x128x64xbf16, #tpu.memory_space<vmem>>, vector<1x128x64xbf16>
    %3 = vector.shape_cast %2 : vector<1x128x64xbf16> to vector<128x64xbf16>
    %cst = arith.constant dense<0.000000e+00> : vector<32x64xf32>
    %4 = tpu.matmul %1, %3, %cst {dimension_numbers = #tpu.dot_dimension_numbers<[1], [0], [0], [1], [0, 0, 1, 1], [], []>} : vector<32x128xbf16>, vector<128x64xbf16>, vector<32x64xf32> -> vector<32x64xf32>
    %c0_5 = arith.constant 0 : index
    %c0_6 = arith.constant 0 : index
    %c0_7 = arith.constant 0 : index
    %5 = vector.load %arg4[%c0_5, %c0_6, %c0_7] : memref<1x1x64xf32, #tpu.memory_space<vmem>>, vector<1x1x64xf32>
    %6 = vector.shape_cast %5 : vector<1x1x64xf32> to vector<1x64xf32>
    %7 = vector.broadcast %6 : vector<1x64xf32> to vector<32x64xf32>
    %8 = arith.addf %4, %7 : vector<32x64xf32>
    %cst_8 = arith.constant 0.000000e+00 : f32
    %9 = vector.broadcast %cst_8 : f32 to vector<32x64xf32>
    %10 = arith.maximumf %8, %9 : vector<32x64xf32>
    %11 = arith.truncf %10 : vector<32x64xf32> to vector<32x64xbf16>
    %c0_9 = arith.constant 0 : index
    %c0_10 = arith.constant 0 : index
    %c0_11 = arith.constant 0 : index
    %12 = vector.load %arg7[%c0_9, %c0_10, %c0_11] : memref<1x32x64xbf16, #tpu.memory_space<vmem>>, vector<1x32x64xbf16>
    %13 = vector.shape_cast %12 : vector<1x32x64xbf16> to vector<32x64xbf16>
    %14 = vector.shape_cast %11 : vector<32x64xbf16> to vector<1x32x64xbf16>
    tpu.vector_store %arg7[%c0_9, %c0_10, %c0_11], %14 {strides = array<i32>} : memref<1x32x64xbf16, #tpu.memory_space<vmem>>, vector<1x32x64xbf16>,
    %c0_12 = arith.constant 0 : index
    %c0_13 = arith.constant 0 : index
    %15 = vector.load %arg5[%c0_12, %c0_13] : memref<64x32xbf16, #tpu.memory_space<vmem>>, vector<64x32xbf16>
    %cst_14 = arith.constant dense<0.000000e+00> : vector<32x32xf32>
    %16 = tpu.matmul %11, %15, %cst_14 {dimension_numbers = #tpu.dot_dimension_numbers<[1], [0], [0], [1], [0, 0, 1, 1], [], []>} : vector<32x64xbf16>, vector<64x32xbf16>, vector<32x32xf32> -> vector<32x32xf32>
    %c0_15 = arith.constant 0 : index
    %c0_16 = arith.constant 0 : index
    %17 = vector.load %arg6[%c0_15, %c0_16] : memref<1x32xf32, #tpu.memory_space<vmem>>, vector<1x32xf32>
    %18 = vector.broadcast %17 : vector<1x32xf32> to vector<32x32xf32>
    %19 = arith.addf %16, %18 : vector<32x32xf32>
    %20 = tpu.transpose %19, [1, 0] : vector<32x32xf32> -> vector<32x32xf32>
    %21 = arith.truncf %20 : vector<32x32xf32> to vector<32x32xbf16>
    %c0_17 = arith.constant 0 : index
    %c0_18 = arith.constant 0 : index
    %c0_19 = arith.constant 0 : index
    %22 = vector.load %arg8[%c0_17, %c0_18, %c0_19] : memref<1x32x32xbf16, #tpu.memory_space<vmem>>, vector<1x32x32xbf16>
    %23 = vector.shape_cast %22 : vector<1x32x32xbf16> to vector<32x32xbf16>
    %24 = vector.shape_cast %21 : vector<32x32xbf16> to vector<1x32x32xbf16>
    tpu.vector_store %arg8[%c0_17, %c0_18, %c0_19], %24 {strides = array<i32>} : memref<1x32x32xbf16, #tpu.memory_space<vmem>>, vector<1x32x32xbf16>,
    return
  }
  func.func @transform_0(%arg0: i32, %arg1: i32) -> (i32, i32, i32) {
    %c0_i32 = arith.constant 0 : i32
    %c0_i32_0 = arith.constant 0 : i32
    return %arg0, %arg1, %c0_i32 : i32, i32, i32
  }
  func.func @transform_1(%arg0: i32, %arg1: i32) -> (i32, i32, i32) {
    %c0_i32 = arith.constant 0 : i32
    %c0_i32_0 = arith.constant 0 : i32
    %c0_i32_1 = arith.constant 0 : i32
    return %arg0, %c0_i32, %c0_i32_0 : i32, i32, i32
  }
  func.func @transform_2(%arg0: i32, %arg1: i32) -> (i32, i32, i32) {
    %c0_i32 = arith.constant 0 : i32
    %c0_i32_0 = arith.constant 0 : i32
    %c0_i32_1 = arith.constant 0 : i32
    return %arg0, %c0_i32, %c0_i32_0 : i32, i32, i32
  }
  func.func @transform_3(%arg0: i32, %arg1: i32) -> (i32, i32) {
    %c0_i32 = arith.constant 0 : i32
    %c0_i32_0 = arith.constant 0 : i32
    %c0_i32_1 = arith.constant 0 : i32
    return %c0_i32, %c0_i32_0 : i32, i32
  }
  func.func @transform_4(%arg0: i32, %arg1: i32) -> (i32, i32) {
    %c0_i32 = arith.constant 0 : i32
    %c0_i32_0 = arith.constant 0 : i32
    %c0_i32_1 = arith.constant 0 : i32
    return %c0_i32, %c0_i32_0 : i32, i32
  }
  func.func @transform_5(%arg0: i32, %arg1: i32) -> (i32, i32, i32) {
    %c0_i32 = arith.constant 0 : i32
    %c0_i32_0 = arith.constant 0 : i32
    return %arg0, %arg1, %c0_i32 : i32, i32, i32
  }
  func.func @transform_6(%arg0: i32, %arg1: i32) -> (i32, i32, i32) {
    %c0_i32 = arith.constant 0 : i32
    %c0_i32_0 = arith.constant 0 : i32
    return %arg0, %c0_i32, %arg1 : i32, i32, i32
  }
}

module attributes {stable_mosaic.version = 11 : i64} {
  func.func @_stage_kernel(%arg0: i32, %arg1: i32, %arg2: memref<1x8x256xbf16, #tpu.memory_space<vmem>>, %arg3: memref<1x256x128xbf16, #tpu.memory_space<vmem>>, %arg4: memref<1x1x128xf32, #tpu.memory_space<vmem>>, %arg5: memref<128x32xbf16, #tpu.memory_space<vmem>>, %arg6: memref<1x32xf32, #tpu.memory_space<vmem>>, %arg7: memref<1x32x8xbf16, #tpu.memory_space<vmem>>) attributes {dimension_semantics = [#tpu.dimension_semantics<parallel>, #tpu.dimension_semantics<parallel>], iteration_bounds = array<i64: 2, 1>, scalar_prefetch = 0 : i64, scratch_operands = 0 : i64, tpu.core_type = #tpu.core_type<tc>, window_params = [{transform_indices = @transform_0, window_bounds = array<i64: 1, 8, 256>}, {transform_indices = @transform_1, window_bounds = array<i64: 1, 256, 128>}, {transform_indices = @transform_2, window_bounds = array<i64: 1, 1, 128>}, {pipeline_mode = #tpu.pipeline_mode<synchronous>, transform_indices = @transform_3, window_bounds = array<i64: 128, 32>}, {pipeline_mode = #tpu.pipeline_mode<synchronous>, transform_indices = @transform_4, window_bounds = array<i64: 1, 32>}, {transform_indices = @transform_5, window_bounds = array<i64: 1, 32, 8>}]} {
    %c0 = arith.constant 0 : index
    %c0_0 = arith.constant 0 : index
    %c0_1 = arith.constant 0 : index
    %0 = vector.load %arg2[%c0, %c0_0, %c0_1] : memref<1x8x256xbf16, #tpu.memory_space<vmem>>, vector<1x8x256xbf16>
    %1 = vector.shape_cast %0 : vector<1x8x256xbf16> to vector<8x256xbf16>
    %c0_2 = arith.constant 0 : index
    %c0_3 = arith.constant 0 : index
    %c0_4 = arith.constant 0 : index
    %2 = vector.load %arg3[%c0_2, %c0_3, %c0_4] : memref<1x256x128xbf16, #tpu.memory_space<vmem>>, vector<1x256x128xbf16>
    %3 = vector.shape_cast %2 : vector<1x256x128xbf16> to vector<256x128xbf16>
    %cst = arith.constant dense<0.000000e+00> : vector<8x128xf32>
    %4 = tpu.matmul %1, %3, %cst {dimension_numbers = #tpu.dot_dimension_numbers<[1], [0], [0], [1], [0, 0, 1, 1], [], []>} : vector<8x256xbf16>, vector<256x128xbf16>, vector<8x128xf32> -> vector<8x128xf32>
    %c0_5 = arith.constant 0 : index
    %c0_6 = arith.constant 0 : index
    %c0_7 = arith.constant 0 : index
    %5 = vector.load %arg4[%c0_5, %c0_6, %c0_7] : memref<1x1x128xf32, #tpu.memory_space<vmem>>, vector<1x1x128xf32>
    %6 = vector.shape_cast %5 : vector<1x1x128xf32> to vector<1x128xf32>
    %7 = vector.broadcast %6 : vector<1x128xf32> to vector<8x128xf32>
    %8 = arith.addf %4, %7 : vector<8x128xf32>
    %cst_8 = arith.constant 0.000000e+00 : f32
    %9 = vector.broadcast %cst_8 : f32 to vector<8x128xf32>
    %10 = arith.maximumf %8, %9 : vector<8x128xf32>
    %11 = arith.truncf %10 : vector<8x128xf32> to vector<8x128xbf16>
    %c0_9 = arith.constant 0 : index
    %c0_10 = arith.constant 0 : index
    %12 = vector.load %arg5[%c0_9, %c0_10] : memref<128x32xbf16, #tpu.memory_space<vmem>>, vector<128x32xbf16>
    %cst_11 = arith.constant dense<0.000000e+00> : vector<8x32xf32>
    %13 = tpu.matmul %11, %12, %cst_11 {dimension_numbers = #tpu.dot_dimension_numbers<[1], [0], [0], [1], [0, 0, 1, 1], [], []>} : vector<8x128xbf16>, vector<128x32xbf16>, vector<8x32xf32> -> vector<8x32xf32>
    %c0_12 = arith.constant 0 : index
    %c0_13 = arith.constant 0 : index
    %14 = vector.load %arg6[%c0_12, %c0_13] : memref<1x32xf32, #tpu.memory_space<vmem>>, vector<1x32xf32>
    %15 = vector.broadcast %14 : vector<1x32xf32> to vector<8x32xf32>
    %16 = arith.addf %13, %15 : vector<8x32xf32>
    %17 = tpu.transpose %16, [1, 0] : vector<8x32xf32> -> vector<32x8xf32>
    %18 = arith.truncf %17 : vector<32x8xf32> to vector<32x8xbf16>
    %c0_14 = arith.constant 0 : index
    %c0_15 = arith.constant 0 : index
    %c0_16 = arith.constant 0 : index
    %19 = vector.load %arg7[%c0_14, %c0_15, %c0_16] : memref<1x32x8xbf16, #tpu.memory_space<vmem>>, vector<1x32x8xbf16>
    %20 = vector.shape_cast %19 : vector<1x32x8xbf16> to vector<32x8xbf16>
    %21 = vector.shape_cast %18 : vector<32x8xbf16> to vector<1x32x8xbf16>
    tpu.vector_store %arg7[%c0_14, %c0_15, %c0_16], %21 {strides = array<i32>} : memref<1x32x8xbf16, #tpu.memory_space<vmem>>, vector<1x32x8xbf16>,
    return
  }
  func.func @transform_0(%arg0: i32, %arg1: i32) -> (i32, i32, i32) {
    %c0_i32 = arith.constant 0 : i32
    %c0_i32_0 = arith.constant 0 : i32
    return %arg0, %arg1, %c0_i32 : i32, i32, i32
  }
  func.func @transform_1(%arg0: i32, %arg1: i32) -> (i32, i32, i32) {
    %c0_i32 = arith.constant 0 : i32
    %c0_i32_0 = arith.constant 0 : i32
    %c0_i32_1 = arith.constant 0 : i32
    return %arg0, %c0_i32, %c0_i32_0 : i32, i32, i32
  }
  func.func @transform_2(%arg0: i32, %arg1: i32) -> (i32, i32, i32) {
    %c0_i32 = arith.constant 0 : i32
    %c0_i32_0 = arith.constant 0 : i32
    %c0_i32_1 = arith.constant 0 : i32
    return %arg0, %c0_i32, %c0_i32_0 : i32, i32, i32
  }
  func.func @transform_3(%arg0: i32, %arg1: i32) -> (i32, i32) {
    %c0_i32 = arith.constant 0 : i32
    %c0_i32_0 = arith.constant 0 : i32
    %c0_i32_1 = arith.constant 0 : i32
    return %c0_i32, %c0_i32_0 : i32, i32
  }
  func.func @transform_4(%arg0: i32, %arg1: i32) -> (i32, i32) {
    %c0_i32 = arith.constant 0 : i32
    %c0_i32_0 = arith.constant 0 : i32
    %c0_i32_1 = arith.constant 0 : i32
    return %c0_i32, %c0_i32_0 : i32, i32
  }
  func.func @transform_5(%arg0: i32, %arg1: i32) -> (i32, i32, i32) {
    %c0_i32 = arith.constant 0 : i32
    %c0_i32_0 = arith.constant 0 : i32
    return %arg0, %c0_i32, %arg1 : i32, i32, i32
  }
}

module attributes {stable_mosaic.version = 11 : i64} {
  func.func @_head_detect_kernel(%arg0: i32, %arg1: memref<2x32x128xbf16, #tpu.memory_space<vmem>>, %arg2: memref<8x32xbf16, #tpu.memory_space<vmem>>, %arg3: memref<8x1xf32, #tpu.memory_space<vmem>>, %arg4: memref<8x32xbf16, #tpu.memory_space<vmem>>, %arg5: memref<8x1xf32, #tpu.memory_space<vmem>>, %arg6: memref<4x128xf32, #tpu.memory_space<vmem>>, %arg7: memref<2x128xf32, #tpu.memory_space<vmem>>, %arg8: memref<2x128xi32, #tpu.memory_space<vmem>>, %arg9: memref<2x4x128xf32, #tpu.memory_space<vmem>>) attributes {dimension_semantics = [#tpu.dimension_semantics<parallel>], iteration_bounds = array<i64: 2>, scalar_prefetch = 0 : i64, scratch_operands = 0 : i64, tpu.core_type = #tpu.core_type<tc>, window_params = [{transform_indices = @transform_0, window_bounds = array<i64: 2, 32, 128>}, {pipeline_mode = #tpu.pipeline_mode<synchronous>, transform_indices = @transform_1, window_bounds = array<i64: 8, 32>}, {pipeline_mode = #tpu.pipeline_mode<synchronous>, transform_indices = @transform_2, window_bounds = array<i64: 8, 1>}, {pipeline_mode = #tpu.pipeline_mode<synchronous>, transform_indices = @transform_3, window_bounds = array<i64: 8, 32>}, {pipeline_mode = #tpu.pipeline_mode<synchronous>, transform_indices = @transform_4, window_bounds = array<i64: 8, 1>}, {transform_indices = @transform_5, window_bounds = array<i64: 4, 128>}, {transform_indices = @transform_6, window_bounds = array<i64: 2, 128>}, {transform_indices = @transform_7, window_bounds = array<i64: 2, 128>}, {transform_indices = @transform_8, window_bounds = array<i64: 2, 4, 128>}]} {
    %c0 = arith.constant 0 : index
    %c0_0 = arith.constant 0 : index
    %c0_1 = arith.constant 0 : index
    %0 = vector.load %arg1[%c0, %c0_0, %c0_1] : memref<2x32x128xbf16, #tpu.memory_space<vmem>>, vector<1x32x128xbf16>
    %1 = vector.shape_cast %0 : vector<1x32x128xbf16> to vector<32x128xbf16>
    %2 = arith.extf %1 : vector<32x128xbf16> to vector<32x128xf32>
    %c1 = arith.constant 1 : index
    %c0_2 = arith.constant 0 : index
    %c0_3 = arith.constant 0 : index
    %3 = vector.load %arg1[%c1, %c0_2, %c0_3] : memref<2x32x128xbf16, #tpu.memory_space<vmem>>, vector<1x32x128xbf16>
    %4 = vector.shape_cast %3 : vector<1x32x128xbf16> to vector<32x128xbf16>
    %5 = arith.extf %4 : vector<32x128xbf16> to vector<32x128xf32>
    %cst = arith.constant 5.000000e-01 : f32
    %6 = vector.broadcast %cst : f32 to vector<32x128xf32>
    %7 = arith.mulf %6, %5 : vector<32x128xf32>
    %8 = arith.addf %2, %7 : vector<32x128xf32>
    %cst_4 = arith.constant 0.000000e+00 : f32
    %9 = vector.broadcast %cst_4 : f32 to vector<32x128xf32>
    %10 = arith.maximumf %8, %9 : vector<32x128xf32>
    %11 = arith.truncf %10 : vector<32x128xf32> to vector<32x128xbf16>
    %cst_5 = arith.constant 5.000000e-01 : f32
    %12 = vector.broadcast %cst_5 : f32 to vector<32x128xf32>
    %13 = arith.mulf %12, %2 : vector<32x128xf32>
    %14 = arith.addf %5, %13 : vector<32x128xf32>
    %cst_6 = arith.constant 0.000000e+00 : f32
    %15 = vector.broadcast %cst_6 : f32 to vector<32x128xf32>
    %16 = arith.maximumf %14, %15 : vector<32x128xf32>
    %17 = arith.truncf %16 : vector<32x128xf32> to vector<32x128xbf16>
    %c0_7 = arith.constant 0 : index
    %c0_8 = arith.constant 0 : index
    %18 = vector.load %arg2[%c0_7, %c0_8] : memref<8x32xbf16, #tpu.memory_space<vmem>>, vector<8x32xbf16>
    %cst_9 = arith.constant dense<0.000000e+00> : vector<8x128xf32>
    %19 = tpu.matmul %18, %11, %cst_9 {dimension_numbers = #tpu.dot_dimension_numbers<[1], [0], [0], [1], [0, 0, 1, 1], [], []>} : vector<8x32xbf16>, vector<32x128xbf16>, vector<8x128xf32> -> vector<8x128xf32>
    %c0_10 = arith.constant 0 : index
    %c0_11 = arith.constant 0 : index
    %20 = vector.load %arg3[%c0_10, %c0_11] : memref<8x1xf32, #tpu.memory_space<vmem>>, vector<8x1xf32>
    %21 = vector.broadcast %20 : vector<8x1xf32> to vector<8x128xf32>
    %22 = arith.addf %19, %21 : vector<8x128xf32>
    %c0_12 = arith.constant 0 : index
    %c0_13 = arith.constant 0 : index
    %23 = vector.load %arg4[%c0_12, %c0_13] : memref<8x32xbf16, #tpu.memory_space<vmem>>, vector<8x32xbf16>
    %cst_14 = arith.constant dense<0.000000e+00> : vector<8x128xf32>
    %24 = tpu.matmul %23, %17, %cst_14 {dimension_numbers = #tpu.dot_dimension_numbers<[1], [0], [0], [1], [0, 0, 1, 1], [], []>} : vector<8x32xbf16>, vector<32x128xbf16>, vector<8x128xf32> -> vector<8x128xf32>
    %c0_15 = arith.constant 0 : index
    %c0_16 = arith.constant 0 : index
    %25 = vector.load %arg5[%c0_15, %c0_16] : memref<8x1xf32, #tpu.memory_space<vmem>>, vector<8x1xf32>
    %26 = vector.broadcast %25 : vector<8x1xf32> to vector<8x128xf32>
    %27 = arith.addf %24, %26 : vector<8x128xf32>
    %c0_17 = arith.constant 0 : index
    %c0_18 = arith.constant 0 : index
    %28 = vector.load %arg6[%c0_17, %c0_18] : memref<4x128xf32, #tpu.memory_space<vmem>>, vector<4x128xf32>
    %29 = vector.extract_strided_slice %28 {offsets = [0, 0], sizes = [1, 128], strides = [1, 1]} : vector<4x128xf32> to vector<1x128xf32>
    %30 = vector.extract_strided_slice %28 {offsets = [1, 0], sizes = [1, 128], strides = [1, 1]} : vector<4x128xf32> to vector<1x128xf32>
    %31 = vector.extract_strided_slice %28 {offsets = [2, 0], sizes = [1, 128], strides = [1, 1]} : vector<4x128xf32> to vector<1x128xf32>
    %32 = vector.extract_strided_slice %28 {offsets = [3, 0], sizes = [1, 128], strides = [1, 1]} : vector<4x128xf32> to vector<1x128xf32>
    %33 = vector.extract_strided_slice %22 {offsets = [0, 0], sizes = [3, 128], strides = [1, 1]} : vector<8x128xf32> to vector<3x128xf32>
    %34 = vector.extract_strided_slice %22 {offsets = [3, 0], sizes = [1, 128], strides = [1, 1]} : vector<8x128xf32> to vector<1x128xf32>
    %35 = vector.extract_strided_slice %22 {offsets = [4, 0], sizes = [4, 128], strides = [1, 1]} : vector<8x128xf32> to vector<4x128xf32>
    %36 = vector.broadcast %31 : vector<1x128xf32> to vector<4x128xf32>
    %37 = arith.mulf %36, %35 : vector<4x128xf32>
    %38 = math.exp %37 : vector<4x128xf32>
    %39 = vector.extract_strided_slice %33 {offsets = [0, 0], sizes = [1, 128], strides = [1, 1]} : vector<3x128xf32> to vector<1x128xf32>
    %c0_i32 = arith.constant 0 : i32
    %40 = vector.broadcast %c0_i32 : i32 to vector<1x128xi32>
    %41 = vector.extract_strided_slice %33 {offsets = [1, 0], sizes = [1, 128], strides = [1, 1]} : vector<3x128xf32> to vector<1x128xf32>
    %42 = arith.cmpf ogt, %41, %39 : vector<1x128xf32>
    %c1_i32 = arith.constant 1 : i32
    %43 = vector.broadcast %c1_i32 : i32 to vector<1x128xi32>
    %44 = arith.select %42, %43, %40 : vector<1x128xi1>, vector<1x128xi32>
    %45 = arith.maximumf %39, %41 : vector<1x128xf32>
    %46 = vector.extract_strided_slice %33 {offsets = [2, 0], sizes = [1, 128], strides = [1, 1]} : vector<3x128xf32> to vector<1x128xf32>
    %47 = arith.cmpf ogt, %46, %45 : vector<1x128xf32>
    %c2_i32 = arith.constant 2 : i32
    %48 = vector.broadcast %c2_i32 : i32 to vector<1x128xi32>
    %49 = arith.select %47, %48, %44 : vector<1x128xi1>, vector<1x128xi32>
    %50 = arith.maximumf %45, %46 : vector<1x128xf32>
    %51 = arith.negf %50 : vector<1x128xf32>
    %52 = math.exp %51 : vector<1x128xf32>
    %cst_19 = arith.constant 1.000000e+00 : f32
    %53 = vector.broadcast %cst_19 : f32 to vector<1x128xf32>
    %54 = arith.addf %53, %52 : vector<1x128xf32>
    %55 = arith.divf %53, %54 : vector<1x128xf32>
    %56 = arith.negf %34 : vector<1x128xf32>
    %57 = math.exp %56 : vector<1x128xf32>
    %cst_20 = arith.constant 1.000000e+00 : f32
    %58 = vector.broadcast %cst_20 : f32 to vector<1x128xf32>
    %59 = arith.addf %58, %57 : vector<1x128xf32>
    %60 = arith.divf %58, %59 : vector<1x128xf32>
    %61 = arith.mulf %55, %60 : vector<1x128xf32>
    %62 = math.sqrt %61 : vector<1x128xf32>
    %63 = arith.mulf %62, %32 : vector<1x128xf32>
    %c1_i32_21 = arith.constant 1 : i32
    %64 = vector.broadcast %c1_i32_21 : i32 to vector<1x128xi32>
    %65 = arith.addi %49, %64 : vector<1x128xi32>
    %66 = vector.extract_strided_slice %38 {offsets = [0, 0], sizes = [1, 128], strides = [1, 1]} : vector<4x128xf32> to vector<1x128xf32>
    %67 = arith.subf %29, %66 : vector<1x128xf32>
    %68 = vector.extract_strided_slice %38 {offsets = [1, 0], sizes = [1, 128], strides = [1, 1]} : vector<4x128xf32> to vector<1x128xf32>
    %69 = arith.subf %30, %68 : vector<1x128xf32>
    %70 = vector.extract_strided_slice %38 {offsets = [2, 0], sizes = [1, 128], strides = [1, 1]} : vector<4x128xf32> to vector<1x128xf32>
    %71 = arith.addf %29, %70 : vector<1x128xf32>
    %72 = vector.extract_strided_slice %38 {offsets = [3, 0], sizes = [1, 128], strides = [1, 1]} : vector<4x128xf32> to vector<1x128xf32>
    %73 = arith.addf %30, %72 : vector<1x128xf32>
    %74 = tpu.concatenate %67, %69, %71, %73 in 0 : vector<1x128xf32>, vector<1x128xf32>, vector<1x128xf32>, vector<1x128xf32> -> vector<4x128xf32>
    %75 = vector.extract_strided_slice %27 {offsets = [0, 0], sizes = [3, 128], strides = [1, 1]} : vector<8x128xf32> to vector<3x128xf32>
    %76 = vector.extract_strided_slice %27 {offsets = [3, 0], sizes = [1, 128], strides = [1, 1]} : vector<8x128xf32> to vector<1x128xf32>
    %77 = vector.extract_strided_slice %27 {offsets = [4, 0], sizes = [4, 128], strides = [1, 1]} : vector<8x128xf32> to vector<4x128xf32>
    %78 = vector.broadcast %31 : vector<1x128xf32> to vector<4x128xf32>
    %79 = arith.mulf %78, %77 : vector<4x128xf32>
    %80 = math.exp %79 : vector<4x128xf32>
    %81 = vector.extract_strided_slice %75 {offsets = [0, 0], sizes = [1, 128], strides = [1, 1]} : vector<3x128xf32> to vector<1x128xf32>
    %c0_i32_22 = arith.constant 0 : i32
    %82 = vector.broadcast %c0_i32_22 : i32 to vector<1x128xi32>
    %83 = vector.extract_strided_slice %75 {offsets = [1, 0], sizes = [1, 128], strides = [1, 1]} : vector<3x128xf32> to vector<1x128xf32>
    %84 = arith.cmpf ogt, %83, %81 : vector<1x128xf32>
    %c1_i32_23 = arith.constant 1 : i32
    %85 = vector.broadcast %c1_i32_23 : i32 to vector<1x128xi32>
    %86 = arith.select %84, %85, %82 : vector<1x128xi1>, vector<1x128xi32>
    %87 = arith.maximumf %81, %83 : vector<1x128xf32>
    %88 = vector.extract_strided_slice %75 {offsets = [2, 0], sizes = [1, 128], strides = [1, 1]} : vector<3x128xf32> to vector<1x128xf32>
    %89 = arith.cmpf ogt, %88, %87 : vector<1x128xf32>
    %c2_i32_24 = arith.constant 2 : i32
    %90 = vector.broadcast %c2_i32_24 : i32 to vector<1x128xi32>
    %91 = arith.select %89, %90, %86 : vector<1x128xi1>, vector<1x128xi32>
    %92 = arith.maximumf %87, %88 : vector<1x128xf32>
    %93 = arith.negf %92 : vector<1x128xf32>
    %94 = math.exp %93 : vector<1x128xf32>
    %cst_25 = arith.constant 1.000000e+00 : f32
    %95 = vector.broadcast %cst_25 : f32 to vector<1x128xf32>
    %96 = arith.addf %95, %94 : vector<1x128xf32>
    %97 = arith.divf %95, %96 : vector<1x128xf32>
    %98 = arith.negf %76 : vector<1x128xf32>
    %99 = math.exp %98 : vector<1x128xf32>
    %cst_26 = arith.constant 1.000000e+00 : f32
    %100 = vector.broadcast %cst_26 : f32 to vector<1x128xf32>
    %101 = arith.addf %100, %99 : vector<1x128xf32>
    %102 = arith.divf %100, %101 : vector<1x128xf32>
    %103 = arith.mulf %97, %102 : vector<1x128xf32>
    %104 = math.sqrt %103 : vector<1x128xf32>
    %105 = arith.mulf %104, %32 : vector<1x128xf32>
    %c1_i32_27 = arith.constant 1 : i32
    %106 = vector.broadcast %c1_i32_27 : i32 to vector<1x128xi32>
    %107 = arith.addi %91, %106 : vector<1x128xi32>
    %108 = vector.extract_strided_slice %80 {offsets = [0, 0], sizes = [1, 128], strides = [1, 1]} : vector<4x128xf32> to vector<1x128xf32>
    %109 = arith.subf %29, %108 : vector<1x128xf32>
    %110 = vector.extract_strided_slice %80 {offsets = [1, 0], sizes = [1, 128], strides = [1, 1]} : vector<4x128xf32> to vector<1x128xf32>
    %111 = arith.subf %30, %110 : vector<1x128xf32>
    %112 = vector.extract_strided_slice %80 {offsets = [2, 0], sizes = [1, 128], strides = [1, 1]} : vector<4x128xf32> to vector<1x128xf32>
    %113 = arith.addf %29, %112 : vector<1x128xf32>
    %114 = vector.extract_strided_slice %80 {offsets = [3, 0], sizes = [1, 128], strides = [1, 1]} : vector<4x128xf32> to vector<1x128xf32>
    %115 = arith.addf %30, %114 : vector<1x128xf32>
    %116 = tpu.concatenate %109, %111, %113, %115 in 0 : vector<1x128xf32>, vector<1x128xf32>, vector<1x128xf32>, vector<1x128xf32> -> vector<4x128xf32>
    %117 = tpu.concatenate %63, %105 in 0 : vector<1x128xf32>, vector<1x128xf32> -> vector<2x128xf32>
    %c0_28 = arith.constant 0 : index
    %c0_29 = arith.constant 0 : index
    %118 = vector.load %arg7[%c0_28, %c0_29] : memref<2x128xf32, #tpu.memory_space<vmem>>, vector<2x128xf32>
    tpu.vector_store %arg7[%c0_28, %c0_29], %117 {strides = array<i32>} : memref<2x128xf32, #tpu.memory_space<vmem>>, vector<2x128xf32>,
    %119 = tpu.concatenate %65, %107 in 0 : vector<1x128xi32>, vector<1x128xi32> -> vector<2x128xi32>
    %c0_30 = arith.constant 0 : index
    %c0_31 = arith.constant 0 : index
    %120 = vector.load %arg8[%c0_30, %c0_31] : memref<2x128xi32, #tpu.memory_space<vmem>>, vector<2x128xi32>
    tpu.vector_store %arg8[%c0_30, %c0_31], %119 {strides = array<i32>} : memref<2x128xi32, #tpu.memory_space<vmem>>, vector<2x128xi32>,
    %121 = vector.shape_cast %74 : vector<4x128xf32> to vector<1x4x128xf32>
    %122 = vector.shape_cast %116 : vector<4x128xf32> to vector<1x4x128xf32>
    %123 = tpu.concatenate %121, %122 in 0 : vector<1x4x128xf32>, vector<1x4x128xf32> -> vector<2x4x128xf32>
    %c0_32 = arith.constant 0 : index
    %c0_33 = arith.constant 0 : index
    %c0_34 = arith.constant 0 : index
    %124 = vector.load %arg9[%c0_32, %c0_33, %c0_34] : memref<2x4x128xf32, #tpu.memory_space<vmem>>, vector<2x4x128xf32>
    tpu.vector_store %arg9[%c0_32, %c0_33, %c0_34], %123 {strides = array<i32>} : memref<2x4x128xf32, #tpu.memory_space<vmem>>, vector<2x4x128xf32>,
    return
  }
  func.func @transform_0(%arg0: i32) -> (i32, i32, i32) {
    %c0_i32 = arith.constant 0 : i32
    %c0_i32_0 = arith.constant 0 : i32
    %c0_i32_1 = arith.constant 0 : i32
    return %c0_i32, %c0_i32_0, %arg0 : i32, i32, i32
  }
  func.func @transform_1(%arg0: i32) -> (i32, i32) {
    %c0_i32 = arith.constant 0 : i32
    %c0_i32_0 = arith.constant 0 : i32
    %c0_i32_1 = arith.constant 0 : i32
    return %c0_i32, %c0_i32_0 : i32, i32
  }
  func.func @transform_2(%arg0: i32) -> (i32, i32) {
    %c0_i32 = arith.constant 0 : i32
    %c0_i32_0 = arith.constant 0 : i32
    %c0_i32_1 = arith.constant 0 : i32
    return %c0_i32, %c0_i32_0 : i32, i32
  }
  func.func @transform_3(%arg0: i32) -> (i32, i32) {
    %c0_i32 = arith.constant 0 : i32
    %c0_i32_0 = arith.constant 0 : i32
    %c0_i32_1 = arith.constant 0 : i32
    return %c0_i32, %c0_i32_0 : i32, i32
  }
  func.func @transform_4(%arg0: i32) -> (i32, i32) {
    %c0_i32 = arith.constant 0 : i32
    %c0_i32_0 = arith.constant 0 : i32
    %c0_i32_1 = arith.constant 0 : i32
    return %c0_i32, %c0_i32_0 : i32, i32
  }
  func.func @transform_5(%arg0: i32) -> (i32, i32) {
    %c0_i32 = arith.constant 0 : i32
    %c0_i32_0 = arith.constant 0 : i32
    return %c0_i32, %arg0 : i32, i32
  }
  func.func @transform_6(%arg0: i32) -> (i32, i32) {
    %c0_i32 = arith.constant 0 : i32
    %c0_i32_0 = arith.constant 0 : i32
    return %c0_i32, %arg0 : i32, i32
  }
  func.func @transform_7(%arg0: i32) -> (i32, i32) {
    %c0_i32 = arith.constant 0 : i32
    %c0_i32_0 = arith.constant 0 : i32
    return %c0_i32, %arg0 : i32, i32
  }
  func.func @transform_8(%arg0: i32) -> (i32, i32, i32) {
    %c0_i32 = arith.constant 0 : i32
    %c0_i32_0 = arith.constant 0 : i32
    %c0_i32_1 = arith.constant 0 : i32
    return %c0_i32, %c0_i32_0, %arg0 : i32, i32, i32
  }
}

</mosaic_0001>

<llo_original>
// kernel: _device_forward.4
$region0: #{_device_forward.4}
  #allocation0 [shape = 'u32[]', space=smem, size = 0x4, offset = 0x4, fixed_abs, tag = 'smem constant byte address 0x4 - core index']
  #allocation1 [shape = 'u32[144,128]{1,0:T(1,128)}', space=vmem, size = 0x12000, scoped, tag = 'internal scratch']
  %s0 = inlined_call_operand.vmem [shape: bf16[2,128,256], index: 0, kind: input, shape index: {}]
  %s1 = inlined_call_operand.vmem [shape: bf16[2,256,32], index: 1, kind: input, shape index: {}]
  %s2 = inlined_call_operand.vmem [shape: f32[2,1,32], index: 2, kind: input, shape index: {}]
  %s3 = inlined_call_operand.vmem [shape: bf16[32,32], index: 3, kind: input, shape index: {}]
  %s4 = inlined_call_operand.vmem [shape: f32[1,32], index: 4, kind: input, shape index: {}]
  %s5 = inlined_call_operand.vmem [shape: bf16[2,128,32], index: 5, kind: output, shape index: {0}]
  %s6 = inlined_call_operand.vmem [shape: bf16[2,32,128], index: 6, kind: output, shape index: {1}]
  %7 = xla_tuple %s5, %s6
  %s8 = sld [smem:[#allocation0]]
  $region61: #{_device_forward.4} parent=0
    _
  %s10 = ssub.s32 1, %s8
  %s11 = scalar_select 0, %s10, %s8
  loop: start=0, step=1, limit=4
  $region2: #{_device_forward.4} parent=0 // loop_pre_header
    _
  $region3: #{_device_forward.4} parent=0 // loop_header
    %s13 = sphi 0, %s17
    %p14 = scmp.ge.s32.totalorder %s13, 4
    %s20 = sphi 0, %s32
    %s21 = sphi 0, %s28
    %s22 = sphi 0, %s20
    %s23 = sphi 0, %s21
    %s24 = sphi 0, %s22
    %s25 = sphi 0, %s23
    %s37 = sphi 0, %s39
    %s40 = sphi 0, %s37
    %s41 = sphi 0, %s40
    %s57 = sphi 0, %s41
    %s63 = sphi 0, %s65
    %s66 = sphi 0, %s63
    %s67 = sphi 0, %s66
    %s83 = sphi 0, %s67
    %s89 = sphi 0, %s91
    %s92 = sphi 0, %s89
    %s93 = sphi 0, %s92
    %s109 = sphi 0, %s93
    %s113 = sphi 0, %s113
    %s115 = sphi 0, %s113
    %s116 = sphi 0, %s115
    %s130 = sphi 0, %s116
    %s134 = sphi 0, %s134
    %s136 = sphi 0, %s134
    %s137 = sphi 0, %s136
    %s151 = sphi 0, %s137
    %s159 = sphi 0, %s161
    %s162 = sphi 0, %s159
    %s163 = sphi 0, %s162
    %s179 = sphi 0, %s163
    %s187 = sphi 0, %s189
    %s190 = sphi 0, %s187
    %s191 = sphi 0, %s190
    %s207 = sphi 0, %s191
  $region4: #{_device_forward.4} parent=0 // loop_header_branch
    %16 = sbr.rel (%p14) target = $region8
  $region5: #{_device_forward.4} parent=0 // loop_body
    %s18 = ssub.s32 %s13, 1
    %s19 = ssub.s32 %s13, 2
    %s26 = sadd.s32 1, %s21
    %p27 = scmp.ge.s32.totalorder %s26, 1
    %s28 = scalar_select %p27, 0, %s26
    %s29 = sadd.s32 1, %s20
    %s30 = scalar_select %p27, %s29, %s20
    %p31 = scmp.ge.s32.totalorder %s30, 2
    %s32 = scalar_select %p31, 0, %s30
    %s33 = ssub.s32 %s20, %s32
    %s34 = ssub.s32 %s21, %s28
    %s35 = sor.u32 %s33, %s34
    %p36 = scmp.eq.s32.totalorder %s35, 0
    %s38 = sadd.s32 %s37, 1
    %s39 = scalar_select %p36, %s37, %s38
    %p42 = pneg %p36
    %p43 = scmp.eq.s32.totalorder %s13, 1
    %p44 = por %p42, %p43
    %p45 = scmp.ne.s32.totalorder %s37, %s40
    %p46 = scmp.eq.s32.totalorder %s13, 0
    %p47 = por %p45, %p46
    %p48 = scmp.ne.s32.totalorder %s37, %s40
    %p49 = scmp.eq.s32.totalorder %s18, 1
    %p50 = por %p48, %p49
    %p51 = scmp.ne.s32.totalorder %s40, %s41
    %p52 = scmp.eq.s32.totalorder %s18, 0
    %p53 = por %p51, %p52
    %p54 = scmp.ne.s32.totalorder %s40, %s41
    %p55 = scmp.eq.s32.totalorder %s19, 1
    %p56 = por %p54, %p55
    %p58 = scmp.ne.s32.totalorder %s41, %s57
    %p59 = scmp.eq.s32.totalorder %s19, 0
    %p60 = por %p58, %p59
    %s61 = ssub.s32 %s20, %s32
    %p62 = scmp.eq.s32.totalorder %s61, 0
    %s64 = sadd.s32 %s63, 1
    %s65 = scalar_select %p62, %s63, %s64
    %p68 = pneg %p62
    %p69 = scmp.eq.s32.totalorder %s13, 1
    %p70 = por %p68, %p69
    %p71 = scmp.ne.s32.totalorder %s63, %s66
    %p72 = scmp.eq.s32.totalorder %s13, 0
    %p73 = por %p71, %p72
    %p74 = scmp.ne.s32.totalorder %s63, %s66
    %p75 = scmp.eq.s32.totalorder %s18, 1
    %p76 = por %p74, %p75
    %p77 = scmp.ne.s32.totalorder %s66, %s67
    %p78 = scmp.eq.s32.totalorder %s18, 0
    %p79 = por %p77, %p78
    %p80 = scmp.ne.s32.totalorder %s66, %s67
    %p81 = scmp.eq.s32.totalorder %s19, 1
    %p82 = por %p80, %p81
    %p84 = scmp.ne.s32.totalorder %s67, %s83
    %p85 = scmp.eq.s32.totalorder %s19, 0
    %p86 = por %p84, %p85
    %s87 = ssub.s32 %s20, %s32
    %p88 = scmp.eq.s32.totalorder %s87, 0
    %s90 = sadd.s32 %s89, 1
    %s91 = scalar_select %p88, %s89, %s90
    %p94 = pneg %p88
    %p95 = scmp.eq.s32.totalorder %s13, 1
    %p96 = por %p94, %p95
    %p97 = scmp.ne.s32.totalorder %s89, %s92
    %p98 = scmp.eq.s32.totalorder %s13, 0
    %p99 = por %p97, %p98
    %p100 = scmp.ne.s32.totalorder %s89, %s92
    %p101 = scmp.eq.s32.totalorder %s18, 1
    %p102 = por %p100, %p101
    %p103 = scmp.ne.s32.totalorder %s92, %s93
    %p104 = scmp.eq.s32.totalorder %s18, 0
    %p105 = por %p103, %p104
    %p106 = scmp.ne.s32.totalorder %s92, %s93
    %p107 = scmp.eq.s32.totalorder %s19, 1
    %p108 = por %p106, %p107
    %p110 = scmp.ne.s32.totalorder %s93, %s109
    %p111 = scmp.eq.s32.totalorder %s19, 0
    %p112 = por %p110, %p111
    %s114 = sadd.s32 %s113, 1
    %p117 = scmp.eq.s32.totalorder %s13, 1
    %p118 = scmp.ne.s32.totalorder %s113, %s115
    %p119 = scmp.eq.s32.totalorder %s13, 0
    %p120 = por %p118, %p119
    %p121 = scmp.ne.s32.totalorder %s113, %s115
    %p122 = scmp.eq.s32.totalorder %s18, 1
    %p123 = por %p121, %p122
    %p124 = scmp.ne.s32.totalorder %s115, %s116
    %p125 = scmp.eq.s32.totalorder %s18, 0
    %p126 = por %p124, %p125
    %p127 = scmp.ne.s32.totalorder %s115, %s116
    %p128 = scmp.eq.s32.totalorder %s19, 1
    %p129 = por %p127, %p128
    %p131 = scmp.ne.s32.totalorder %s116, %s130
    %p132 = scmp.eq.s32.totalorder %s19, 0
    %p133 = por %p131, %p132
    %s135 = sadd.s32 %s134, 1
    %p138 = scmp.eq.s32.totalorder %s13, 1
    %p139 = scmp.ne.s32.totalorder %s134, %s136
    %p140 = scmp.eq.s32.totalorder %s13, 0
    %p141 = por %p139, %p140
    %p142 = scmp.ne.s32.totalorder %s134, %s136
    %p143 = scmp.eq.s32.totalorder %s18, 1
    %p144 = por %p142, %p143
    %p145 = scmp.ne.s32.totalorder %s136, %s137
    %p146 = scmp.eq.s32.totalorder %s18, 0
    %p147 = por %p145, %p146
    %p148 = scmp.ne.s32.totalorder %s136, %s137
    %p149 = scmp.eq.s32.totalorder %s19, 1
    %p150 = por %p148, %p149
    %p152 = scmp.ne.s32.totalorder %s137, %s151
    %p153 = scmp.eq.s32.totalorder %s19, 0
    %p154 = por %p152, %p153
    %s155 = ssub.s32 %s20, %s32
    %s156 = ssub.s32 %s21, %s28
    %s157 = sor.u32 %s155, %s156
    %p158 = scmp.eq.s32.totalorder %s157, 0
    %s160 = sadd.s32 %s159, 1
    %s161 = scalar_select %p158, %s159, %s160
    %p164 = pneg %p158
    %p165 = scmp.eq.s32.totalorder %s13, 1
    %p166 = por %p164, %p165
    %p167 = scmp.ne.s32.totalorder %s159, %s162
    %p168 = scmp.eq.s32.totalorder %s13, 0
    %p169 = por %p167, %p168
    %p170 = scmp.ne.s32.totalorder %s159, %s162
    %p171 = scmp.eq.s32.totalorder %s18, 1
    %p172 = por %p170, %p171
    %p173 = scmp.ne.s32.totalorder %s162, %s163
    %p174 = scmp.eq.s32.totalorder %s18, 0
    %p175 = por %p173, %p174
    %p176 = scmp.ne.s32.totalorder %s162, %s163
    %p177 = scmp.eq.s32.totalorder %s19, 1
    %p178 = por %p176, %p177
    %p180 = scmp.ne.s32.totalorder %s163, %s179
    %p181 = scmp.eq.s32.totalorder %s19, 0
    %p182 = por %p180, %p181
    %s183 = ssub.s32 %s20, %s32
    %s184 = ssub.s32 %s21, %s28
    %s185 = sor.u32 %s183, %s184
    %p186 = scmp.eq.s32.totalorder %s185, 0
    %s188 = sadd.s32 %s187, 1
    %s189 = scalar_select %p186, %s187, %s188
    %p192 = pneg %p186
    %p193 = scmp.eq.s32.totalorder %s13, 1
    %p194 = por %p192, %p193
    %p195 = scmp.ne.s32.totalorder %s187, %s190
    %p196 = scmp.eq.s32.totalorder %s13, 0
    %p197 = por %p195, %p196
    %p198 = scmp.ne.s32.totalorder %s187, %s190
    %p199 = scmp.eq.s32.totalorder %s18, 1
    %p200 = por %p198, %p199
    %p201 = scmp.ne.s32.totalorder %s190, %s191
    %p202 = scmp.eq.s32.totalorder %s18, 0
    %p203 = por %p201, %p202
    %p204 = scmp.ne.s32.totalorder %s190, %s191
    %p205 = scmp.eq.s32.totalorder %s19, 1
    %p206 = por %p204, %p205
    %p208 = scmp.ne.s32.totalorder %s191, %s207
    %p209 = scmp.eq.s32.totalorder %s19, 0
    %p210 = por %p208, %p209
    %p211 = scmp.le.s32.totalorder 1, %s13
    %p212 = scmp.lt.s32.totalorder %s13, 3
    %p213 = pnand %p211, %p212
    %p214 = pneg %p213
    // Predicated region
    $region9: #{_device_forward.4} parent=5 // pred_check
      _
    $region10: #{_device_forward.4} parent=5 // pred_check_branch
      %216 = sbr.rel (%p213) target = $region12
    $region11: #{_device_forward.4} parent=5 // pred_region
      %s217 = ssub.s32 %s13, 1
      // Predicated region
      $region13: #{_device_forward.4} parent=11 // pred_check
        %p218 = pneg %p126
      $region14: #{_device_forward.4} parent=11 // pred_check_branch
        %220 = sbr.rel (%p218) target = $region16
      $region15: #{_device_forward.4} parent=11 // pred_region
        _
      $region16: #{_device_forward.4} parent=11 // pred_fallthru
        _
      // Predicated region
      $region17: #{_device_forward.4} parent=11 // pred_check
        %p221 = pneg %p147
      $region18: #{_device_forward.4} parent=11 // pred_check_branch
        %223 = sbr.rel (%p221) target = $region20
      $region19: #{_device_forward.4} parent=11 // pred_region
        _
      $region20: #{_device_forward.4} parent=11 // pred_fallthru
        _
    $region12: #{_device_forward.4} parent=5 // pred_fallthru
      _
    %p224 = scmp.lt.s32.totalorder %s13, 2
    // Predicated region
    $region21: #{_device_forward.4} parent=5 // pred_check
      %p225 = pneg %p224
    $region22: #{_device_forward.4} parent=5 // pred_check_branch
      %227 = sbr.rel (%p225) target = $region24
    $region23: #{_device_forward.4} parent=5 // pred_region
      // Predicated region
      $region25: #{_device_forward.4} parent=23 // pred_check
        %p228 = pneg %p47
      $region26: #{_device_forward.4} parent=23 // pred_check_branch
        %230 = sbr.rel (%p228) target = $region28
      $region27: #{_device_forward.4} parent=23 // pred_region
        %s231 = smul.u32 16, %s21
        %p232 = scmp.lt.s32.totalorder %s20, 1
        %s233 = scalar_select %p232, %s20, 1
        %p234 = scmp.lt.s32.totalorder %s231, 15
        %s235 = scalar_select %p234, %s231, 15
        %s236 = smul.addr %s235, 2
        %s237 = smul.addr %s233, 32
        %s238 = sadd.s32 %s236, %s237
        %s239 = smul.addr %s238, 4
        %s240 = scalar_lea.vmem %s0, %s239
        %s241 = smul.u32 16, %s21
      $region28: #{_device_forward.4} parent=23 // pred_fallthru
        _
      // Predicated region
      $region29: #{_device_forward.4} parent=23 // pred_check
        %p242 = pneg %p73
      $region30: #{_device_forward.4} parent=23 // pred_check_branch
        %244 = sbr.rel (%p242) target = $region32
      $region31: #{_device_forward.4} parent=23 // pred_region
        %p245 = scmp.lt.s32.totalorder %s20, 1
        %s246 = scalar_select %p245, %s20, 1
        %s247 = smul.addr %s246, 32
        %s248 = smul.addr %s247, 4
        %s249 = scalar_lea.vmem %s1, %s248
      $region32: #{_device_forward.4} parent=23 // pred_fallthru
        _
      // Predicated region
      $region33: #{_device_forward.4} parent=23 // pred_check
        %p250 = pneg %p99
      $region34: #{_device_forward.4} parent=23 // pred_check_branch
        %252 = sbr.rel (%p250) target = $region36
      $region35: #{_device_forward.4} parent=23 // pred_region
        %p253 = scmp.lt.s32.totalorder %s20, 1
        %s254 = scalar_select %p253, %s20, 1
        %s255 = scalar_lea.vmem %s2, %s254
      $region36: #{_device_forward.4} parent=23 // pred_fallthru
        _
    $region24: #{_device_forward.4} parent=5 // pred_fallthru
      _
    %p256 = scmp.le.s32.totalorder 1, %s13
    %p257 = scmp.lt.s32.totalorder %s13, 3
    %p258 = pnand %p256, %p257
    %p259 = pneg %p258
    // Predicated region
    $region37: #{_device_forward.4} parent=5 // pred_check
      _
    $region38: #{_device_forward.4} parent=5 // pred_check_branch
      %261 = sbr.rel (%p258) target = $region40
    $region39: #{_device_forward.4} parent=5 // pred_region
      %s262 = ssub.s32 %s13, 1
      %s263 = smul.u32 16, %s23
      %p264 = scmp.lt.s32.totalorder %s22, 1
      %s265 = scalar_select %p264, %s22, 1
      %p266 = scmp.lt.s32.totalorder %s263, 15
      %s267 = scalar_select %p266, %s263, 15
      %s268 = smul.addr %s267, 2
      %s269 = smul.addr %s265, 32
      %s270 = sadd.s32 %s268, %s269
      %s271 = smul.addr %s270, 4
      %s272 = scalar_lea.vmem %s0, %s271
      %p273 = pneg %p53
      %p274 = pneg %p50
      %p275 = scmp.lt.s32.totalorder %s22, 1
      %s276 = scalar_select %p275, %s22, 1
      %s277 = smul.addr %s276, 32
      %s278 = smul.addr %s277, 4
      %s279 = scalar_lea.vmem %s1, %s278
      %p280 = pneg %p79
      %p281 = pneg %p76
      %p282 = scmp.lt.s32.totalorder %s22, 1
      %s283 = scalar_select %p282, %s22, 1
      %s284 = scalar_lea.vmem %s2, %s283
      %p285 = pneg %p105
      %p286 = pneg %p102
      %p287 = pneg %p126
      %p288 = pneg %p123
      %p289 = pneg %p147
      %p290 = pneg %p144
      %p291 = pneg %p175
      %p292 = pneg %p172
      %s293 = smul.u32 16, %s23
      %p294 = scmp.lt.s32.totalorder %s22, 1
      %s295 = scalar_select %p294, %s22, 1
      %p296 = scmp.lt.s32.totalorder %s293, 15
      %s297 = scalar_select %p296, %s293, 15
      %s298 = smul.addr %s295, 16
      %s299 = sadd.s32 %s297, %s298
      %s300 = smul.addr %s299, 4
      %s301 = scalar_lea.vmem %s5, %s300
      %p302 = pneg %p203
      %p303 = pneg %p200
      %p304 = scmp.lt.s32.totalorder %s22, 1
      %s305 = scalar_select %p304, %s22, 1
      %p306 = scmp.lt.s32.totalorder %s23, 0
      %s307 = scalar_select %p306, %s23, 0
      %s308 = smul.addr %s305, 4
      %s309 = sadd.s32 %s307, %s308
      %s310 = smul.addr %s309, 4
      %s311 = scalar_lea.vmem %s6, %s310
      %s312 = smul.u32 16, %s23
      %p313 = scmp.lt.s32.totalorder %s22, 1
      %s314 = scalar_select %p313, %s22, 1
      %p315 = scmp.lt.s32.totalorder %s312, 15
      %s316 = scalar_select %p315, %s312, 15
      %s317 = smul.addr %s316, 2
      %s318 = smul.addr %s314, 32
      %s319 = sadd.s32 %s317, %s318
      %s320 = smul.addr %s319, 4
      %s321 = scalar_lea.vmem %s0, %s320
      %s322 = smul.u32 16, %s23
      %p323 = scmp.lt.s32.totalorder %s22, 1
      %s324 = scalar_select %p323, %s22, 1
      %s325 = smul.addr %s324, 32
      %s326 = smul.addr %s325, 4
      %s327 = scalar_lea.vmem %s1, %s326
      %p328 = scmp.lt.s32.totalorder %s22, 1
      %s329 = scalar_select %p328, %s22, 1
      %s330 = scalar_lea.vmem %s2, %s329
      %s331 = smul.u32 16, %s23
      %p332 = scmp.lt.s32.totalorder %s22, 1
      %s333 = scalar_select %p332, %s22, 1
      %p334 = scmp.lt.s32.totalorder %s331, 15
      %s335 = scalar_select %p334, %s331, 15
      %s336 = smul.addr %s333, 16
      %s337 = sadd.s32 %s335, %s336
      %s338 = smul.addr %s337, 4
      %s339 = scalar_lea.vmem %s5, %s338
      %s340 = smul.u32 16, %s23
      %p341 = scmp.lt.s32.totalorder %s22, 1
      %s342 = scalar_select %p341, %s22, 1
      %p343 = scmp.lt.s32.totalorder %s23, 0
      %s344 = scalar_select %p343, %s23, 0
      %s345 = smul.addr %s342, 4
      %s346 = sadd.s32 %s344, %s345
      %s347 = smul.addr %s346, 4
      %s348 = scalar_lea.vmem %s6, %s347
      %v350 = vld [vmem:[%s321] sm:$0xff]
      %v351 = vld [vmem:[%s321 + $0x8] sm:$0xff]
      %v352 = vld [vmem:[%s321 + $0x10] sm:$0xff]
      %v353 = vld [vmem:[%s321 + $0x18] sm:$0xff]
      %v354 = vld [vmem:[%s321 + $0x20] sm:$0xff]
      %v355 = vld [vmem:[%s321 + $0x28] sm:$0xff]
      %v356 = vld [vmem:[%s321 + $0x30] sm:$0xff]
      %v357 = vld [vmem:[%s321 + $0x38] sm:$0xff]
      %v358 = vld [vmem:[%s321 + $0x40] sm:$0xff]
      %v359 = vld [vmem:[%s321 + $0x48] sm:$0xff]
      %v360 = vld [vmem:[%s321 + $0x50] sm:$0xff]
      %v361 = vld [vmem:[%s321 + $0x58] sm:$0xff]
      %v362 = vld [vmem:[%s321 + $0x60] sm:$0xff]
      %v363 = vld [vmem:[%s321 + $0x68] sm:$0xff]
      %v364 = vld [vmem:[%s321 + $0x70] sm:$0xff]
      %v365 = vld [vmem:[%s321 + $0x78] sm:$0xff]
      %v366 = vld [vmem:[%s327] sm:$0xf]
      %v367 = vld [vmem:[%s327 + $0x4] sm:$0xf]
      %v368 = vld [vmem:[%s327 + $0x8] sm:$0xf]
      %v369 = vld [vmem:[%s327 + $0xc] sm:$0xf]
      %v370 = vld [vmem:[%s327 + $0x10] sm:$0xf]
      %v371 = vld [vmem:[%s327 + $0x14] sm:$0xf]
      %v372 = vld [vmem:[%s327 + $0x18] sm:$0xf]
      %v373 = vld [vmem:[%s327 + $0x1c] sm:$0xf]
      %v374 = vld [vmem:[%s327 + $0x20] sm:$0xf]
      %v375 = vld [vmem:[%s327 + $0x24] sm:$0xf]
      %v376 = vld [vmem:[%s327 + $0x28] sm:$0xf]
      %v377 = vld [vmem:[%s327 + $0x2c] sm:$0xf]
      %v378 = vld [vmem:[%s327 + $0x30] sm:$0xf]
      %v379 = vld [vmem:[%s327 + $0x34] sm:$0xf]
      %v380 = vld [vmem:[%s327 + $0x38] sm:$0xf]
      %v381 = vld [vmem:[%s327 + $0x3c] sm:$0xf]
      %v382 = vld [vmem:[%s327 + $0x40] sm:$0xf]
      %v383 = vld [vmem:[%s327 + $0x44] sm:$0xf]
      %v384 = vld [vmem:[%s327 + $0x48] sm:$0xf]
      %v385 = vld [vmem:[%s327 + $0x4c] sm:$0xf]
      %v386 = vld [vmem:[%s327 + $0x50] sm:$0xf]
      %v387 = vld [vmem:[%s327 + $0x54] sm:$0xf]
      %v388 = vld [vmem:[%s327 + $0x58] sm:$0xf]
      %v389 = vld [vmem:[%s327 + $0x5c] sm:$0xf]
      %v390 = vld [vmem:[%s327 + $0x60] sm:$0xf]
      %v391 = vld [vmem:[%s327 + $0x64] sm:$0xf]
      %v392 = vld [vmem:[%s327 + $0x68] sm:$0xf]
      %v393 = vld [vmem:[%s327 + $0x6c] sm:$0xf]
      %v394 = vld [vmem:[%s327 + $0x70] sm:$0xf]
      %v395 = vld [vmem:[%s327 + $0x74] sm:$0xf]
      %v396 = vld [vmem:[%s327 + $0x78] sm:$0xf]
      %v397 = vld [vmem:[%s327 + $0x7c] sm:$0xf]
      %v398 = vld [vmem:[%s330] sm:$0x1]
      %v400 = vlaneseq
      %v401 = vshrl.u32 %v400, 7
      %v402 = vsub.s32 0, %v401
      %v403 = vrot.slane %v398, %v402
      %v421 = vunpack.c.l.b16 %v350
      %v422 = vunpack.c.h.b16 %v350
      %v423 = vunpack.c.l.b16 %v351
      %v424 = vunpack.c.h.b16 %v351
      %v425 = vunpack.c.l.b16 %v352
      %v426 = vunpack.c.h.b16 %v352
      %v427 = vunpack.c.l.b16 %v353
      %v428 = vunpack.c.h.b16 %v353
      %v429 = vunpack.c.l.b16 %v354
      %v430 = vunpack.c.h.b16 %v354
      %v431 = vunpack.c.l.b16 %v355
      %v432 = vunpack.c.h.b16 %v355
      %v433 = vunpack.c.l.b16 %v356
      %v434 = vunpack.c.h.b16 %v356
      %v435 = vunpack.c.l.b16 %v357
      %v436 = vunpack.c.h.b16 %v357
      %v437 = vunpack.c.l.b16 %v358
      %v438 = vunpack.c.h.b16 %v358
      %v439 = vunpack.c.l.b16 %v359
      %v440 = vunpack.c.h.b16 %v359
      %v441 = vunpack.c.l.b16 %v360
      %v442 = vunpack.c.h.b16 %v360
      %v443 = vunpack.c.l.b16 %v361
      %v444 = vunpack.c.h.b16 %v361
      %v445 = vunpack.c.l.b16 %v362
      %v446 = vunpack.c.h.b16 %v362
      %v447 = vunpack.c.l.b16 %v363
      %v448 = vunpack.c.h.b16 %v363
      %v449 = vunpack.c.l.b16 %v364
      %v450 = vunpack.c.h.b16 %v364
      %v451 = vunpack.c.l.b16 %v365
      %v452 = vunpack.c.h.b16 %v365
      %v453 = vpack.c.b16 %v423, %v421
      %v454 = vpack.c.b16 %v424, %v422
      %v455 = vpack.c.b16 %v427, %v425
      %v456 = vpack.c.b16 %v428, %v426
      %v457 = vpack.c.b16 %v431, %v429
      %v458 = vpack.c.b16 %v432, %v430
      %v459 = vpack.c.b16 %v435, %v433
      %v460 = vpack.c.b16 %v436, %v434
      %v461 = vpack.c.b16 %v439, %v437
      %v462 = vpack.c.b16 %v440, %v438
      %v463 = vpack.c.b16 %v443, %v441
      %v464 = vpack.c.b16 %v444, %v442
      %v465 = vpack.c.b16 %v447, %v445
      %v466 = vpack.c.b16 %v448, %v446
      %v467 = vpack.c.b16 %v451, %v449
      %v468 = vpack.c.b16 %v452, %v450
      %v517 = vunpack.c.l.b16 %v366
      %v518 = vunpack.c.l.b16 %v367
      %v519 = vunpack.c.l.b16 %v368
      %v520 = vunpack.c.l.b16 %v369
      %v521 = vunpack.c.l.b16 %v370
      %v522 = vunpack.c.l.b16 %v371
      %v523 = vunpack.c.l.b16 %v372
      %v524 = vunpack.c.l.b16 %v373
      %v525 = vunpack.c.l.b16 %v374
      %v526 = vunpack.c.l.b16 %v375
      %v527 = vunpack.c.l.b16 %v376
      %v528 = vunpack.c.l.b16 %v377
      %v529 = vunpack.c.l.b16 %v378
      %v530 = vunpack.c.l.b16 %v379
      %v531 = vunpack.c.l.b16 %v380
      %v532 = vunpack.c.l.b16 %v381
      %v533 = vunpack.c.l.b16 %v382
      %v534 = vunpack.c.l.b16 %v383
      %v535 = vunpack.c.l.b16 %v384
      %v536 = vunpack.c.l.b16 %v385
      %v537 = vunpack.c.l.b16 %v386
      %v538 = vunpack.c.l.b16 %v387
      %v539 = vunpack.c.l.b16 %v388
      %v540 = vunpack.c.l.b16 %v389
      %v541 = vunpack.c.l.b16 %v390
      %v542 = vunpack.c.l.b16 %v391
      %v543 = vunpack.c.l.b16 %v392
      %v544 = vunpack.c.l.b16 %v393
      %v545 = vunpack.c.l.b16 %v394
      %v546 = vunpack.c.l.b16 %v395
      %v547 = vunpack.c.l.b16 %v396
      %v548 = vunpack.c.l.b16 %v397
      %v549 = vpack.c.b16 %v518, %v517
      %v550 = vpack.c.b16 %v520, %v519
      %v551 = vpack.c.b16 %v522, %v521
      %v552 = vpack.c.b16 %v524, %v523
      %v553 = vpack.c.b16 %v526, %v525
      %v554 = vpack.c.b16 %v528, %v527
      %v555 = vpack.c.b16 %v530, %v529
      %v556 = vpack.c.b16 %v532, %v531
      %v557 = vpack.c.b16 %v534, %v533
      %v558 = vpack.c.b16 %v536, %v535
      %v559 = vpack.c.b16 %v538, %v537
      %v560 = vpack.c.b16 %v540, %v539
      %v561 = vpack.c.b16 %v542, %v541
      %v562 = vpack.c.b16 %v544, %v543
      %v563 = vpack.c.b16 %v546, %v545
      %v564 = vpack.c.b16 %v548, %v547
      %581 = vmatprep.subr.bf16.mxu0 0
      %582 = vmatpush1.bf16.msra.mxu0 %v556
      %583 = vmatprep.subr.bf16.mxu0 0
      %584 = vmatpush1.bf16.msra.mxu0 %v555
      %585 = vmatprep.subr.bf16.mxu0 0
      %586 = vmatpush1.bf16.msra.mxu0 %v554
      %587 = vmatprep.subr.bf16.mxu0 0
      %588 = vmatpush1.bf16.msra.mxu0 %v553
      %589 = vmatprep.subr.bf16.mxu0 0
      %590 = vmatpush1.bf16.msra.mxu0 %v552
      %591 = vmatprep.subr.bf16.mxu0 0
      %592 = vmatpush1.bf16.msra.mxu0 %v551
      %593 = vmatprep.subr.bf16.mxu0 0
      %594 = vmatpush1.bf16.msra.mxu0 %v550
      %595 = vmatprep.subr.bf16.mxu0 0
      %596 = vmatpush1.bf16.msra.mxu0 %v549
      %597 = vmatprep.subr.bf16.mxu0 0
      %598 = vmatpush2.bf16.msra.mxu0 %v564
      %599 = vmatprep.subr.bf16.mxu0 0
      %600 = vmatpush2.bf16.msra.mxu0 %v563
      %601 = vmatprep.subr.bf16.mxu0 0
      %602 = vmatpush2.bf16.msra.mxu0 %v562
      %603 = vmatprep.subr.bf16.mxu0 0
      %604 = vmatpush2.bf16.msra.mxu0 %v561
      %605 = vmatprep.subr.bf16.mxu0 0
      %606 = vmatpush2.bf16.msra.mxu0 %v560
      %607 = vmatprep.subr.bf16.mxu0 0
      %608 = vmatpush2.bf16.msra.mxu0 %v559
      %609 = vmatprep.subr.bf16.mxu0 0
      %610 = vmatpush2.bf16.msra.mxu0 %v558
      %611 = vmatprep.subr.bf16.mxu0 0
      %612 = vmatpush2.bf16.msra.mxu0 %v557
      %613 = vmatprep.mubr.bf16.mxu0 %v454
      %614 = vmatmul.mubr.bf16.gmra.mxu0 %v453
      %v615 = vpop.f32.mrf.mxu0
      %v616 = vadd.f32 %v403, %v615
      %v617 = vpop.f32.mrf.mxu0
      %v618 = vpop.f32.mrf.mxu0
      %v619 = vadd.f32 %v403, %v618
      %v620 = vpop.f32.mrf.mxu0
      %621 = vmatprep.mubr.bf16.mxu0 %v456
      %622 = vmatmul.mubr.bf16.gmra.mxu0 %v455
      %v623 = vpop.f32.mrf.mxu0
      %v624 = vadd.f32 %v403, %v623
      %v625 = vpop.f32.mrf.mxu0
      %v626 = vpop.f32.mrf.mxu0
      %v627 = vadd.f32 %v403, %v626
      %v628 = vpop.f32.mrf.mxu0
      %629 = vmatprep.mubr.bf16.mxu0 %v458
      %630 = vmatmul.mubr.bf16.gmra.mxu0 %v457
      %v631 = vpop.f32.mrf.mxu0
      %v632 = vadd.f32 %v403, %v631
      %v633 = vpop.f32.mrf.mxu0
      %v634 = vpop.f32.mrf.mxu0
      %v635 = vadd.f32 %v403, %v634
      %v636 = vpop.f32.mrf.mxu0
      %637 = vmatprep.mubr.bf16.mxu0 %v460
      %638 = vmatmul.mubr.bf16.gmra.mxu0 %v459
      %v639 = vpop.f32.mrf.mxu0
      %v640 = vadd.f32 %v403, %v639
      %v641 = vpop.f32.mrf.mxu0
      %v642 = vpop.f32.mrf.mxu0
      %v643 = vadd.f32 %v403, %v642
      %v644 = vpop.f32.mrf.mxu0
      %645 = vmatprep.mubr.bf16.mxu0 %v462
      %646 = vmatmul.mubr.bf16.gmra.mxu0 %v461
      %v647 = vpop.f32.mrf.mxu0
      %v648 = vadd.f32 %v403, %v647
      %v649 = vpop.f32.mrf.mxu0
      %v650 = vpop.f32.mrf.mxu0
      %v651 = vadd.f32 %v403, %v650
      %v652 = vpop.f32.mrf.mxu0
      %653 = vmatprep.mubr.bf16.mxu0 %v464
      %654 = vmatmul.mubr.bf16.gmra.mxu0 %v463
      %v655 = vpop.f32.mrf.mxu0
      %v656 = vadd.f32 %v403, %v655
      %v657 = vpop.f32.mrf.mxu0
      %v658 = vpop.f32.mrf.mxu0
      %v659 = vadd.f32 %v403, %v658
      %v660 = vpop.f32.mrf.mxu0
      %661 = vmatprep.mubr.bf16.mxu0 %v466
      %662 = vmatmul.mubr.bf16.gmra.mxu0 %v465
      %v663 = vpop.f32.mrf.mxu0
      %v664 = vadd.f32 %v403, %v663
      %v665 = vpop.f32.mrf.mxu0
      %v666 = vpop.f32.mrf.mxu0
      %v667 = vadd.f32 %v403, %v666
      %v668 = vpop.f32.mrf.mxu0
      %669 = vmatprep.mubr.bf16.mxu0 %v468
      %670 = vmatmul.mubr.bf16.gmra.mxu0 %v467
      %v671 = vpop.f32.mrf.mxu0
      %v672 = vadd.f32 %v403, %v671
      %v673 = vpop.f32.mrf.mxu0
      %v674 = vpop.f32.mrf.mxu0
      %v675 = vadd.f32 %v403, %v674
      %v676 = vpop.f32.mrf.mxu0
      %677 = vdwg.mxu0
      %v678 = vmax.f32 %v616, 0.0
      %v679 = vmax.f32 %v619, 0.0
      %v680 = vmax.f32 %v624, 0.0
      %v681 = vmax.f32 %v627, 0.0
      %v682 = vmax.f32 %v632, 0.0
      %v683 = vmax.f32 %v635, 0.0
      %v684 = vmax.f32 %v640, 0.0
      %v685 = vmax.f32 %v643, 0.0
      %v686 = vmax.f32 %v648, 0.0
      %v687 = vmax.f32 %v651, 0.0
      %v688 = vmax.f32 %v656, 0.0
      %v689 = vmax.f32 %v659, 0.0
      %v690 = vmax.f32 %v664, 0.0
      %v691 = vmax.f32 %v667, 0.0
      %v692 = vmax.f32 %v672, 0.0
      %v693 = vmax.f32 %v675, 0.0
      %v694 = vpack.c.bf16 %v679, %v678
      %v695 = vpack.c.bf16 %v681, %v680
      %v696 = vpack.c.bf16 %v683, %v682
      %v697 = vpack.c.bf16 %v685, %v684
      %v698 = vpack.c.bf16 %v687, %v686
      %v699 = vpack.c.bf16 %v689, %v688
      %v700 = vpack.c.bf16 %v691, %v690
      %v701 = vpack.c.bf16 %v693, %v692
      %v710 = vunpack.c.l.b16 %v694
      %v711 = vunpack.c.h.b16 %v694
      %v712 = vunpack.c.l.b16 %v695
      %v713 = vunpack.c.h.b16 %v695
      %v714 = vunpack.c.l.b16 %v696
      %v715 = vunpack.c.h.b16 %v696
      %v716 = vunpack.c.l.b16 %v697
      %v717 = vunpack.c.h.b16 %v697
      %v718 = vunpack.c.l.b16 %v698
      %v719 = vunpack.c.h.b16 %v698
      %v720 = vunpack.c.l.b16 %v699
      %v721 = vunpack.c.h.b16 %v699
      %v722 = vunpack.c.l.b16 %v700
      %v723 = vunpack.c.h.b16 %v700
      %v724 = vunpack.c.l.b16 %v701
      %v725 = vunpack.c.h.b16 %v701
      %v726 = vpack.c.b16 %v710, %v710
      %v727 = vpack.c.b16 %v711, %v711
      %v728 = vpack.c.b16 %v712, %v712
      %v729 = vpack.c.b16 %v713, %v713
      %v730 = vpack.c.b16 %v714, %v714
      %v731 = vpack.c.b16 %v715, %v715
      %v732 = vpack.c.b16 %v716, %v716
      %v733 = vpack.c.b16 %v717, %v717
      %v734 = vpack.c.b16 %v718, %v718
      %v735 = vpack.c.b16 %v719, %v719
      %v736 = vpack.c.b16 %v720, %v720
      %v737 = vpack.c.b16 %v721, %v721
      %v738 = vpack.c.b16 %v722, %v722
      %v739 = vpack.c.b16 %v723, %v723
      %v740 = vpack.c.b16 %v724, %v724
      %v741 = vpack.c.b16 %v725, %v725
      %vm758 = vcmask 257024
      %759 = vst.msk [vmem:[%s339] sm:$0xf] %vm758, %v726
      %760 = vst.msk [vmem:[%s339 + $0x4] sm:$0xf] %vm758, %v727
      %761 = vst.msk [vmem:[%s339 + $0x8] sm:$0xf] %vm758, %v728
      %762 = vst.msk [vmem:[%s339 + $0xc] sm:$0xf] %vm758, %v729
      %763 = vst.msk [vmem:[%s339 + $0x10] sm:$0xf] %vm758, %v730
      %764 = vst.msk [vmem:[%s339 + $0x14] sm:$0xf] %vm758, %v731
      %765 = vst.msk [vmem:[%s339 + $0x18] sm:$0xf] %vm758, %v732
      %766 = vst.msk [vmem:[%s339 + $0x1c] sm:$0xf] %vm758, %v733
      %767 = vst.msk [vmem:[%s339 + $0x20] sm:$0xf] %vm758, %v734
      %768 = vst.msk [vmem:[%s339 + $0x24] sm:$0xf] %vm758, %v735
      %769 = vst.msk [vmem:[%s339 + $0x28] sm:$0xf] %vm758, %v736
      %770 = vst.msk [vmem:[%s339 + $0x2c] sm:$0xf] %vm758, %v737
      %771 = vst.msk [vmem:[%s339 + $0x30] sm:$0xf] %vm758, %v738
      %772 = vst.msk [vmem:[%s339 + $0x34] sm:$0xf] %vm758, %v739
      %773 = vst.msk [vmem:[%s339 + $0x38] sm:$0xf] %vm758, %v740
      %774 = vst.msk [vmem:[%s339 + $0x3c] sm:$0xf] %vm758, %v741
      %v775 = vld [vmem:[%s3] sm:$0xf]
      %v776 = vld [vmem:[%s3 + $0x4] sm:$0xf]
      %v777 = vld [vmem:[%s3 + $0x8] sm:$0xf]
      %v778 = vld [vmem:[%s3 + $0xc] sm:$0xf]
      %v779 = vld [vmem:[%s4] sm:$0x1]
      %v781 = vlaneseq
      %v782 = vshrl.u32 %v781, 7
      %v783 = vsub.s32 0, %v782
      %v784 = vrot.slane %v779, %v783
      %v790 = vunpack.c.l.b16 %v775
      %v791 = vunpack.c.l.b16 %v776
      %v792 = vunpack.c.l.b16 %v777
      %v793 = vunpack.c.l.b16 %v778
      %v794 = vpack.c.b16 %v791, %v790
      %v795 = vpack.c.b16 %v793, %v792
      %vm798 = vcmask 261120
      %v800 = vsel %vm798, %v694, 0
      %v803 = vsel %vm798, %v695, 0
      %v806 = vsel %vm798, %v696, 0
      %v809 = vsel %vm798, %v697, 0
      %v812 = vsel %vm798, %v698, 0
      %v815 = vsel %vm798, %v699, 0
      %v818 = vsel %vm798, %v700, 0
      %v821 = vsel %vm798, %v701, 0
      %823 = vmatprep.subr.bf16.mxu0 0
      %824 = vmatpush1.bf16.msra.mxu0 0
      %825 = vmatprep.subr.bf16.mxu0 0
      %826 = vmatpush1.bf16.msra.mxu0 0
      %827 = vmatprep.subr.bf16.mxu0 0
      %828 = vmatpush1.bf16.msra.mxu0 0
      %829 = vmatprep.subr.bf16.mxu0 0
      %830 = vmatpush1.bf16.msra.mxu0 0
      %831 = vmatprep.subr.bf16.mxu0 0
      %832 = vmatpush1.bf16.msra.mxu0 0
      %833 = vmatprep.subr.bf16.mxu0 0
      %834 = vmatpush1.bf16.msra.mxu0 0
      %835 = vmatprep.subr.bf16.mxu0 0
      %836 = vmatpush1.bf16.msra.mxu0 %v795
      %837 = vmatprep.subr.bf16.mxu0 0
      %838 = vmatpush1.bf16.msra.mxu0 %v794
      %839 = vmatprep.subr.bf16.mxu0 0
      %840 = vmatpush2.bf16.msra.mxu0 0
      %841 = vmatprep.subr.bf16.mxu0 0
      %842 = vmatpush2.bf16.msra.mxu0 0
      %843 = vmatprep.subr.bf16.mxu0 0
      %844 = vmatpush2.bf16.msra.mxu0 0
      %845 = vmatprep.subr.bf16.mxu0 0
      %846 = vmatpush2.bf16.msra.mxu0 0
      %847 = vmatprep.subr.bf16.mxu0 0
      %848 = vmatpush2.bf16.msra.mxu0 0
      %849 = vmatprep.subr.bf16.mxu0 0
      %850 = vmatpush2.bf16.msra.mxu0 0
      %851 = vmatprep.subr.bf16.mxu0 0
      %852 = vmatpush2.bf16.msra.mxu0 0
      %853 = vmatprep.subr.bf16.mxu0 0
      %854 = vmatpush2.bf16.msra.mxu0 0
      %855 = vmatprep.mubr.bf16.mxu0 0
      %856 = vmatmul.mubr.bf16.gmra.mxu0 %v800
      %v857 = vpop.f32.mrf.mxu0
      %v858 = vadd.f32 %v784, %v857
      %v859 = vpop.f32.mrf.mxu0
      %v860 = vpop.f32.mrf.mxu0
      %v861 = vadd.f32 %v784, %v860
      %v862 = vpop.f32.mrf.mxu0
      %863 = vmatprep.mubr.bf16.mxu0 0
      %864 = vmatmul.mubr.bf16.gmra.mxu0 %v803
      %v865 = vpop.f32.mrf.mxu0
      %v866 = vadd.f32 %v784, %v865
      %v867 = vpop.f32.mrf.mxu0
      %v868 = vpop.f32.mrf.mxu0
      %v869 = vadd.f32 %v784, %v868
      %v870 = vpop.f32.mrf.mxu0
      %871 = vmatprep.mubr.bf16.mxu0 0
      %872 = vmatmul.mubr.bf16.gmra.mxu0 %v806
      %v873 = vpop.f32.mrf.mxu0
      %v874 = vadd.f32 %v784, %v873
      %v875 = vpop.f32.mrf.mxu0
      %v876 = vpop.f32.mrf.mxu0
      %v877 = vadd.f32 %v784, %v876
      %v878 = vpop.f32.mrf.mxu0
      %879 = vmatprep.mubr.bf16.mxu0 0
      %880 = vmatmul.mubr.bf16.gmra.mxu0 %v809
      %v881 = vpop.f32.mrf.mxu0
      %v882 = vadd.f32 %v784, %v881
      %v883 = vpop.f32.mrf.mxu0
      %v884 = vpop.f32.mrf.mxu0
      %v885 = vadd.f32 %v784, %v884
      %v886 = vpop.f32.mrf.mxu0
      %887 = vmatprep.mubr.bf16.mxu0 0
      %888 = vmatmul.mubr.bf16.gmra.mxu0 %v812
      %v889 = vpop.f32.mrf.mxu0
      %v890 = vadd.f32 %v784, %v889
      %v891 = vpop.f32.mrf.mxu0
      %v892 = vpop.f32.mrf.mxu0
      %v893 = vadd.f32 %v784, %v892
      %v894 = vpop.f32.mrf.mxu0
      %895 = vmatprep.mubr.bf16.mxu0 0
      %896 = vmatmul.mubr.bf16.gmra.mxu0 %v815
      %v897 = vpop.f32.mrf.mxu0
      %v898 = vadd.f32 %v784, %v897
      %v899 = vpop.f32.mrf.mxu0
      %v900 = vpop.f32.mrf.mxu0
      %v901 = vadd.f32 %v784, %v900
      %v902 = vpop.f32.mrf.mxu0
      %903 = vmatprep.mubr.bf16.mxu0 0
      %904 = vmatmul.mubr.bf16.gmra.mxu0 %v818
      %v905 = vpop.f32.mrf.mxu0
      %v906 = vadd.f32 %v784, %v905
      %v907 = vpop.f32.mrf.mxu0
      %v908 = vpop.f32.mrf.mxu0
      %v909 = vadd.f32 %v784, %v908
      %v910 = vpop.f32.mrf.mxu0
      %911 = vmatprep.mubr.bf16.mxu0 0
      %912 = vmatmul.mubr.bf16.gmra.mxu0 %v821
      %v913 = vpop.f32.mrf.mxu0
      %v914 = vadd.f32 %v784, %v913
      %v915 = vpop.f32.mrf.mxu0
      %v916 = vpop.f32.mrf.mxu0
      %v917 = vadd.f32 %v784, %v916
      %v918 = vpop.f32.mrf.mxu0
      %919 = vdwg.mxu0
      %920 = vxpose.xlu0.b32.start [1/16] %v858, 128
      %921 = vxpose.xlu0.b32.cont [2/16] %v861, 128
      %922 = vxpose.xlu0.b32.cont [3/16] %v866, 128
      %923 = vxpose.xlu0.b32.cont [4/16] %v869, 128
      %924 = vxpose.xlu0.b32.cont [5/16] %v874, 128
      %925 = vxpose.xlu0.b32.cont [6/16] %v877, 128
      %926 = vxpose.xlu0.b32.cont [7/16] %v882, 128
      %927 = vxpose.xlu0.b32.cont [8/16] %v885, 128
      %928 = vxpose.xlu0.b32.cont [9/16] %v890, 128
      %929 = vxpose.xlu0.b32.cont [10/16] %v893, 128
      %930 = vxpose.xlu0.b32.cont [11/16] %v898, 128
      %931 = vxpose.xlu0.b32.cont [12/16] %v901, 128
      %932 = vxpose.xlu0.b32.cont [13/16] %v906, 128
      %933 = vxpose.xlu0.b32.cont [14/16] %v909, 128
      %934 = vxpose.xlu0.b32.cont [15/16] %v914, 128
      %935 = vxpose.xlu0.b32.end [16/16] %v917, 128
      %v936 = vpop.trf.xlu0
      %v937 = vpop.trf.xlu0
      %v938 = vpop.trf.xlu0
      %v939 = vpop.trf.xlu0
      %v940 = vpop.trf.xlu0
      %v941 = vpop.trf.xlu0
      %v942 = vpop.trf.xlu0
      %v943 = vpop.trf.xlu0
      %v944 = vpop.trf.xlu0
      %v945 = vpop.trf.xlu0
      %v946 = vpop.trf.xlu0
      %v947 = vpop.trf.xlu0
      %v948 = vpop.trf.xlu0
      %v949 = vpop.trf.xlu0
      %v950 = vpop.trf.xlu0
      %v951 = vpop.trf.xlu0
      %v952 = vpack.c.bf16 %v937, %v936
      %v953 = vpack.c.bf16 %v939, %v938
      %v956 = vunpack.c.l.b16 %v952
      %v957 = vunpack.c.h.b16 %v952
      %v958 = vunpack.c.l.b16 %v953
      %v959 = vunpack.c.h.b16 %v953
      %v960 = vpack.c.b16 %v956, %v956
      %v961 = vpack.c.b16 %v957, %v957
      %v962 = vpack.c.b16 %v958, %v958
      %v963 = vpack.c.b16 %v959, %v959
      %968 = vst [vmem:[%s348] sm:$0xf] %v960
      %969 = vst [vmem:[%s348 + $0x4] sm:$0xf] %v961
      %970 = vst [vmem:[%s348 + $0x8] sm:$0xf] %v962
      %971 = vst [vmem:[%s348 + $0xc] sm:$0xf] %v963
      %s972 = smul.u32 16, %s23
      %p973 = scmp.lt.s32.totalorder %s22, 1
      %s974 = scalar_select %p973, %s22, 1
      %p975 = scmp.lt.s32.totalorder %s972, 15
      %s976 = scalar_select %p975, %s972, 15
      %s977 = smul.addr %s974, 16
      %s978 = sadd.s32 %s976, %s977
      %s979 = smul.addr %s978, 4
      %s980 = scalar_lea.vmem %s5, %s979
      %p981 = scmp.lt.s32.totalorder %s22, 1
      %s982 = scalar_select %p981, %s22, 1
      %p983 = scmp.lt.s32.totalorder %s23, 0
      %s984 = scalar_select %p983, %s23, 0
      %s985 = smul.addr %s982, 4
      %s986 = sadd.s32 %s984, %s985
      %s987 = smul.addr %s986, 4
      %s988 = scalar_lea.vmem %s6, %s987
      // Predicated region
      $region41: #{_device_forward.4} parent=39 // pred_check
        %p989 = pneg %p172
      $region42: #{_device_forward.4} parent=39 // pred_check_branch
        %991 = sbr.rel (%p989) target = $region44
      $region43: #{_device_forward.4} parent=39 // pred_region
        %s992 = smul.u32 16, %s23
      $region44: #{_device_forward.4} parent=39 // pred_fallthru
        _
      // Predicated region
      $region45: #{_device_forward.4} parent=39 // pred_check
        %p993 = pneg %p200
      $region46: #{_device_forward.4} parent=39 // pred_check_branch
        %995 = sbr.rel (%p993) target = $region48
      $region47: #{_device_forward.4} parent=39 // pred_region
        _
      $region48: #{_device_forward.4} parent=39 // pred_fallthru
        _
    $region40: #{_device_forward.4} parent=5 // pred_fallthru
      _
    %p996 = scmp.le.s32.totalorder 2, %s13
    // Predicated region
    $region49: #{_device_forward.4} parent=5 // pred_check
      %p997 = pneg %p996
    $region50: #{_device_forward.4} parent=5 // pred_check_branch
      %999 = sbr.rel (%p997) target = $region52
    $region51: #{_device_forward.4} parent=5 // pred_region
      %s1000 = ssub.s32 %s13, 2
      // Predicated region
      $region53: #{_device_forward.4} parent=51 // pred_check
        %p1001 = pneg %p178
      $region54: #{_device_forward.4} parent=51 // pred_check_branch
        %1003 = sbr.rel (%p1001) target = $region56
      $region55: #{_device_forward.4} parent=51 // pred_region
        %s1004 = smul.u32 16, %s25
        %p1005 = scmp.lt.s32.totalorder %s24, 1
        %s1006 = scalar_select %p1005, %s24, 1
        %p1007 = scmp.lt.s32.totalorder %s1004, 15
        %s1008 = scalar_select %p1007, %s1004, 15
        %s1009 = smul.addr %s1006, 16
        %s1010 = sadd.s32 %s1008, %s1009
        %s1011 = smul.addr %s1010, 4
        %s1012 = scalar_lea.vmem %s5, %s1011
      $region56: #{_device_forward.4} parent=51 // pred_fallthru
        _
      // Predicated region
      $region57: #{_device_forward.4} parent=51 // pred_check
        %p1013 = pneg %p206
      $region58: #{_device_forward.4} parent=51 // pred_check_branch
        %1015 = sbr.rel (%p1013) target = $region60
      $region59: #{_device_forward.4} parent=51 // pred_region
        %p1016 = scmp.lt.s32.totalorder %s24, 1
        %s1017 = scalar_select %p1016, %s24, 1
        %p1018 = scmp.lt.s32.totalorder %s25, 0
        %s1019 = scalar_select %p1018, %s25, 0
        %s1020 = smul.addr %s1017, 4
        %s1021 = sadd.s32 %s1019, %s1020
        %s1022 = smul.addr %s1021, 4
        %s1023 = scalar_lea.vmem %s6, %s1022
      $region60: #{_device_forward.4} parent=51 // pred_fallthru
        _
    $region52: #{_device_forward.4} parent=5 // pred_fallthru
      _
  $region6: #{_device_forward.4} parent=0 // loop_footer
    %s17 = sadd.s32 1, %s13
  $region7: #{_device_forward.4} parent=0 // loop_footer_branch
    %12 = sbr.rel target = $region3
  $region8: #{_device_forward.4} parent=0 // loop_exit
    _

// kernel: _device_forward.5
$region0: #{_device_forward.5}
  #allocation0 [shape = 'u32[]', space=smem, size = 0x4, offset = 0x4, fixed_abs, tag = 'smem constant byte address 0x4 - core index']
  #allocation1 [shape = 'u32[144,128]{1,0:T(1,128)}', space=vmem, size = 0x12000, scoped, tag = 'internal scratch']
  %s0 = inlined_call_operand.vmem [shape: bf16[2,32,128], index: 0, kind: input, shape index: {}]
  %s1 = inlined_call_operand.vmem [shape: bf16[2,128,64], index: 1, kind: input, shape index: {}]
  %s2 = inlined_call_operand.vmem [shape: f32[2,1,64], index: 2, kind: input, shape index: {}]
  %s3 = inlined_call_operand.vmem [shape: bf16[64,32], index: 3, kind: input, shape index: {}]
  %s4 = inlined_call_operand.vmem [shape: f32[1,32], index: 4, kind: input, shape index: {}]
  %s5 = inlined_call_operand.vmem [shape: bf16[2,32,64], index: 5, kind: output, shape index: {0}]
  %s6 = inlined_call_operand.vmem [shape: bf16[2,32,32], index: 6, kind: output, shape index: {1}]
  %7 = xla_tuple %s5, %s6
  %s8 = sld [smem:[#allocation0]]
  $region61: #{_device_forward.5} parent=0
    _
  %s10 = ssub.s32 1, %s8
  %s11 = scalar_select 0, %s10, %s8
  loop: start=0, step=1, limit=4
  $region2: #{_device_forward.5} parent=0 // loop_pre_header
    _
  $region3: #{_device_forward.5} parent=0 // loop_header
    %s13 = sphi 0, %s17
    %p14 = scmp.ge.s32.totalorder %s13, 4
    %s20 = sphi 0, %s32
    %s21 = sphi 0, %s28
    %s22 = sphi 0, %s20
    %s23 = sphi 0, %s21
    %s24 = sphi 0, %s22
    %s25 = sphi 0, %s23
    %s37 = sphi 0, %s39
    %s40 = sphi 0, %s37
    %s41 = sphi 0, %s40
    %s57 = sphi 0, %s41
    %s63 = sphi 0, %s65
    %s66 = sphi 0, %s63
    %s67 = sphi 0, %s66
    %s83 = sphi 0, %s67
    %s89 = sphi 0, %s91
    %s92 = sphi 0, %s89
    %s93 = sphi 0, %s92
    %s109 = sphi 0, %s93
    %s113 = sphi 0, %s113
    %s115 = sphi 0, %s113
    %s116 = sphi 0, %s115
    %s130 = sphi 0, %s116
    %s134 = sphi 0, %s134
    %s136 = sphi 0, %s134
    %s137 = sphi 0, %s136
    %s151 = sphi 0, %s137
    %s159 = sphi 0, %s161
    %s162 = sphi 0, %s159
    %s163 = sphi 0, %s162
    %s179 = sphi 0, %s163
    %s187 = sphi 0, %s189
    %s190 = sphi 0, %s187
    %s191 = sphi 0, %s190
    %s207 = sphi 0, %s191
  $region4: #{_device_forward.5} parent=0 // loop_header_branch
    %16 = sbr.rel (%p14) target = $region8
  $region5: #{_device_forward.5} parent=0 // loop_body
    %s18 = ssub.s32 %s13, 1
    %s19 = ssub.s32 %s13, 2
    %s26 = sadd.s32 1, %s21
    %p27 = scmp.ge.s32.totalorder %s26, 1
    %s28 = scalar_select %p27, 0, %s26
    %s29 = sadd.s32 1, %s20
    %s30 = scalar_select %p27, %s29, %s20
    %p31 = scmp.ge.s32.totalorder %s30, 2
    %s32 = scalar_select %p31, 0, %s30
    %s33 = ssub.s32 %s20, %s32
    %s34 = ssub.s32 %s21, %s28
    %s35 = sor.u32 %s33, %s34
    %p36 = scmp.eq.s32.totalorder %s35, 0
    %s38 = sadd.s32 %s37, 1
    %s39 = scalar_select %p36, %s37, %s38
    %p42 = pneg %p36
    %p43 = scmp.eq.s32.totalorder %s13, 1
    %p44 = por %p42, %p43
    %p45 = scmp.ne.s32.totalorder %s37, %s40
    %p46 = scmp.eq.s32.totalorder %s13, 0
    %p47 = por %p45, %p46
    %p48 = scmp.ne.s32.totalorder %s37, %s40
    %p49 = scmp.eq.s32.totalorder %s18, 1
    %p50 = por %p48, %p49
    %p51 = scmp.ne.s32.totalorder %s40, %s41
    %p52 = scmp.eq.s32.totalorder %s18, 0
    %p53 = por %p51, %p52
    %p54 = scmp.ne.s32.totalorder %s40, %s41
    %p55 = scmp.eq.s32.totalorder %s19, 1
    %p56 = por %p54, %p55
    %p58 = scmp.ne.s32.totalorder %s41, %s57
    %p59 = scmp.eq.s32.totalorder %s19, 0
    %p60 = por %p58, %p59
    %s61 = ssub.s32 %s20, %s32
    %p62 = scmp.eq.s32.totalorder %s61, 0
    %s64 = sadd.s32 %s63, 1
    %s65 = scalar_select %p62, %s63, %s64
    %p68 = pneg %p62
    %p69 = scmp.eq.s32.totalorder %s13, 1
    %p70 = por %p68, %p69
    %p71 = scmp.ne.s32.totalorder %s63, %s66
    %p72 = scmp.eq.s32.totalorder %s13, 0
    %p73 = por %p71, %p72
    %p74 = scmp.ne.s32.totalorder %s63, %s66
    %p75 = scmp.eq.s32.totalorder %s18, 1
    %p76 = por %p74, %p75
    %p77 = scmp.ne.s32.totalorder %s66, %s67
    %p78 = scmp.eq.s32.totalorder %s18, 0
    %p79 = por %p77, %p78
    %p80 = scmp.ne.s32.totalorder %s66, %s67
    %p81 = scmp.eq.s32.totalorder %s19, 1
    %p82 = por %p80, %p81
    %p84 = scmp.ne.s32.totalorder %s67, %s83
    %p85 = scmp.eq.s32.totalorder %s19, 0
    %p86 = por %p84, %p85
    %s87 = ssub.s32 %s20, %s32
    %p88 = scmp.eq.s32.totalorder %s87, 0
    %s90 = sadd.s32 %s89, 1
    %s91 = scalar_select %p88, %s89, %s90
    %p94 = pneg %p88
    %p95 = scmp.eq.s32.totalorder %s13, 1
    %p96 = por %p94, %p95
    %p97 = scmp.ne.s32.totalorder %s89, %s92
    %p98 = scmp.eq.s32.totalorder %s13, 0
    %p99 = por %p97, %p98
    %p100 = scmp.ne.s32.totalorder %s89, %s92
    %p101 = scmp.eq.s32.totalorder %s18, 1
    %p102 = por %p100, %p101
    %p103 = scmp.ne.s32.totalorder %s92, %s93
    %p104 = scmp.eq.s32.totalorder %s18, 0
    %p105 = por %p103, %p104
    %p106 = scmp.ne.s32.totalorder %s92, %s93
    %p107 = scmp.eq.s32.totalorder %s19, 1
    %p108 = por %p106, %p107
    %p110 = scmp.ne.s32.totalorder %s93, %s109
    %p111 = scmp.eq.s32.totalorder %s19, 0
    %p112 = por %p110, %p111
    %s114 = sadd.s32 %s113, 1
    %p117 = scmp.eq.s32.totalorder %s13, 1
    %p118 = scmp.ne.s32.totalorder %s113, %s115
    %p119 = scmp.eq.s32.totalorder %s13, 0
    %p120 = por %p118, %p119
    %p121 = scmp.ne.s32.totalorder %s113, %s115
    %p122 = scmp.eq.s32.totalorder %s18, 1
    %p123 = por %p121, %p122
    %p124 = scmp.ne.s32.totalorder %s115, %s116
    %p125 = scmp.eq.s32.totalorder %s18, 0
    %p126 = por %p124, %p125
    %p127 = scmp.ne.s32.totalorder %s115, %s116
    %p128 = scmp.eq.s32.totalorder %s19, 1
    %p129 = por %p127, %p128
    %p131 = scmp.ne.s32.totalorder %s116, %s130
    %p132 = scmp.eq.s32.totalorder %s19, 0
    %p133 = por %p131, %p132
    %s135 = sadd.s32 %s134, 1
    %p138 = scmp.eq.s32.totalorder %s13, 1
    %p139 = scmp.ne.s32.totalorder %s134, %s136
    %p140 = scmp.eq.s32.totalorder %s13, 0
    %p141 = por %p139, %p140
    %p142 = scmp.ne.s32.totalorder %s134, %s136
    %p143 = scmp.eq.s32.totalorder %s18, 1
    %p144 = por %p142, %p143
    %p145 = scmp.ne.s32.totalorder %s136, %s137
    %p146 = scmp.eq.s32.totalorder %s18, 0
    %p147 = por %p145, %p146
    %p148 = scmp.ne.s32.totalorder %s136, %s137
    %p149 = scmp.eq.s32.totalorder %s19, 1
    %p150 = por %p148, %p149
    %p152 = scmp.ne.s32.totalorder %s137, %s151
    %p153 = scmp.eq.s32.totalorder %s19, 0
    %p154 = por %p152, %p153
    %s155 = ssub.s32 %s20, %s32
    %s156 = ssub.s32 %s21, %s28
    %s157 = sor.u32 %s155, %s156
    %p158 = scmp.eq.s32.totalorder %s157, 0
    %s160 = sadd.s32 %s159, 1
    %s161 = scalar_select %p158, %s159, %s160
    %p164 = pneg %p158
    %p165 = scmp.eq.s32.totalorder %s13, 1
    %p166 = por %p164, %p165
    %p167 = scmp.ne.s32.totalorder %s159, %s162
    %p168 = scmp.eq.s32.totalorder %s13, 0
    %p169 = por %p167, %p168
    %p170 = scmp.ne.s32.totalorder %s159, %s162
    %p171 = scmp.eq.s32.totalorder %s18, 1
    %p172 = por %p170, %p171
    %p173 = scmp.ne.s32.totalorder %s162, %s163
    %p174 = scmp.eq.s32.totalorder %s18, 0
    %p175 = por %p173, %p174
    %p176 = scmp.ne.s32.totalorder %s162, %s163
    %p177 = scmp.eq.s32.totalorder %s19, 1
    %p178 = por %p176, %p177
    %p180 = scmp.ne.s32.totalorder %s163, %s179
    %p181 = scmp.eq.s32.totalorder %s19, 0
    %p182 = por %p180, %p181
    %s183 = ssub.s32 %s20, %s32
    %s184 = ssub.s32 %s21, %s28
    %s185 = sor.u32 %s183, %s184
    %p186 = scmp.eq.s32.totalorder %s185, 0
    %s188 = sadd.s32 %s187, 1
    %s189 = scalar_select %p186, %s187, %s188
    %p192 = pneg %p186
    %p193 = scmp.eq.s32.totalorder %s13, 1
    %p194 = por %p192, %p193
    %p195 = scmp.ne.s32.totalorder %s187, %s190
    %p196 = scmp.eq.s32.totalorder %s13, 0
    %p197 = por %p195, %p196
    %p198 = scmp.ne.s32.totalorder %s187, %s190
    %p199 = scmp.eq.s32.totalorder %s18, 1
    %p200 = por %p198, %p199
    %p201 = scmp.ne.s32.totalorder %s190, %s191
    %p202 = scmp.eq.s32.totalorder %s18, 0
    %p203 = por %p201, %p202
    %p204 = scmp.ne.s32.totalorder %s190, %s191
    %p205 = scmp.eq.s32.totalorder %s19, 1
    %p206 = por %p204, %p205
    %p208 = scmp.ne.s32.totalorder %s191, %s207
    %p209 = scmp.eq.s32.totalorder %s19, 0
    %p210 = por %p208, %p209
    %p211 = scmp.le.s32.totalorder 1, %s13
    %p212 = scmp.lt.s32.totalorder %s13, 3
    %p213 = pnand %p211, %p212
    %p214 = pneg %p213
    // Predicated region
    $region9: #{_device_forward.5} parent=5 // pred_check
      _
    $region10: #{_device_forward.5} parent=5 // pred_check_branch
      %216 = sbr.rel (%p213) target = $region12
    $region11: #{_device_forward.5} parent=5 // pred_region
      %s217 = ssub.s32 %s13, 1
      // Predicated region
      $region13: #{_device_forward.5} parent=11 // pred_check
        %p218 = pneg %p126
      $region14: #{_device_forward.5} parent=11 // pred_check_branch
        %220 = sbr.rel (%p218) target = $region16
      $region15: #{_device_forward.5} parent=11 // pred_region
        _
      $region16: #{_device_forward.5} parent=11 // pred_fallthru
        _
      // Predicated region
      $region17: #{_device_forward.5} parent=11 // pred_check
        %p221 = pneg %p147
      $region18: #{_device_forward.5} parent=11 // pred_check_branch
        %223 = sbr.rel (%p221) target = $region20
      $region19: #{_device_forward.5} parent=11 // pred_region
        _
      $region20: #{_device_forward.5} parent=11 // pred_fallthru
        _
    $region12: #{_device_forward.5} parent=5 // pred_fallthru
      _
    %p224 = scmp.lt.s32.totalorder %s13, 2
    // Predicated region
    $region21: #{_device_forward.5} parent=5 // pred_check
      %p225 = pneg %p224
    $region22: #{_device_forward.5} parent=5 // pred_check_branch
      %227 = sbr.rel (%p225) target = $region24
    $region23: #{_device_forward.5} parent=5 // pred_region
      // Predicated region
      $region25: #{_device_forward.5} parent=23 // pred_check
        %p228 = pneg %p47
      $region26: #{_device_forward.5} parent=23 // pred_check_branch
        %230 = sbr.rel (%p228) target = $region28
      $region27: #{_device_forward.5} parent=23 // pred_region
        %s231 = smul.u32 4, %s21
        %p232 = scmp.lt.s32.totalorder %s20, 1
        %s233 = scalar_select %p232, %s20, 1
        %p234 = scmp.lt.s32.totalorder %s231, 3
        %s235 = scalar_select %p234, %s231, 3
        %s236 = smul.addr %s233, 4
        %s237 = sadd.s32 %s235, %s236
        %s238 = smul.addr %s237, 4
        %s239 = scalar_lea.vmem %s0, %s238
        %s240 = smul.u32 4, %s21
      $region28: #{_device_forward.5} parent=23 // pred_fallthru
        _
      // Predicated region
      $region29: #{_device_forward.5} parent=23 // pred_check
        %p241 = pneg %p73
      $region30: #{_device_forward.5} parent=23 // pred_check_branch
        %243 = sbr.rel (%p241) target = $region32
      $region31: #{_device_forward.5} parent=23 // pred_region
        %p244 = scmp.lt.s32.totalorder %s20, 1
        %s245 = scalar_select %p244, %s20, 1
        %s246 = smul.addr %s245, 16
        %s247 = smul.addr %s246, 4
        %s248 = scalar_lea.vmem %s1, %s247
      $region32: #{_device_forward.5} parent=23 // pred_fallthru
        _
      // Predicated region
      $region33: #{_device_forward.5} parent=23 // pred_check
        %p249 = pneg %p99
      $region34: #{_device_forward.5} parent=23 // pred_check_branch
        %251 = sbr.rel (%p249) target = $region36
      $region35: #{_device_forward.5} parent=23 // pred_region
        %p252 = scmp.lt.s32.totalorder %s20, 1
        %s253 = scalar_select %p252, %s20, 1
        %s254 = scalar_lea.vmem %s2, %s253
      $region36: #{_device_forward.5} parent=23 // pred_fallthru
        _
    $region24: #{_device_forward.5} parent=5 // pred_fallthru
      _
    %p255 = scmp.le.s32.totalorder 1, %s13
    %p256 = scmp.lt.s32.totalorder %s13, 3
    %p257 = pnand %p255, %p256
    %p258 = pneg %p257
    // Predicated region
    $region37: #{_device_forward.5} parent=5 // pred_check
      _
    $region38: #{_device_forward.5} parent=5 // pred_check_branch
      %260 = sbr.rel (%p257) target = $region40
    $region39: #{_device_forward.5} parent=5 // pred_region
      %s261 = ssub.s32 %s13, 1
      %s262 = smul.u32 4, %s23
      %p263 = scmp.lt.s32.totalorder %s22, 1
      %s264 = scalar_select %p263, %s22, 1
      %p265 = scmp.lt.s32.totalorder %s262, 3
      %s266 = scalar_select %p265, %s262, 3
      %s267 = smul.addr %s264, 4
      %s268 = sadd.s32 %s266, %s267
      %s269 = smul.addr %s268, 4
      %s270 = scalar_lea.vmem %s0, %s269
      %p271 = pneg %p53
      %p272 = pneg %p50
      %p273 = scmp.lt.s32.totalorder %s22, 1
      %s274 = scalar_select %p273, %s22, 1
      %s275 = smul.addr %s274, 16
      %s276 = smul.addr %s275, 4
      %s277 = scalar_lea.vmem %s1, %s276
      %p278 = pneg %p79
      %p279 = pneg %p76
      %p280 = scmp.lt.s32.totalorder %s22, 1
      %s281 = scalar_select %p280, %s22, 1
      %s282 = scalar_lea.vmem %s2, %s281
      %p283 = pneg %p105
      %p284 = pneg %p102
      %p285 = pneg %p126
      %p286 = pneg %p123
      %p287 = pneg %p147
      %p288 = pneg %p144
      %p289 = pneg %p175
      %p290 = pneg %p172
      %s291 = smul.u32 4, %s23
      %p292 = scmp.lt.s32.totalorder %s22, 1
      %s293 = scalar_select %p292, %s22, 1
      %p294 = scmp.lt.s32.totalorder %s291, 3
      %s295 = scalar_select %p294, %s291, 3
      %s296 = smul.addr %s293, 4
      %s297 = sadd.s32 %s295, %s296
      %s298 = smul.addr %s297, 4
      %s299 = scalar_lea.vmem %s5, %s298
      %p300 = pneg %p203
      %p301 = pneg %p200
      %p302 = scmp.lt.s32.totalorder %s22, 1
      %s303 = scalar_select %p302, %s22, 1
      %p304 = scmp.lt.s32.totalorder %s23, 0
      %s305 = scalar_select %p304, %s23, 0
      %s306 = smul.addr %s303, 4
      %s307 = sadd.s32 %s305, %s306
      %s308 = smul.addr %s307, 4
      %s309 = scalar_lea.vmem %s6, %s308
      %s310 = smul.u32 4, %s23
      %p311 = scmp.lt.s32.totalorder %s22, 1
      %s312 = scalar_select %p311, %s22, 1
      %p313 = scmp.lt.s32.totalorder %s310, 3
      %s314 = scalar_select %p313, %s310, 3
      %s315 = smul.addr %s312, 4
      %s316 = sadd.s32 %s314, %s315
      %s317 = smul.addr %s316, 4
      %s318 = scalar_lea.vmem %s0, %s317
      %s319 = smul.u32 4, %s23
      %p320 = scmp.lt.s32.totalorder %s22, 1
      %s321 = scalar_select %p320, %s22, 1
      %s322 = smul.addr %s321, 16
      %s323 = smul.addr %s322, 4
      %s324 = scalar_lea.vmem %s1, %s323
      %p325 = scmp.lt.s32.totalorder %s22, 1
      %s326 = scalar_select %p325, %s22, 1
      %s327 = scalar_lea.vmem %s2, %s326
      %s328 = smul.u32 4, %s23
      %p329 = scmp.lt.s32.totalorder %s22, 1
      %s330 = scalar_select %p329, %s22, 1
      %p331 = scmp.lt.s32.totalorder %s328, 3
      %s332 = scalar_select %p331, %s328, 3
      %s333 = smul.addr %s330, 4
      %s334 = sadd.s32 %s332, %s333
      %s335 = smul.addr %s334, 4
      %s336 = scalar_lea.vmem %s5, %s335
      %s337 = smul.u32 4, %s23
      %p338 = scmp.lt.s32.totalorder %s22, 1
      %s339 = scalar_select %p338, %s22, 1
      %p340 = scmp.lt.s32.totalorder %s23, 0
      %s341 = scalar_select %p340, %s23, 0
      %s342 = smul.addr %s339, 4
      %s343 = sadd.s32 %s341, %s342
      %s344 = smul.addr %s343, 4
      %s345 = scalar_lea.vmem %s6, %s344
      %v347 = vld [vmem:[%s318] sm:$0xf]
      %v348 = vld [vmem:[%s318 + $0x4] sm:$0xf]
      %v349 = vld [vmem:[%s318 + $0x8] sm:$0xf]
      %v350 = vld [vmem:[%s318 + $0xc] sm:$0xf]
      %v351 = vld [vmem:[%s324] sm:$0xf]
      %v352 = vld [vmem:[%s324 + $0x4] sm:$0xf]
      %v353 = vld [vmem:[%s324 + $0x8] sm:$0xf]
      %v354 = vld [vmem:[%s324 + $0xc] sm:$0xf]
      %v355 = vld [vmem:[%s324 + $0x10] sm:$0xf]
      %v356 = vld [vmem:[%s324 + $0x14] sm:$0xf]
      %v357 = vld [vmem:[%s324 + $0x18] sm:$0xf]
      %v358 = vld [vmem:[%s324 + $0x1c] sm:$0xf]
      %v359 = vld [vmem:[%s324 + $0x20] sm:$0xf]
      %v360 = vld [vmem:[%s324 + $0x24] sm:$0xf]
      %v361 = vld [vmem:[%s324 + $0x28] sm:$0xf]
      %v362 = vld [vmem:[%s324 + $0x2c] sm:$0xf]
      %v363 = vld [vmem:[%s324 + $0x30] sm:$0xf]
      %v364 = vld [vmem:[%s324 + $0x34] sm:$0xf]
      %v365 = vld [vmem:[%s324 + $0x38] sm:$0xf]
      %v366 = vld [vmem:[%s324 + $0x3c] sm:$0xf]
      %v367 = vld [vmem:[%s327] sm:$0x1]
      %v369 = vlaneseq
      %v370 = vshrl.u32 %v369, 7
      %v371 = vsub.s32 0, %v370
      %v372 = vrot.slane %v367, %v371
      %v378 = vunpack.c.l.b16 %v347
      %v379 = vunpack.c.l.b16 %v348
      %v380 = vunpack.c.l.b16 %v349
      %v381 = vunpack.c.l.b16 %v350
      %v382 = vpack.c.b16 %v379, %v378
      %v383 = vpack.c.b16 %v381, %v380
      %v402 = vunpack.c.l.b16 %v351
      %v403 = vunpack.c.l.b16 %v352
      %v404 = vunpack.c.l.b16 %v353
      %v405 = vunpack.c.l.b16 %v354
      %v406 = vunpack.c.l.b16 %v355
      %v407 = vunpack.c.l.b16 %v356
      %v408 = vunpack.c.l.b16 %v357
      %v409 = vunpack.c.l.b16 %v358
      %v410 = vunpack.c.l.b16 %v359
      %v411 = vunpack.c.l.b16 %v360
      %v412 = vunpack.c.l.b16 %v361
      %v413 = vunpack.c.l.b16 %v362
      %v414 = vunpack.c.l.b16 %v363
      %v415 = vunpack.c.l.b16 %v364
      %v416 = vunpack.c.l.b16 %v365
      %v417 = vunpack.c.l.b16 %v366
      %v418 = vpack.c.b16 %v403, %v402
      %v419 = vpack.c.b16 %v405, %v404
      %v420 = vpack.c.b16 %v407, %v406
      %v421 = vpack.c.b16 %v409, %v408
      %v422 = vpack.c.b16 %v411, %v410
      %v423 = vpack.c.b16 %v413, %v412
      %v424 = vpack.c.b16 %v415, %v414
      %v425 = vpack.c.b16 %v417, %v416
      %434 = vmatprep.subr.bf16.mxu0 0
      %435 = vmatpush1.bf16.msra.mxu0 %v425
      %436 = vmatprep.subr.bf16.mxu0 0
      %437 = vmatpush1.bf16.msra.mxu0 %v424
      %438 = vmatprep.subr.bf16.mxu0 0
      %439 = vmatpush1.bf16.msra.mxu0 %v423
      %440 = vmatprep.subr.bf16.mxu0 0
      %441 = vmatpush1.bf16.msra.mxu0 %v422
      %442 = vmatprep.subr.bf16.mxu0 0
      %443 = vmatpush1.bf16.msra.mxu0 %v421
      %444 = vmatprep.subr.bf16.mxu0 0
      %445 = vmatpush1.bf16.msra.mxu0 %v420
      %446 = vmatprep.subr.bf16.mxu0 0
      %447 = vmatpush1.bf16.msra.mxu0 %v419
      %448 = vmatprep.subr.bf16.mxu0 0
      %449 = vmatpush1.bf16.msra.mxu0 %v418
      %450 = vmatprep.subr.bf16.mxu0 0
      %451 = vmatpush2.bf16.msra.mxu0 0
      %452 = vmatprep.subr.bf16.mxu0 0
      %453 = vmatpush2.bf16.msra.mxu0 0
      %454 = vmatprep.subr.bf16.mxu0 0
      %455 = vmatpush2.bf16.msra.mxu0 0
      %456 = vmatprep.subr.bf16.mxu0 0
      %457 = vmatpush2.bf16.msra.mxu0 0
      %458 = vmatprep.subr.bf16.mxu0 0
      %459 = vmatpush2.bf16.msra.mxu0 0
      %460 = vmatprep.subr.bf16.mxu0 0
      %461 = vmatpush2.bf16.msra.mxu0 0
      %462 = vmatprep.subr.bf16.mxu0 0
      %463 = vmatpush2.bf16.msra.mxu0 0
      %464 = vmatprep.subr.bf16.mxu0 0
      %465 = vmatpush2.bf16.msra.mxu0 0
      %466 = vmatprep.mubr.bf16.mxu0 0
      %467 = vmatmul.mubr.bf16.gmra.mxu0 %v382
      %v468 = vpop.f32.mrf.mxu0
      %v469 = vadd.f32 %v372, %v468
      %v470 = vpop.f32.mrf.mxu0
      %v471 = vpop.f32.mrf.mxu0
      %v472 = vadd.f32 %v372, %v471
      %v473 = vpop.f32.mrf.mxu0
      %474 = vmatprep.mubr.bf16.mxu0 0
      %475 = vmatmul.mubr.bf16.gmra.mxu0 %v383
      %v476 = vpop.f32.mrf.mxu0
      %v477 = vadd.f32 %v372, %v476
      %v478 = vpop.f32.mrf.mxu0
      %v479 = vpop.f32.mrf.mxu0
      %v480 = vadd.f32 %v372, %v479
      %v481 = vpop.f32.mrf.mxu0
      %482 = vdwg.mxu0
      %v483 = vmax.f32 %v469, 0.0
      %v484 = vmax.f32 %v472, 0.0
      %v485 = vmax.f32 %v477, 0.0
      %v486 = vmax.f32 %v480, 0.0
      %v487 = vpack.c.bf16 %v484, %v483
      %v488 = vpack.c.bf16 %v486, %v485
      %v491 = vunpack.c.l.b16 %v487
      %v492 = vunpack.c.h.b16 %v487
      %v493 = vunpack.c.l.b16 %v488
      %v494 = vunpack.c.h.b16 %v488
      %v495 = vpack.c.b16 %v491, %v491
      %v496 = vpack.c.b16 %v492, %v492
      %v497 = vpack.c.b16 %v493, %v493
      %v498 = vpack.c.b16 %v494, %v494
      %vm503 = vcmask 519168
      %504 = vst.msk [vmem:[%s336] sm:$0xf] %vm503, %v495
      %505 = vst.msk [vmem:[%s336 + $0x4] sm:$0xf] %vm503, %v496
      %506 = vst.msk [vmem:[%s336 + $0x8] sm:$0xf] %vm503, %v497
      %507 = vst.msk [vmem:[%s336 + $0xc] sm:$0xf] %vm503, %v498
      %v508 = vld [vmem:[%s3] sm:$0xf]
      %v509 = vld [vmem:[%s3 + $0x4] sm:$0xf]
      %v510 = vld [vmem:[%s3 + $0x8] sm:$0xf]
      %v511 = vld [vmem:[%s3 + $0xc] sm:$0xf]
      %v512 = vld [vmem:[%s3 + $0x10] sm:$0xf]
      %v513 = vld [vmem:[%s3 + $0x14] sm:$0xf]
      %v514 = vld [vmem:[%s3 + $0x18] sm:$0xf]
      %v515 = vld [vmem:[%s3 + $0x1c] sm:$0xf]
      %v516 = vld [vmem:[%s4] sm:$0x1]
      %v518 = vlaneseq
      %v519 = vshrl.u32 %v518, 7
      %v520 = vsub.s32 0, %v519
      %v521 = vrot.slane %v516, %v520
      %v531 = vunpack.c.l.b16 %v508
      %v532 = vunpack.c.l.b16 %v509
      %v533 = vunpack.c.l.b16 %v510
      %v534 = vunpack.c.l.b16 %v511
      %v535 = vunpack.c.l.b16 %v512
      %v536 = vunpack.c.l.b16 %v513
      %v537 = vunpack.c.l.b16 %v514
      %v538 = vunpack.c.l.b16 %v515
      %v539 = vpack.c.b16 %v532, %v531
      %v540 = vpack.c.b16 %v534, %v533
      %v541 = vpack.c.b16 %v536, %v535
      %v542 = vpack.c.b16 %v538, %v537
      %vm547 = vcmask 523264
      %v549 = vsel %vm547, %v487, 0
      %v552 = vsel %vm547, %v488, 0
      %554 = vmatprep.subr.bf16.mxu0 0
      %555 = vmatpush1.bf16.msra.mxu0 0
      %556 = vmatprep.subr.bf16.mxu0 0
      %557 = vmatpush1.bf16.msra.mxu0 0
      %558 = vmatprep.subr.bf16.mxu0 0
      %559 = vmatpush1.bf16.msra.mxu0 0
      %560 = vmatprep.subr.bf16.mxu0 0
      %561 = vmatpush1.bf16.msra.mxu0 0
      %562 = vmatprep.subr.bf16.mxu0 0
      %563 = vmatpush1.bf16.msra.mxu0 %v542
      %564 = vmatprep.subr.bf16.mxu0 0
      %565 = vmatpush1.bf16.msra.mxu0 %v541
      %566 = vmatprep.subr.bf16.mxu0 0
      %567 = vmatpush1.bf16.msra.mxu0 %v540
      %568 = vmatprep.subr.bf16.mxu0 0
      %569 = vmatpush1.bf16.msra.mxu0 %v539
      %570 = vmatprep.subr.bf16.mxu0 0
      %571 = vmatpush2.bf16.msra.mxu0 0
      %572 = vmatprep.subr.bf16.mxu0 0
      %573 = vmatpush2.bf16.msra.mxu0 0
      %574 = vmatprep.subr.bf16.mxu0 0
      %575 = vmatpush2.bf16.msra.mxu0 0
      %576 = vmatprep.subr.bf16.mxu0 0
      %577 = vmatpush2.bf16.msra.mxu0 0
      %578 = vmatprep.subr.bf16.mxu0 0
      %579 = vmatpush2.bf16.msra.mxu0 0
      %580 = vmatprep.subr.bf16.mxu0 0
      %581 = vmatpush2.bf16.msra.mxu0 0
      %582 = vmatprep.subr.bf16.mxu0 0
      %583 = vmatpush2.bf16.msra.mxu0 0
      %584 = vmatprep.subr.bf16.mxu0 0
      %585 = vmatpush2.bf16.msra.mxu0 0
      %586 = vmatprep.mubr.bf16.mxu0 0
      %587 = vmatmul.mubr.bf16.gmra.mxu0 %v549
      %v588 = vpop.f32.mrf.mxu0
      %v589 = vadd.f32 %v521, %v588
      %v590 = vpop.f32.mrf.mxu0
      %v591 = vpop.f32.mrf.mxu0
      %v592 = vadd.f32 %v521, %v591
      %v593 = vpop.f32.mrf.mxu0
      %594 = vmatprep.mubr.bf16.mxu0 0
      %595 = vmatmul.mubr.bf16.gmra.mxu0 %v552
      %v596 = vpop.f32.mrf.mxu0
      %v597 = vadd.f32 %v521, %v596
      %v598 = vpop.f32.mrf.mxu0
      %v599 = vpop.f32.mrf.mxu0
      %v600 = vadd.f32 %v521, %v599
      %v601 = vpop.f32.mrf.mxu0
      %602 = vdwg.mxu0
      %603 = vxpose.xlu0.b32.start [1/16] %v589, 128
      %604 = vxpose.xlu0.b32.cont [2/16] %v592, 128
      %605 = vxpose.xlu0.b32.cont [3/16] %v597, 128
      %606 = vxpose.xlu0.b32.cont [4/16] %v600, 128
      %607 = vxpose.xlu0.b32.cont [5/16] 0.0, 128
      %608 = vxpose.xlu0.b32.cont [6/16] 0.0, 128
      %609 = vxpose.xlu0.b32.cont [7/16] 0.0, 128
      %610 = vxpose.xlu0.b32.cont [8/16] 0.0, 128
      %611 = vxpose.xlu0.b32.cont [9/16] 0.0, 128
      %612 = vxpose.xlu0.b32.cont [10/16] 0.0, 128
      %613 = vxpose.xlu0.b32.cont [11/16] 0.0, 128
      %614 = vxpose.xlu0.b32.cont [12/16] 0.0, 128
      %615 = vxpose.xlu0.b32.cont [13/16] 0.0, 128
      %616 = vxpose.xlu0.b32.cont [14/16] 0.0, 128
      %617 = vxpose.xlu0.b32.cont [15/16] 0.0, 128
      %618 = vxpose.xlu0.b32.end [16/16] 0.0, 128
      %v619 = vpop.trf.xlu0
      %v620 = vpop.trf.xlu0
      %v621 = vpop.trf.xlu0
      %v622 = vpop.trf.xlu0
      %v623 = vpop.trf.xlu0
      %v624 = vpop.trf.xlu0
      %v625 = vpop.trf.xlu0
      %v626 = vpop.trf.xlu0
      %v627 = vpop.trf.xlu0
      %v628 = vpop.trf.xlu0
      %v629 = vpop.trf.xlu0
      %v630 = vpop.trf.xlu0
      %v631 = vpop.trf.xlu0
      %v632 = vpop.trf.xlu0
      %v633 = vpop.trf.xlu0
      %v634 = vpop.trf.xlu0
      %v635 = vpack.c.bf16 %v620, %v619
      %v636 = vpack.c.bf16 %v622, %v621
      %v639 = vunpack.c.l.b16 %v635
      %v640 = vunpack.c.h.b16 %v635
      %v641 = vunpack.c.l.b16 %v636
      %v642 = vunpack.c.h.b16 %v636
      %v643 = vpack.c.b16 %v639, %v639
      %v644 = vpack.c.b16 %v640, %v640
      %v645 = vpack.c.b16 %v641, %v641
      %v646 = vpack.c.b16 %v642, %v642
      %vm651 = vcmask 257024
      %652 = vst.msk [vmem:[%s345] sm:$0xf] %vm651, %v643
      %653 = vst.msk [vmem:[%s345 + $0x4] sm:$0xf] %vm651, %v644
      %654 = vst.msk [vmem:[%s345 + $0x8] sm:$0xf] %vm651, %v645
      %655 = vst.msk [vmem:[%s345 + $0xc] sm:$0xf] %vm651, %v646
      %s656 = smul.u32 4, %s23
      %p657 = scmp.lt.s32.totalorder %s22, 1
      %s658 = scalar_select %p657, %s22, 1
      %p659 = scmp.lt.s32.totalorder %s656, 3
      %s660 = scalar_select %p659, %s656, 3
      %s661 = smul.addr %s658, 4
      %s662 = sadd.s32 %s660, %s661
      %s663 = smul.addr %s662, 4
      %s664 = scalar_lea.vmem %s5, %s663
      %p665 = scmp.lt.s32.totalorder %s22, 1
      %s666 = scalar_select %p665, %s22, 1
      %p667 = scmp.lt.s32.totalorder %s23, 0
      %s668 = scalar_select %p667, %s23, 0
      %s669 = smul.addr %s666, 4
      %s670 = sadd.s32 %s668, %s669
      %s671 = smul.addr %s670, 4
      %s672 = scalar_lea.vmem %s6, %s671
      // Predicated region
      $region41: #{_device_forward.5} parent=39 // pred_check
        %p673 = pneg %p172
      $region42: #{_device_forward.5} parent=39 // pred_check_branch
        %675 = sbr.rel (%p673) target = $region44
      $region43: #{_device_forward.5} parent=39 // pred_region
        %s676 = smul.u32 4, %s23
      $region44: #{_device_forward.5} parent=39 // pred_fallthru
        _
      // Predicated region
      $region45: #{_device_forward.5} parent=39 // pred_check
        %p677 = pneg %p200
      $region46: #{_device_forward.5} parent=39 // pred_check_branch
        %679 = sbr.rel (%p677) target = $region48
      $region47: #{_device_forward.5} parent=39 // pred_region
        _
      $region48: #{_device_forward.5} parent=39 // pred_fallthru
        _
    $region40: #{_device_forward.5} parent=5 // pred_fallthru
      _
    %p680 = scmp.le.s32.totalorder 2, %s13
    // Predicated region
    $region49: #{_device_forward.5} parent=5 // pred_check
      %p681 = pneg %p680
    $region50: #{_device_forward.5} parent=5 // pred_check_branch
      %683 = sbr.rel (%p681) target = $region52
    $region51: #{_device_forward.5} parent=5 // pred_region
      %s684 = ssub.s32 %s13, 2
      // Predicated region
      $region53: #{_device_forward.5} parent=51 // pred_check
        %p685 = pneg %p178
      $region54: #{_device_forward.5} parent=51 // pred_check_branch
        %687 = sbr.rel (%p685) target = $region56
      $region55: #{_device_forward.5} parent=51 // pred_region
        %s688 = smul.u32 4, %s25
        %p689 = scmp.lt.s32.totalorder %s24, 1
        %s690 = scalar_select %p689, %s24, 1
        %p691 = scmp.lt.s32.totalorder %s688, 3
        %s692 = scalar_select %p691, %s688, 3
        %s693 = smul.addr %s690, 4
        %s694 = sadd.s32 %s692, %s693
        %s695 = smul.addr %s694, 4
        %s696 = scalar_lea.vmem %s5, %s695
      $region56: #{_device_forward.5} parent=51 // pred_fallthru
        _
      // Predicated region
      $region57: #{_device_forward.5} parent=51 // pred_check
        %p697 = pneg %p206
      $region58: #{_device_forward.5} parent=51 // pred_check_branch
        %699 = sbr.rel (%p697) target = $region60
      $region59: #{_device_forward.5} parent=51 // pred_region
        %p700 = scmp.lt.s32.totalorder %s24, 1
        %s701 = scalar_select %p700, %s24, 1
        %p702 = scmp.lt.s32.totalorder %s25, 0
        %s703 = scalar_select %p702, %s25, 0
        %s704 = smul.addr %s701, 4
        %s705 = sadd.s32 %s703, %s704
        %s706 = smul.addr %s705, 4
        %s707 = scalar_lea.vmem %s6, %s706
      $region60: #{_device_forward.5} parent=51 // pred_fallthru
        _
    $region52: #{_device_forward.5} parent=5 // pred_fallthru
      _
  $region6: #{_device_forward.5} parent=0 // loop_footer
    %s17 = sadd.s32 1, %s13
  $region7: #{_device_forward.5} parent=0 // loop_footer_branch
    %12 = sbr.rel target = $region3
  $region8: #{_device_forward.5} parent=0 // loop_exit
    _

// kernel: _device_forward.6
$region0: #{_device_forward.6}
  #allocation0 [shape = 'u32[]', space=smem, size = 0x4, offset = 0x4, fixed_abs, tag = 'smem constant byte address 0x4 - core index']
  #allocation1 [shape = 'u32[144,128]{1,0:T(1,128)}', space=vmem, size = 0x12000, scoped, tag = 'internal scratch']
  %s0 = inlined_call_operand.vmem [shape: bf16[2,8,256], index: 0, kind: input, shape index: {}]
  %s1 = inlined_call_operand.vmem [shape: bf16[2,256,128], index: 1, kind: input, shape index: {}]
  %s2 = inlined_call_operand.vmem [shape: f32[2,1,128], index: 2, kind: input, shape index: {}]
  %s3 = inlined_call_operand.vmem [shape: bf16[128,32], index: 3, kind: input, shape index: {}]
  %s4 = inlined_call_operand.vmem [shape: f32[1,32], index: 4, kind: input, shape index: {}]
  %s5 = inlined_call_operand.vmem [shape: bf16[2,32,8], index: 5, kind: output, shape index: {}]
  %s6 = sld [smem:[#allocation0]]
  $region53: #{_device_forward.6} parent=0
    _
  %s8 = ssub.s32 1, %s6
  %s9 = scalar_select 0, %s8, %s6
  loop: start=0, step=1, limit=4
  $region2: #{_device_forward.6} parent=0 // loop_pre_header
    _
  $region3: #{_device_forward.6} parent=0 // loop_header
    %s11 = sphi 0, %s15
    %p12 = scmp.ge.s32.totalorder %s11, 4
    %s18 = sphi 0, %s30
    %s19 = sphi 0, %s26
    %s20 = sphi 0, %s18
    %s21 = sphi 0, %s19
    %s22 = sphi 0, %s20
    %s23 = sphi 0, %s21
    %s35 = sphi 0, %s37
    %s38 = sphi 0, %s35
    %s39 = sphi 0, %s38
    %s55 = sphi 0, %s39
    %s61 = sphi 0, %s63
    %s64 = sphi 0, %s61
    %s65 = sphi 0, %s64
    %s81 = sphi 0, %s65
    %s87 = sphi 0, %s89
    %s90 = sphi 0, %s87
    %s91 = sphi 0, %s90
    %s107 = sphi 0, %s91
    %s111 = sphi 0, %s111
    %s113 = sphi 0, %s111
    %s114 = sphi 0, %s113
    %s128 = sphi 0, %s114
    %s132 = sphi 0, %s132
    %s134 = sphi 0, %s132
    %s135 = sphi 0, %s134
    %s149 = sphi 0, %s135
    %s157 = sphi 0, %s159
    %s160 = sphi 0, %s157
    %s161 = sphi 0, %s160
    %s177 = sphi 0, %s161
  $region4: #{_device_forward.6} parent=0 // loop_header_branch
    %14 = sbr.rel (%p12) target = $region8
  $region5: #{_device_forward.6} parent=0 // loop_body
    %s16 = ssub.s32 %s11, 1
    %s17 = ssub.s32 %s11, 2
    %s24 = sadd.s32 1, %s19
    %p25 = scmp.ge.s32.totalorder %s24, 1
    %s26 = scalar_select %p25, 0, %s24
    %s27 = sadd.s32 1, %s18
    %s28 = scalar_select %p25, %s27, %s18
    %p29 = scmp.ge.s32.totalorder %s28, 2
    %s30 = scalar_select %p29, 0, %s28
    %s31 = ssub.s32 %s18, %s30
    %s32 = ssub.s32 %s19, %s26
    %s33 = sor.u32 %s31, %s32
    %p34 = scmp.eq.s32.totalorder %s33, 0
    %s36 = sadd.s32 %s35, 1
    %s37 = scalar_select %p34, %s35, %s36
    %p40 = pneg %p34
    %p41 = scmp.eq.s32.totalorder %s11, 1
    %p42 = por %p40, %p41
    %p43 = scmp.ne.s32.totalorder %s35, %s38
    %p44 = scmp.eq.s32.totalorder %s11, 0
    %p45 = por %p43, %p44
    %p46 = scmp.ne.s32.totalorder %s35, %s38
    %p47 = scmp.eq.s32.totalorder %s16, 1
    %p48 = por %p46, %p47
    %p49 = scmp.ne.s32.totalorder %s38, %s39
    %p50 = scmp.eq.s32.totalorder %s16, 0
    %p51 = por %p49, %p50
    %p52 = scmp.ne.s32.totalorder %s38, %s39
    %p53 = scmp.eq.s32.totalorder %s17, 1
    %p54 = por %p52, %p53
    %p56 = scmp.ne.s32.totalorder %s39, %s55
    %p57 = scmp.eq.s32.totalorder %s17, 0
    %p58 = por %p56, %p57
    %s59 = ssub.s32 %s18, %s30
    %p60 = scmp.eq.s32.totalorder %s59, 0
    %s62 = sadd.s32 %s61, 1
    %s63 = scalar_select %p60, %s61, %s62
    %p66 = pneg %p60
    %p67 = scmp.eq.s32.totalorder %s11, 1
    %p68 = por %p66, %p67
    %p69 = scmp.ne.s32.totalorder %s61, %s64
    %p70 = scmp.eq.s32.totalorder %s11, 0
    %p71 = por %p69, %p70
    %p72 = scmp.ne.s32.totalorder %s61, %s64
    %p73 = scmp.eq.s32.totalorder %s16, 1
    %p74 = por %p72, %p73
    %p75 = scmp.ne.s32.totalorder %s64, %s65
    %p76 = scmp.eq.s32.totalorder %s16, 0
    %p77 = por %p75, %p76
    %p78 = scmp.ne.s32.totalorder %s64, %s65
    %p79 = scmp.eq.s32.totalorder %s17, 1
    %p80 = por %p78, %p79
    %p82 = scmp.ne.s32.totalorder %s65, %s81
    %p83 = scmp.eq.s32.totalorder %s17, 0
    %p84 = por %p82, %p83
    %s85 = ssub.s32 %s18, %s30
    %p86 = scmp.eq.s32.totalorder %s85, 0
    %s88 = sadd.s32 %s87, 1
    %s89 = scalar_select %p86, %s87, %s88
    %p92 = pneg %p86
    %p93 = scmp.eq.s32.totalorder %s11, 1
    %p94 = por %p92, %p93
    %p95 = scmp.ne.s32.totalorder %s87, %s90
    %p96 = scmp.eq.s32.totalorder %s11, 0
    %p97 = por %p95, %p96
    %p98 = scmp.ne.s32.totalorder %s87, %s90
    %p99 = scmp.eq.s32.totalorder %s16, 1
    %p100 = por %p98, %p99
    %p101 = scmp.ne.s32.totalorder %s90, %s91
    %p102 = scmp.eq.s32.totalorder %s16, 0
    %p103 = por %p101, %p102
    %p104 = scmp.ne.s32.totalorder %s90, %s91
    %p105 = scmp.eq.s32.totalorder %s17, 1
    %p106 = por %p104, %p105
    %p108 = scmp.ne.s32.totalorder %s91, %s107
    %p109 = scmp.eq.s32.totalorder %s17, 0
    %p110 = por %p108, %p109
    %s112 = sadd.s32 %s111, 1
    %p115 = scmp.eq.s32.totalorder %s11, 1
    %p116 = scmp.ne.s32.totalorder %s111, %s113
    %p117 = scmp.eq.s32.totalorder %s11, 0
    %p118 = por %p116, %p117
    %p119 = scmp.ne.s32.totalorder %s111, %s113
    %p120 = scmp.eq.s32.totalorder %s16, 1
    %p121 = por %p119, %p120
    %p122 = scmp.ne.s32.totalorder %s113, %s114
    %p123 = scmp.eq.s32.totalorder %s16, 0
    %p124 = por %p122, %p123
    %p125 = scmp.ne.s32.totalorder %s113, %s114
    %p126 = scmp.eq.s32.totalorder %s17, 1
    %p127 = por %p125, %p126
    %p129 = scmp.ne.s32.totalorder %s114, %s128
    %p130 = scmp.eq.s32.totalorder %s17, 0
    %p131 = por %p129, %p130
    %s133 = sadd.s32 %s132, 1
    %p136 = scmp.eq.s32.totalorder %s11, 1
    %p137 = scmp.ne.s32.totalorder %s132, %s134
    %p138 = scmp.eq.s32.totalorder %s11, 0
    %p139 = por %p137, %p138
    %p140 = scmp.ne.s32.totalorder %s132, %s134
    %p141 = scmp.eq.s32.totalorder %s16, 1
    %p142 = por %p140, %p141
    %p143 = scmp.ne.s32.totalorder %s134, %s135
    %p144 = scmp.eq.s32.totalorder %s16, 0
    %p145 = por %p143, %p144
    %p146 = scmp.ne.s32.totalorder %s134, %s135
    %p147 = scmp.eq.s32.totalorder %s17, 1
    %p148 = por %p146, %p147
    %p150 = scmp.ne.s32.totalorder %s135, %s149
    %p151 = scmp.eq.s32.totalorder %s17, 0
    %p152 = por %p150, %p151
    %s153 = ssub.s32 %s18, %s30
    %s154 = ssub.s32 %s19, %s26
    %s155 = sor.u32 %s153, %s154
    %p156 = scmp.eq.s32.totalorder %s155, 0
    %s158 = sadd.s32 %s157, 1
    %s159 = scalar_select %p156, %s157, %s158
    %p162 = pneg %p156
    %p163 = scmp.eq.s32.totalorder %s11, 1
    %p164 = por %p162, %p163
    %p165 = scmp.ne.s32.totalorder %s157, %s160
    %p166 = scmp.eq.s32.totalorder %s11, 0
    %p167 = por %p165, %p166
    %p168 = scmp.ne.s32.totalorder %s157, %s160
    %p169 = scmp.eq.s32.totalorder %s16, 1
    %p170 = por %p168, %p169
    %p171 = scmp.ne.s32.totalorder %s160, %s161
    %p172 = scmp.eq.s32.totalorder %s16, 0
    %p173 = por %p171, %p172
    %p174 = scmp.ne.s32.totalorder %s160, %s161
    %p175 = scmp.eq.s32.totalorder %s17, 1
    %p176 = por %p174, %p175
    %p178 = scmp.ne.s32.totalorder %s161, %s177
    %p179 = scmp.eq.s32.totalorder %s17, 0
    %p180 = por %p178, %p179
    %p181 = scmp.le.s32.totalorder 1, %s11
    %p182 = scmp.lt.s32.totalorder %s11, 3
    %p183 = pnand %p181, %p182
    %p184 = pneg %p183
    // Predicated region
    $region9: #{_device_forward.6} parent=5 // pred_check
      _
    $region10: #{_device_forward.6} parent=5 // pred_check_branch
      %186 = sbr.rel (%p183) target = $region12
    $region11: #{_device_forward.6} parent=5 // pred_region
      %s187 = ssub.s32 %s11, 1
      // Predicated region
      $region13: #{_device_forward.6} parent=11 // pred_check
        %p188 = pneg %p124
      $region14: #{_device_forward.6} parent=11 // pred_check_branch
        %190 = sbr.rel (%p188) target = $region16
      $region15: #{_device_forward.6} parent=11 // pred_region
        _
      $region16: #{_device_forward.6} parent=11 // pred_fallthru
        _
      // Predicated region
      $region17: #{_device_forward.6} parent=11 // pred_check
        %p191 = pneg %p145
      $region18: #{_device_forward.6} parent=11 // pred_check_branch
        %193 = sbr.rel (%p191) target = $region20
      $region19: #{_device_forward.6} parent=11 // pred_region
        _
      $region20: #{_device_forward.6} parent=11 // pred_fallthru
        _
    $region12: #{_device_forward.6} parent=5 // pred_fallthru
      _
    %p194 = scmp.lt.s32.totalorder %s11, 2
    // Predicated region
    $region21: #{_device_forward.6} parent=5 // pred_check
      %p195 = pneg %p194
    $region22: #{_device_forward.6} parent=5 // pred_check_branch
      %197 = sbr.rel (%p195) target = $region24
    $region23: #{_device_forward.6} parent=5 // pred_region
      // Predicated region
      $region25: #{_device_forward.6} parent=23 // pred_check
        %p198 = pneg %p45
      $region26: #{_device_forward.6} parent=23 // pred_check_branch
        %200 = sbr.rel (%p198) target = $region28
      $region27: #{_device_forward.6} parent=23 // pred_region
        %p201 = scmp.lt.s32.totalorder %s18, 1
        %s202 = scalar_select %p201, %s18, 1
        %p203 = scmp.lt.s32.totalorder %s19, 0
        %s204 = scalar_select %p203, %s19, 0
        %s205 = smul.addr %s204, 2
        %s206 = smul.addr %s202, 2
        %s207 = sadd.s32 %s205, %s206
        %s208 = smul.addr %s207, 4
        %s209 = scalar_lea.vmem %s0, %s208
      $region28: #{_device_forward.6} parent=23 // pred_fallthru
        _
      // Predicated region
      $region29: #{_device_forward.6} parent=23 // pred_check
        %p210 = pneg %p71
      $region30: #{_device_forward.6} parent=23 // pred_check_branch
        %212 = sbr.rel (%p210) target = $region32
      $region31: #{_device_forward.6} parent=23 // pred_region
        %p213 = scmp.lt.s32.totalorder %s18, 1
        %s214 = scalar_select %p213, %s18, 1
        %s215 = smul.addr %s214, 32
        %s216 = smul.addr %s215, 4
        %s217 = scalar_lea.vmem %s1, %s216
      $region32: #{_device_forward.6} parent=23 // pred_fallthru
        _
      // Predicated region
      $region33: #{_device_forward.6} parent=23 // pred_check
        %p218 = pneg %p97
      $region34: #{_device_forward.6} parent=23 // pred_check_branch
        %220 = sbr.rel (%p218) target = $region36
      $region35: #{_device_forward.6} parent=23 // pred_region
        %p221 = scmp.lt.s32.totalorder %s18, 1
        %s222 = scalar_select %p221, %s18, 1
        %s223 = scalar_lea.vmem %s2, %s222
      $region36: #{_device_forward.6} parent=23 // pred_fallthru
        _
    $region24: #{_device_forward.6} parent=5 // pred_fallthru
      _
    %p224 = scmp.le.s32.totalorder 1, %s11
    %p225 = scmp.lt.s32.totalorder %s11, 3
    %p226 = pnand %p224, %p225
    %p227 = pneg %p226
    // Predicated region
    $region37: #{_device_forward.6} parent=5 // pred_check
      _
    $region38: #{_device_forward.6} parent=5 // pred_check_branch
      %229 = sbr.rel (%p226) target = $region40
    $region39: #{_device_forward.6} parent=5 // pred_region
      %s230 = ssub.s32 %s11, 1
      %p231 = scmp.lt.s32.totalorder %s20, 1
      %s232 = scalar_select %p231, %s20, 1
      %p233 = scmp.lt.s32.totalorder %s21, 0
      %s234 = scalar_select %p233, %s21, 0
      %s235 = smul.addr %s234, 2
      %s236 = smul.addr %s232, 2
      %s237 = sadd.s32 %s235, %s236
      %s238 = smul.addr %s237, 4
      %s239 = scalar_lea.vmem %s0, %s238
      %p240 = pneg %p51
      %p241 = pneg %p48
      %p242 = scmp.lt.s32.totalorder %s20, 1
      %s243 = scalar_select %p242, %s20, 1
      %s244 = smul.addr %s243, 32
      %s245 = smul.addr %s244, 4
      %s246 = scalar_lea.vmem %s1, %s245
      %p247 = pneg %p77
      %p248 = pneg %p74
      %p249 = scmp.lt.s32.totalorder %s20, 1
      %s250 = scalar_select %p249, %s20, 1
      %s251 = scalar_lea.vmem %s2, %s250
      %p252 = pneg %p103
      %p253 = pneg %p100
      %p254 = pneg %p124
      %p255 = pneg %p121
      %p256 = pneg %p145
      %p257 = pneg %p142
      %p258 = pneg %p173
      %p259 = pneg %p170
      %p260 = scmp.lt.s32.totalorder %s20, 1
      %s261 = scalar_select %p260, %s20, 1
      %p262 = scmp.lt.s32.totalorder %s21, 0
      %s263 = scalar_select %p262, %s21, 0
      %s264 = smul.addr %s261, 4
      %s265 = sadd.s32 %s263, %s264
      %s266 = smul.addr %s265, 4
      %s267 = scalar_lea.vmem %s5, %s266
      %p268 = scmp.lt.s32.totalorder %s20, 1
      %s269 = scalar_select %p268, %s20, 1
      %p270 = scmp.lt.s32.totalorder %s21, 0
      %s271 = scalar_select %p270, %s21, 0
      %s272 = smul.addr %s271, 2
      %s273 = smul.addr %s269, 2
      %s274 = sadd.s32 %s272, %s273
      %s275 = smul.addr %s274, 4
      %s276 = scalar_lea.vmem %s0, %s275
      %p277 = scmp.lt.s32.totalorder %s20, 1
      %s278 = scalar_select %p277, %s20, 1
      %s279 = smul.addr %s278, 32
      %s280 = smul.addr %s279, 4
      %s281 = scalar_lea.vmem %s1, %s280
      %p282 = scmp.lt.s32.totalorder %s20, 1
      %s283 = scalar_select %p282, %s20, 1
      %s284 = scalar_lea.vmem %s2, %s283
      %p285 = scmp.lt.s32.totalorder %s20, 1
      %s286 = scalar_select %p285, %s20, 1
      %p287 = scmp.lt.s32.totalorder %s21, 0
      %s288 = scalar_select %p287, %s21, 0
      %s289 = smul.addr %s286, 4
      %s290 = sadd.s32 %s288, %s289
      %s291 = smul.addr %s290, 4
      %s292 = scalar_lea.vmem %s5, %s291
      %v294 = vld [vmem:[%s276] sm:$0xff]
      %v295 = vld [vmem:[%s281] sm:$0xf]
      %v296 = vld [vmem:[%s281 + $0x4] sm:$0xf]
      %v297 = vld [vmem:[%s281 + $0x8] sm:$0xf]
      %v298 = vld [vmem:[%s281 + $0xc] sm:$0xf]
      %v299 = vld [vmem:[%s281 + $0x10] sm:$0xf]
      %v300 = vld [vmem:[%s281 + $0x14] sm:$0xf]
      %v301 = vld [vmem:[%s281 + $0x18] sm:$0xf]
      %v302 = vld [vmem:[%s281 + $0x1c] sm:$0xf]
      %v303 = vld [vmem:[%s281 + $0x20] sm:$0xf]
      %v304 = vld [vmem:[%s281 + $0x24] sm:$0xf]
      %v305 = vld [vmem:[%s281 + $0x28] sm:$0xf]
      %v306 = vld [vmem:[%s281 + $0x2c] sm:$0xf]
      %v307 = vld [vmem:[%s281 + $0x30] sm:$0xf]
      %v308 = vld [vmem:[%s281 + $0x34] sm:$0xf]
      %v309 = vld [vmem:[%s281 + $0x38] sm:$0xf]
      %v310 = vld [vmem:[%s281 + $0x3c] sm:$0xf]
      %v311 = vld [vmem:[%s281 + $0x40] sm:$0xf]
      %v312 = vld [vmem:[%s281 + $0x44] sm:$0xf]
      %v313 = vld [vmem:[%s281 + $0x48] sm:$0xf]
      %v314 = vld [vmem:[%s281 + $0x4c] sm:$0xf]
      %v315 = vld [vmem:[%s281 + $0x50] sm:$0xf]
      %v316 = vld [vmem:[%s281 + $0x54] sm:$0xf]
      %v317 = vld [vmem:[%s281 + $0x58] sm:$0xf]
      %v318 = vld [vmem:[%s281 + $0x5c] sm:$0xf]
      %v319 = vld [vmem:[%s281 + $0x60] sm:$0xf]
      %v320 = vld [vmem:[%s281 + $0x64] sm:$0xf]
      %v321 = vld [vmem:[%s281 + $0x68] sm:$0xf]
      %v322 = vld [vmem:[%s281 + $0x6c] sm:$0xf]
      %v323 = vld [vmem:[%s281 + $0x70] sm:$0xf]
      %v324 = vld [vmem:[%s281 + $0x74] sm:$0xf]
      %v325 = vld [vmem:[%s281 + $0x78] sm:$0xf]
      %v326 = vld [vmem:[%s281 + $0x7c] sm:$0xf]
      %v327 = vld [vmem:[%s284] sm:$0x1]
      %v329 = vlaneseq
      %v330 = vshrl.u32 %v329, 7
      %v331 = vsub.s32 0, %v330
      %v332 = vrot.slane %v327, %v331
      %v335 = vunpack.c.l.b16 %v294
      %v336 = vunpack.c.h.b16 %v294
      %v337 = vpack.c.b16 %v335, %v335
      %v338 = vpack.c.b16 %v336, %v336
      %v373 = vunpack.c.l.b16 %v295
      %v374 = vunpack.c.l.b16 %v296
      %v375 = vunpack.c.l.b16 %v297
      %v376 = vunpack.c.l.b16 %v298
      %v377 = vunpack.c.l.b16 %v299
      %v378 = vunpack.c.l.b16 %v300
      %v379 = vunpack.c.l.b16 %v301
      %v380 = vunpack.c.l.b16 %v302
      %v381 = vunpack.c.l.b16 %v303
      %v382 = vunpack.c.l.b16 %v304
      %v383 = vunpack.c.l.b16 %v305
      %v384 = vunpack.c.l.b16 %v306
      %v385 = vunpack.c.l.b16 %v307
      %v386 = vunpack.c.l.b16 %v308
      %v387 = vunpack.c.l.b16 %v309
      %v388 = vunpack.c.l.b16 %v310
      %v389 = vunpack.c.l.b16 %v311
      %v390 = vunpack.c.l.b16 %v312
      %v391 = vunpack.c.l.b16 %v313
      %v392 = vunpack.c.l.b16 %v314
      %v393 = vunpack.c.l.b16 %v315
      %v394 = vunpack.c.l.b16 %v316
      %v395 = vunpack.c.l.b16 %v317
      %v396 = vunpack.c.l.b16 %v318
      %v397 = vunpack.c.l.b16 %v319
      %v398 = vunpack.c.l.b16 %v320
      %v399 = vunpack.c.l.b16 %v321
      %v400 = vunpack.c.l.b16 %v322
      %v401 = vunpack.c.l.b16 %v323
      %v402 = vunpack.c.l.b16 %v324
      %v403 = vunpack.c.l.b16 %v325
      %v404 = vunpack.c.l.b16 %v326
      %v405 = vpack.c.b16 %v374, %v373
      %v406 = vpack.c.b16 %v376, %v375
      %v407 = vpack.c.b16 %v378, %v377
      %v408 = vpack.c.b16 %v380, %v379
      %v409 = vpack.c.b16 %v382, %v381
      %v410 = vpack.c.b16 %v384, %v383
      %v411 = vpack.c.b16 %v386, %v385
      %v412 = vpack.c.b16 %v388, %v387
      %v413 = vpack.c.b16 %v390, %v389
      %v414 = vpack.c.b16 %v392, %v391
      %v415 = vpack.c.b16 %v394, %v393
      %v416 = vpack.c.b16 %v396, %v395
      %v417 = vpack.c.b16 %v398, %v397
      %v418 = vpack.c.b16 %v400, %v399
      %v419 = vpack.c.b16 %v402, %v401
      %v420 = vpack.c.b16 %v404, %v403
      %437 = vmatprep.subr.bf16.mxu0 0
      %438 = vmatpush1.bf16.msra.mxu0 %v412
      %439 = vmatprep.subr.bf16.mxu0 0
      %440 = vmatpush1.bf16.msra.mxu0 %v411
      %441 = vmatprep.subr.bf16.mxu0 0
      %442 = vmatpush1.bf16.msra.mxu0 %v410
      %443 = vmatprep.subr.bf16.mxu0 0
      %444 = vmatpush1.bf16.msra.mxu0 %v409
      %445 = vmatprep.subr.bf16.mxu0 0
      %446 = vmatpush1.bf16.msra.mxu0 %v408
      %447 = vmatprep.subr.bf16.mxu0 0
      %448 = vmatpush1.bf16.msra.mxu0 %v407
      %449 = vmatprep.subr.bf16.mxu0 0
      %450 = vmatpush1.bf16.msra.mxu0 %v406
      %451 = vmatprep.subr.bf16.mxu0 0
      %452 = vmatpush1.bf16.msra.mxu0 %v405
      %453 = vmatprep.subr.bf16.mxu0 0
      %454 = vmatpush2.bf16.msra.mxu0 %v420
      %455 = vmatprep.subr.bf16.mxu0 0
      %456 = vmatpush2.bf16.msra.mxu0 %v419
      %457 = vmatprep.subr.bf16.mxu0 0
      %458 = vmatpush2.bf16.msra.mxu0 %v418
      %459 = vmatprep.subr.bf16.mxu0 0
      %460 = vmatpush2.bf16.msra.mxu0 %v417
      %461 = vmatprep.subr.bf16.mxu0 0
      %462 = vmatpush2.bf16.msra.mxu0 %v416
      %463 = vmatprep.subr.bf16.mxu0 0
      %464 = vmatpush2.bf16.msra.mxu0 %v415
      %465 = vmatprep.subr.bf16.mxu0 0
      %466 = vmatpush2.bf16.msra.mxu0 %v414
      %467 = vmatprep.subr.bf16.mxu0 0
      %468 = vmatpush2.bf16.msra.mxu0 %v413
      %469 = vmatprep.mubr.bf16.mxu0 %v338
      %470 = vmatmul.mubr.bf16.gmra.mxu0 %v337
      %v471 = vpop.f32.mrf.mxu0
      %v472 = vadd.f32 %v332, %v471
      %v473 = vpop.f32.mrf.mxu0
      %v474 = vpop.f32.mrf.mxu0
      %v475 = vpop.f32.mrf.mxu0
      %476 = vdwg.mxu0
      %v477 = vmax.f32 %v472, 0.0
      %v478 = vpack.c.bf16 %v477, %v477
      %v479 = vld [vmem:[%s3] sm:$0xf]
      %v480 = vld [vmem:[%s3 + $0x4] sm:$0xf]
      %v481 = vld [vmem:[%s3 + $0x8] sm:$0xf]
      %v482 = vld [vmem:[%s3 + $0xc] sm:$0xf]
      %v483 = vld [vmem:[%s3 + $0x10] sm:$0xf]
      %v484 = vld [vmem:[%s3 + $0x14] sm:$0xf]
      %v485 = vld [vmem:[%s3 + $0x18] sm:$0xf]
      %v486 = vld [vmem:[%s3 + $0x1c] sm:$0xf]
      %v487 = vld [vmem:[%s3 + $0x20] sm:$0xf]
      %v488 = vld [vmem:[%s3 + $0x24] sm:$0xf]
      %v489 = vld [vmem:[%s3 + $0x28] sm:$0xf]
      %v490 = vld [vmem:[%s3 + $0x2c] sm:$0xf]
      %v491 = vld [vmem:[%s3 + $0x30] sm:$0xf]
      %v492 = vld [vmem:[%s3 + $0x34] sm:$0xf]
      %v493 = vld [vmem:[%s3 + $0x38] sm:$0xf]
      %v494 = vld [vmem:[%s3 + $0x3c] sm:$0xf]
      %v495 = vld [vmem:[%s4] sm:$0x1]
      %v497 = vlaneseq
      %v498 = vshrl.u32 %v497, 7
      %v499 = vsub.s32 0, %v498
      %v500 = vrot.slane %v495, %v499
      %v518 = vunpack.c.l.b16 %v479
      %v519 = vunpack.c.l.b16 %v480
      %v520 = vunpack.c.l.b16 %v481
      %v521 = vunpack.c.l.b16 %v482
      %v522 = vunpack.c.l.b16 %v483
      %v523 = vunpack.c.l.b16 %v484
      %v524 = vunpack.c.l.b16 %v485
      %v525 = vunpack.c.l.b16 %v486
      %v526 = vunpack.c.l.b16 %v487
      %v527 = vunpack.c.l.b16 %v488
      %v528 = vunpack.c.l.b16 %v489
      %v529 = vunpack.c.l.b16 %v490
      %v530 = vunpack.c.l.b16 %v491
      %v531 = vunpack.c.l.b16 %v492
      %v532 = vunpack.c.l.b16 %v493
      %v533 = vunpack.c.l.b16 %v494
      %v534 = vpack.c.b16 %v519, %v518
      %v535 = vpack.c.b16 %v521, %v520
      %v536 = vpack.c.b16 %v523, %v522
      %v537 = vpack.c.b16 %v525, %v524
      %v538 = vpack.c.b16 %v527, %v526
      %v539 = vpack.c.b16 %v529, %v528
      %v540 = vpack.c.b16 %v531, %v530
      %v541 = vpack.c.b16 %v533, %v532
      %550 = vmatprep.subr.bf16.mxu0 0
      %551 = vmatpush1.bf16.msra.mxu0 %v541
      %552 = vmatprep.subr.bf16.mxu0 0
      %553 = vmatpush1.bf16.msra.mxu0 %v540
      %554 = vmatprep.subr.bf16.mxu0 0
      %555 = vmatpush1.bf16.msra.mxu0 %v539
      %556 = vmatprep.subr.bf16.mxu0 0
      %557 = vmatpush1.bf16.msra.mxu0 %v538
      %558 = vmatprep.subr.bf16.mxu0 0
      %559 = vmatpush1.bf16.msra.mxu0 %v537
      %560 = vmatprep.subr.bf16.mxu0 0
      %561 = vmatpush1.bf16.msra.mxu0 %v536
      %562 = vmatprep.subr.bf16.mxu0 0
      %563 = vmatpush1.bf16.msra.mxu0 %v535
      %564 = vmatprep.subr.bf16.mxu0 0
      %565 = vmatpush1.bf16.msra.mxu0 %v534
      %566 = vmatprep.subr.bf16.mxu0 0
      %567 = vmatpush2.bf16.msra.mxu0 0
      %568 = vmatprep.subr.bf16.mxu0 0
      %569 = vmatpush2.bf16.msra.mxu0 0
      %570 = vmatprep.subr.bf16.mxu0 0
      %571 = vmatpush2.bf16.msra.mxu0 0
      %572 = vmatprep.subr.bf16.mxu0 0
      %573 = vmatpush2.bf16.msra.mxu0 0
      %574 = vmatprep.subr.bf16.mxu0 0
      %575 = vmatpush2.bf16.msra.mxu0 0
      %576 = vmatprep.subr.bf16.mxu0 0
      %577 = vmatpush2.bf16.msra.mxu0 0
      %578 = vmatprep.subr.bf16.mxu0 0
      %579 = vmatpush2.bf16.msra.mxu0 0
      %580 = vmatprep.subr.bf16.mxu0 0
      %581 = vmatpush2.bf16.msra.mxu0 0
      %582 = vmatprep.mubr.bf16.mxu0 0
      %583 = vmatmul.mubr.bf16.gmra.mxu0 %v478
      %v584 = vpop.f32.mrf.mxu0
      %v585 = vadd.f32 %v500, %v584
      %v586 = vpop.f32.mrf.mxu0
      %v587 = vpop.f32.mrf.mxu0
      %v588 = vpop.f32.mrf.mxu0
      %589 = vdwg.mxu0
      %590 = vxpose.xlu0.b32.start [1/16] %v585, 128
      %591 = vxpose.xlu0.b32.cont [2/16] 0.0, 128
      %592 = vxpose.xlu0.b32.cont [3/16] 0.0, 128
      %593 = vxpose.xlu0.b32.cont [4/16] 0.0, 128
      %594 = vxpose.xlu0.b32.cont [5/16] 0.0, 128
      %595 = vxpose.xlu0.b32.cont [6/16] 0.0, 128
      %596 = vxpose.xlu0.b32.cont [7/16] 0.0, 128
      %597 = vxpose.xlu0.b32.cont [8/16] 0.0, 128
      %598 = vxpose.xlu0.b32.cont [9/16] 0.0, 128
      %599 = vxpose.xlu0.b32.cont [10/16] 0.0, 128
      %600 = vxpose.xlu0.b32.cont [11/16] 0.0, 128
      %601 = vxpose.xlu0.b32.cont [12/16] 0.0, 128
      %602 = vxpose.xlu0.b32.cont [13/16] 0.0, 128
      %603 = vxpose.xlu0.b32.cont [14/16] 0.0, 128
      %604 = vxpose.xlu0.b32.cont [15/16] 0.0, 128
      %605 = vxpose.xlu0.b32.end [16/16] 0.0, 128
      %v606 = vpop.trf.xlu0
      %v607 = vpop.trf.xlu0
      %v608 = vpop.trf.xlu0
      %v609 = vpop.trf.xlu0
      %v610 = vpop.trf.xlu0
      %v611 = vpop.trf.xlu0
      %v612 = vpop.trf.xlu0
      %v613 = vpop.trf.xlu0
      %v614 = vpop.trf.xlu0
      %v615 = vpop.trf.xlu0
      %v616 = vpop.trf.xlu0
      %v617 = vpop.trf.xlu0
      %v618 = vpop.trf.xlu0
      %v619 = vpop.trf.xlu0
      %v620 = vpop.trf.xlu0
      %v621 = vpop.trf.xlu0
      %v622 = vpack.c.bf16 %v607, %v606
      %v623 = vpack.c.bf16 %v609, %v608
      %v626 = vunpack.c.l.b16 %v622
      %v627 = vunpack.c.h.b16 %v622
      %v628 = vunpack.c.l.b16 %v623
      %v629 = vunpack.c.h.b16 %v623
      %v630 = vpack.c.b16 %v626, %v626
      %v631 = vpack.c.b16 %v627, %v627
      %v632 = vpack.c.b16 %v628, %v628
      %v633 = vpack.c.b16 %v629, %v629
      %vm638 = vcmask 60416
      %639 = vst.msk [vmem:[%s292] sm:$0xf] %vm638, %v630
      %640 = vst.msk [vmem:[%s292 + $0x4] sm:$0xf] %vm638, %v631
      %641 = vst.msk [vmem:[%s292 + $0x8] sm:$0xf] %vm638, %v632
      %642 = vst.msk [vmem:[%s292 + $0xc] sm:$0xf] %vm638, %v633
      %p643 = scmp.lt.s32.totalorder %s20, 1
      %s644 = scalar_select %p643, %s20, 1
      %p645 = scmp.lt.s32.totalorder %s21, 0
      %s646 = scalar_select %p645, %s21, 0
      %s647 = smul.addr %s644, 4
      %s648 = sadd.s32 %s646, %s647
      %s649 = smul.addr %s648, 4
      %s650 = scalar_lea.vmem %s5, %s649
      // Predicated region
      $region41: #{_device_forward.6} parent=39 // pred_check
        %p651 = pneg %p170
      $region42: #{_device_forward.6} parent=39 // pred_check_branch
        %653 = sbr.rel (%p651) target = $region44
      $region43: #{_device_forward.6} parent=39 // pred_region
        _
      $region44: #{_device_forward.6} parent=39 // pred_fallthru
        _
    $region40: #{_device_forward.6} parent=5 // pred_fallthru
      _
    %p654 = scmp.le.s32.totalorder 2, %s11
    // Predicated region
    $region45: #{_device_forward.6} parent=5 // pred_check
      %p655 = pneg %p654
    $region46: #{_device_forward.6} parent=5 // pred_check_branch
      %657 = sbr.rel (%p655) target = $region48
    $region47: #{_device_forward.6} parent=5 // pred_region
      %s658 = ssub.s32 %s11, 2
      // Predicated region
      $region49: #{_device_forward.6} parent=47 // pred_check
        %p659 = pneg %p176
      $region50: #{_device_forward.6} parent=47 // pred_check_branch
        %661 = sbr.rel (%p659) target = $region52
      $region51: #{_device_forward.6} parent=47 // pred_region
        %p662 = scmp.lt.s32.totalorder %s22, 1
        %s663 = scalar_select %p662, %s22, 1
        %p664 = scmp.lt.s32.totalorder %s23, 0
        %s665 = scalar_select %p664, %s23, 0
        %s666 = smul.addr %s663, 4
        %s667 = sadd.s32 %s665, %s666
        %s668 = smul.addr %s667, 4
        %s669 = scalar_lea.vmem %s5, %s668
      $region52: #{_device_forward.6} parent=47 // pred_fallthru
        _
    $region48: #{_device_forward.6} parent=5 // pred_fallthru
      _
  $region6: #{_device_forward.6} parent=0 // loop_footer
    %s15 = sadd.s32 1, %s11
  $region7: #{_device_forward.6} parent=0 // loop_footer_branch
    %10 = sbr.rel target = $region3
  $region8: #{_device_forward.6} parent=0 // loop_exit
    _

// kernel: tile.29
$region0: #{tile.29}
  %s0 = inlined_call_operand.vmem [shape: f32[2,2,4], index: 0, kind: input, shape index: {}]
  %s1 = inlined_call_operand.vmem [shape: f32[2,8], index: 1, kind: output, shape index: {}]
  $region1: #{tile.29} parent=0
    #allocation0 [shape = 'u8[4096]{0}', space=vmem, size = 0x1000, scoped, tag = 'scoped mem for output reshape']
    #allocation1 [shape = 'u8[8192]{0}', space=vmem, size = 0x2000, scoped, tag = 'scoped mem for input reshape']
    %s3 = sshll.u32 1, 2
    %s4 = ssub.s32 %s3, 1
    %s5 = scalar_lea.vmem %s0, 2
    %v6 = vld [vmem:[%s5] sm:%s4]
    %s7 = scalar_lea.vmem [#allocation1], 8
    %8 = vst [vmem:[%s7] sm:%s4] %v6
    %v9 = vld [vmem:[%s0] sm:%s4]
    %10 = vst [vmem:[#allocation1] sm:%s4] %v9
    %s11 = smov 3
    %v12 = vld [vmem:[#allocation1] ss:$8 sm:%s11]
    %vm13 = vcmask 31744
    %14 = vst.msk [vmem:[#allocation0] sm:$0x3] %vm13, %v12
    %s15 = scalar_lea.vmem [#allocation1], 1
    %s16 = smov 3
    %v17 = vld [vmem:[%s15] ss:$8 sm:%s16]
    %18 = vrot.lane.b32.xlu0 %v17, 4
    %v19 = vpop.permute.xlu0 %18
    %vm20 = vcmask 64544
    %21 = vst.msk [vmem:[#allocation0] sm:$0x3] %vm20, %v19
    %s23 = sshll.u32 1, 2
    %s24 = ssub.s32 %s23, 1
    %v26 = vld [vmem:[#allocation0] sm:%s24]
    %s27 = sshll.u32 1, 2
    %s28 = ssub.s32 %s27, 1
    %29 = vst [vmem:[%s1] sm:%s28] %v26

// kernel: tile.24
$region0: #{tile.24}
  %s0 = inlined_call_operand.vmem [shape: f32[2,2,16], index: 0, kind: input, shape index: {}]
  %s1 = inlined_call_operand.vmem [shape: f32[2,32], index: 1, kind: output, shape index: {}]
  $region1: #{tile.24} parent=0
    #allocation0 [shape = 'u8[4096]{0}', space=vmem, size = 0x1000, scoped, tag = 'scoped mem for output reshape']
    #allocation1 [shape = 'u8[8192]{0}', space=vmem, size = 0x2000, scoped, tag = 'scoped mem for input reshape']
    %s3 = sshll.u32 1, 2
    %s4 = ssub.s32 %s3, 1
    %s5 = scalar_lea.vmem %s0, 2
    %v6 = vld [vmem:[%s5] sm:%s4]
    %s7 = scalar_lea.vmem [#allocation1], 8
    %8 = vst [vmem:[%s7] sm:%s4] %v6
    %v9 = vld [vmem:[%s0] sm:%s4]
    %10 = vst [vmem:[#allocation1] sm:%s4] %v9
    %s11 = smov 3
    %v12 = vld [vmem:[#allocation1] ss:$8 sm:%s11]
    %vm13 = vcmask 130048
    %14 = vst.msk [vmem:[#allocation0] sm:$0x3] %vm13, %v12
    %s15 = scalar_lea.vmem [#allocation1], 1
    %s16 = smov 3
    %v17 = vld [vmem:[%s15] ss:$8 sm:%s16]
    %18 = vrot.lane.b32.xlu0 %v17, 16
    %v19 = vpop.permute.xlu0 %18
    %vm20 = vcmask 261248
    %21 = vst.msk [vmem:[#allocation0] sm:$0x3] %vm20, %v19
    %s23 = sshll.u32 1, 2
    %s24 = ssub.s32 %s23, 1
    %v26 = vld [vmem:[#allocation0] sm:%s24]
    %s27 = sshll.u32 1, 2
    %s28 = ssub.s32 %s27, 1
    %29 = vst [vmem:[%s1] sm:%s28] %v26

// kernel: tile.19
$region0: #{tile.19}
  %s0 = inlined_call_operand.vmem [shape: f32[2,2,64], index: 0, kind: input, shape index: {}]
  %s1 = inlined_call_operand.vmem [shape: f32[2,128], index: 1, kind: output, shape index: {}]
  $region1: #{tile.19} parent=0
    #allocation0 [shape = 'u8[4096]{0}', space=vmem, size = 0x1000, scoped, tag = 'scoped mem for output reshape']
    #allocation1 [shape = 'u8[8192]{0}', space=vmem, size = 0x2000, scoped, tag = 'scoped mem for input reshape']
    %s3 = sshll.u32 1, 2
    %s4 = ssub.s32 %s3, 1
    %s5 = scalar_lea.vmem %s0, 2
    %v6 = vld [vmem:[%s5] sm:%s4]
    %s7 = scalar_lea.vmem [#allocation1], 8
    %8 = vst [vmem:[%s7] sm:%s4] %v6
    %v9 = vld [vmem:[%s0] sm:%s4]
    %10 = vst [vmem:[#allocation1] sm:%s4] %v9
    %s11 = smov 3
    %v12 = vld [vmem:[#allocation1] ss:$8 sm:%s11]
    %vm13 = vcmask 523264
    %14 = vst.msk [vmem:[#allocation0] sm:$0x3] %vm13, %v12
    %s15 = scalar_lea.vmem [#allocation1], 1
    %s16 = smov 3
    %v17 = vld [vmem:[%s15] ss:$8 sm:%s16]
    %18 = vrot.lane.b32.xlu0 %v17, 64
    %v19 = vpop.permute.xlu0 %18
    %vm20 = vcmask 1048064
    %21 = vst.msk [vmem:[#allocation0] sm:$0x3] %vm20, %v19
    %s23 = sshll.u32 1, 2
    %s24 = ssub.s32 %s23, 1
    %v26 = vld [vmem:[#allocation0] sm:%s24]
    %s27 = sshll.u32 1, 2
    %s28 = ssub.s32 %s27, 1
    %29 = vst [vmem:[%s1] sm:%s28] %v26

// kernel: squeeze.24
$region0: #{squeeze.24}
  %s0 = inlined_call_operand.vmem [shape: f32[128], index: 0, kind: input, shape index: {}]
  %s1 = inlined_call_operand.vmem [shape: f32[2,64], index: 1, kind: output, shape index: {}]
  $region1: #{squeeze.24} parent=0
    #allocation0 [shape = 'u8[4096]{0}', space=vmem, size = 0x1000, scoped, tag = 'scoped mem for output reshape']
    #allocation1 [shape = 'u8[4096]{0}', space=vmem, size = 0x1000, scoped, tag = 'scoped mem for input reshape']
    %s3 = sshll.u32 1, 1
    %s4 = ssub.s32 %s3, 1
    %v5 = vld [vmem:[%s0] sm:%s4]
    %6 = vst [vmem:[#allocation1] sm:%s4] %v5
    %v7 = vld [vmem:[#allocation1] sm:$0x1]
    %vm8 = vcmask 523264
    %9 = vst.msk [vmem:[#allocation0] sm:$0x1] %vm8, %v7
    %v10 = vld [vmem:[#allocation1] sm:$0x1]
    %11 = vrot.lane.b32.xlu0 %v10, 64
    %v12 = vpop.permute.xlu0 %11
    %vm13 = vcmask 523264
    %s14 = scalar_lea.vmem [#allocation0], 1
    %15 = vst.msk [vmem:[%s14] sm:$0x1] %vm13, %v12
    %s17 = sshll.u32 1, 2
    %s18 = ssub.s32 %s17, 1
    %v20 = vld [vmem:[#allocation0] sm:%s18]
    %s21 = sshll.u32 1, 2
    %s22 = ssub.s32 %s21, 1
    %23 = vst [vmem:[%s1] sm:%s22] %v20

// kernel: squeeze.27
$region0: #{squeeze.27}
  %s0 = inlined_call_operand.vmem [shape: f32[32], index: 0, kind: input, shape index: {}]
  %s1 = inlined_call_operand.vmem [shape: f32[2,16], index: 1, kind: output, shape index: {}]
  $region1: #{squeeze.27} parent=0
    #allocation0 [shape = 'u8[4096]{0}', space=vmem, size = 0x1000, scoped, tag = 'scoped mem for output reshape']
    #allocation1 [shape = 'u8[4096]{0}', space=vmem, size = 0x1000, scoped, tag = 'scoped mem for input reshape']
    %s3 = sshll.u32 1, 1
    %s4 = ssub.s32 %s3, 1
    %v5 = vld [vmem:[%s0] sm:%s4]
    %6 = vst [vmem:[#allocation1] sm:%s4] %v5
    %v7 = vld [vmem:[#allocation1] sm:$0x1]
    %vm8 = vcmask 130048
    %9 = vst.msk [vmem:[#allocation0] sm:$0x1] %vm8, %v7
    %v10 = vld [vmem:[#allocation1] sm:$0x1]
    %11 = vrot.lane.b32.xlu0 %v10, 112
    %v12 = vpop.permute.xlu0 %11
    %vm13 = vcmask 130048
    %s14 = scalar_lea.vmem [#allocation0], 1
    %15 = vst.msk [vmem:[%s14] sm:$0x1] %vm13, %v12
    %s17 = sshll.u32 1, 2
    %s18 = ssub.s32 %s17, 1
    %v20 = vld [vmem:[#allocation0] sm:%s18]
    %s21 = sshll.u32 1, 2
    %s22 = ssub.s32 %s21, 1
    %23 = vst [vmem:[%s1] sm:%s22] %v20

// kernel: squeeze.30
$region0: #{squeeze.30}
  %s0 = inlined_call_operand.vmem [shape: f32[8], index: 0, kind: input, shape index: {}]
  %s1 = inlined_call_operand.vmem [shape: f32[2,4], index: 1, kind: output, shape index: {}]
  $region1: #{squeeze.30} parent=0
    #allocation0 [shape = 'u8[4096]{0}', space=vmem, size = 0x1000, scoped, tag = 'scoped mem for output reshape']
    #allocation1 [shape = 'u8[4096]{0}', space=vmem, size = 0x1000, scoped, tag = 'scoped mem for input reshape']
    %s3 = sshll.u32 1, 1
    %s4 = ssub.s32 %s3, 1
    %v5 = vld [vmem:[%s0] sm:%s4]
    %6 = vst [vmem:[#allocation1] sm:%s4] %v5
    %v7 = vld [vmem:[#allocation1] sm:$0x1]
    %vm8 = vcmask 31744
    %9 = vst.msk [vmem:[#allocation0] sm:$0x1] %vm8, %v7
    %v10 = vld [vmem:[#allocation1] sm:$0x1]
    %11 = vrot.lane.b32.xlu0 %v10, 124
    %v12 = vpop.permute.xlu0 %11
    %vm13 = vcmask 31744
    %s14 = scalar_lea.vmem [#allocation0], 1
    %15 = vst.msk [vmem:[%s14] sm:$0x1] %vm13, %v12
    %s17 = sshll.u32 1, 2
    %s18 = ssub.s32 %s17, 1
    %v20 = vld [vmem:[#allocation0] sm:%s18]
    %s21 = sshll.u32 1, 2
    %s22 = ssub.s32 %s21, 1
    %23 = vst [vmem:[%s1] sm:%s22] %v20

// kernel: squeeze.25
$region0: #{squeeze.25}
  %s0 = inlined_call_operand.vmem [shape: s32[128], index: 0, kind: input, shape index: {}]
  %s1 = inlined_call_operand.vmem [shape: s32[2,64], index: 1, kind: output, shape index: {}]
  $region1: #{squeeze.25} parent=0
    #allocation0 [shape = 'u8[4096]{0}', space=vmem, size = 0x1000, scoped, tag = 'scoped mem for output reshape']
    #allocation1 [shape = 'u8[4096]{0}', space=vmem, size = 0x1000, scoped, tag = 'scoped mem for input reshape']
    %s3 = sshll.u32 1, 1
    %s4 = ssub.s32 %s3, 1
    %v5 = vld [vmem:[%s0] sm:%s4]
    %6 = vst [vmem:[#allocation1] sm:%s4] %v5
    %v7 = vld [vmem:[#allocation1] sm:$0x1]
    %vm8 = vcmask 523264
    %9 = vst.msk [vmem:[#allocation0] sm:$0x1] %vm8, %v7
    %v10 = vld [vmem:[#allocation1] sm:$0x1]
    %11 = vrot.lane.b32.xlu0 %v10, 64
    %v12 = vpop.permute.xlu0 %11
    %vm13 = vcmask 523264
    %s14 = scalar_lea.vmem [#allocation0], 1
    %15 = vst.msk [vmem:[%s14] sm:$0x1] %vm13, %v12
    %s17 = sshll.u32 1, 2
    %s18 = ssub.s32 %s17, 1
    %v20 = vld [vmem:[#allocation0] sm:%s18]
    %s21 = sshll.u32 1, 2
    %s22 = ssub.s32 %s21, 1
    %23 = vst [vmem:[%s1] sm:%s22] %v20

// kernel: squeeze.28
$region0: #{squeeze.28}
  %s0 = inlined_call_operand.vmem [shape: s32[32], index: 0, kind: input, shape index: {}]
  %s1 = inlined_call_operand.vmem [shape: s32[2,16], index: 1, kind: output, shape index: {}]
  $region1: #{squeeze.28} parent=0
    #allocation0 [shape = 'u8[4096]{0}', space=vmem, size = 0x1000, scoped, tag = 'scoped mem for output reshape']
    #allocation1 [shape = 'u8[4096]{0}', space=vmem, size = 0x1000, scoped, tag = 'scoped mem for input reshape']
    %s3 = sshll.u32 1, 1
    %s4 = ssub.s32 %s3, 1
    %v5 = vld [vmem:[%s0] sm:%s4]
    %6 = vst [vmem:[#allocation1] sm:%s4] %v5
    %v7 = vld [vmem:[#allocation1] sm:$0x1]
    %vm8 = vcmask 130048
    %9 = vst.msk [vmem:[#allocation0] sm:$0x1] %vm8, %v7
    %v10 = vld [vmem:[#allocation1] sm:$0x1]
    %11 = vrot.lane.b32.xlu0 %v10, 112
    %v12 = vpop.permute.xlu0 %11
    %vm13 = vcmask 130048
    %s14 = scalar_lea.vmem [#allocation0], 1
    %15 = vst.msk [vmem:[%s14] sm:$0x1] %vm13, %v12
    %s17 = sshll.u32 1, 2
    %s18 = ssub.s32 %s17, 1
    %v20 = vld [vmem:[#allocation0] sm:%s18]
    %s21 = sshll.u32 1, 2
    %s22 = ssub.s32 %s21, 1
    %23 = vst [vmem:[%s1] sm:%s22] %v20

// kernel: squeeze.31
$region0: #{squeeze.31}
  %s0 = inlined_call_operand.vmem [shape: s32[8], index: 0, kind: input, shape index: {}]
  %s1 = inlined_call_operand.vmem [shape: s32[2,4], index: 1, kind: output, shape index: {}]
  $region1: #{squeeze.31} parent=0
    #allocation0 [shape = 'u8[4096]{0}', space=vmem, size = 0x1000, scoped, tag = 'scoped mem for output reshape']
    #allocation1 [shape = 'u8[4096]{0}', space=vmem, size = 0x1000, scoped, tag = 'scoped mem for input reshape']
    %s3 = sshll.u32 1, 1
    %s4 = ssub.s32 %s3, 1
    %v5 = vld [vmem:[%s0] sm:%s4]
    %6 = vst [vmem:[#allocation1] sm:%s4] %v5
    %v7 = vld [vmem:[#allocation1] sm:$0x1]
    %vm8 = vcmask 31744
    %9 = vst.msk [vmem:[#allocation0] sm:$0x1] %vm8, %v7
    %v10 = vld [vmem:[#allocation1] sm:$0x1]
    %11 = vrot.lane.b32.xlu0 %v10, 124
    %v12 = vpop.permute.xlu0 %11
    %vm13 = vcmask 31744
    %s14 = scalar_lea.vmem [#allocation0], 1
    %15 = vst.msk [vmem:[%s14] sm:$0x1] %vm13, %v12
    %s17 = sshll.u32 1, 2
    %s18 = ssub.s32 %s17, 1
    %v20 = vld [vmem:[#allocation0] sm:%s18]
    %s21 = sshll.u32 1, 2
    %s22 = ssub.s32 %s21, 1
    %23 = vst [vmem:[%s1] sm:%s22] %v20

// kernel: _device_forward.7
$region0: #{_device_forward.7}
  #allocation0 [shape = 'u32[]', space=smem, size = 0x4, offset = 0x4, fixed_abs, tag = 'smem constant byte address 0x4 - core index']
  #allocation1 [shape = 'u32[144,128]{1,0:T(1,128)}', space=vmem, size = 0x12000, scoped, tag = 'internal scratch']
  %s0 = inlined_call_operand.vmem [shape: bf16[2,32,256], index: 0, kind: input, shape index: {}]
  %s1 = inlined_call_operand.vmem [shape: bf16[8,32], index: 1, kind: input, shape index: {}]
  %s2 = inlined_call_operand.vmem [shape: f32[8,1], index: 2, kind: input, shape index: {}]
  %s3 = inlined_call_operand.vmem [shape: bf16[8,32], index: 3, kind: input, shape index: {}]
  %s4 = inlined_call_operand.vmem [shape: f32[8,1], index: 4, kind: input, shape index: {}]
  %s5 = inlined_call_operand.vmem [shape: f32[4,256], index: 5, kind: input, shape index: {}]
  %s6 = inlined_call_operand.vmem [shape: f32[2,256], index: 6, kind: output, shape index: {0}]
  %s7 = inlined_call_operand.vmem [shape: s32[2,256], index: 7, kind: output, shape index: {1}]
  %s8 = inlined_call_operand.vmem [shape: f32[2,4,256], index: 8, kind: output, shape index: {2}]
  %9 = xla_tuple %s6, %s7, %s8
  %s10 = sld [smem:[#allocation0]]
  $region151: #{_device_forward.7} parent=0
    _
  %s12 = ssub.s32 1, %s10
  %s13 = scalar_select 0, %s12, %s10
  $region1: #{_device_forward.7} parent=0
    #allocation2 [shape = 'u8[32768]{0}', space=vmem, size = 0x8000, scoped, tag = 'input window, operand 0']
    #allocation3 [shape = 'u8[8192]{0}', space=vmem, size = 0x2000, scoped, tag = 'output window, operand 2']
    loop: start=0, step=1, limit=4
    $region2: #{_device_forward.7} parent=1 // loop_pre_header
      _
    $region3: #{_device_forward.7} parent=1 // loop_header
      %s15 = sphi 0, %s19
      %p16 = scmp.ge.s32.totalorder %s15, 4
      %s25 = sphi 0, %s27
      %s28 = sphi 0, %s25
      %s29 = sphi 0, %s28
      %s45 = sphi 0, %s29
      %s49 = sphi 0, %s49
      %s51 = sphi 0, %s49
      %s52 = sphi 0, %s51
      %s66 = sphi 0, %s52
      %s70 = sphi 0, %s70
      %s72 = sphi 0, %s70
      %s73 = sphi 0, %s72
      %s87 = sphi 0, %s73
      %s91 = sphi 0, %s91
      %s93 = sphi 0, %s91
      %s94 = sphi 0, %s93
      %s108 = sphi 0, %s94
      %s112 = sphi 0, %s112
      %s114 = sphi 0, %s112
      %s115 = sphi 0, %s114
      %s129 = sphi 0, %s115
      %s135 = sphi 0, %s137
      %s138 = sphi 0, %s135
      %s139 = sphi 0, %s138
      %s155 = sphi 0, %s139
      %s161 = sphi 0, %s163
      %s164 = sphi 0, %s161
      %s165 = sphi 0, %s164
      %s181 = sphi 0, %s165
      %s187 = sphi 0, %s189
      %s190 = sphi 0, %s187
      %s191 = sphi 0, %s190
      %s207 = sphi 0, %s191
      %s213 = sphi 0, %s215
      %s216 = sphi 0, %s213
      %s217 = sphi 0, %s216
      %s233 = sphi 0, %s217
    $region4: #{_device_forward.7} parent=1 // loop_header_branch
      %18 = sbr.rel (%p16) target = $region8
    $region5: #{_device_forward.7} parent=1 // loop_body
      %s20 = ssub.s32 %s15, 1
      %s21 = ssub.s32 %s15, 2
      %s22 = sadd.s32 %s15, 1
      %s23 = ssub.s32 %s15, %s22
      %p24 = scmp.eq.s32.totalorder %s23, 0
      %s26 = sadd.s32 %s25, 1
      %s27 = scalar_select %p24, %s25, %s26
      %p30 = pneg %p24
      %p31 = scmp.eq.s32.totalorder %s15, 1
      %p32 = por %p30, %p31
      %p33 = scmp.ne.s32.totalorder %s25, %s28
      %p34 = scmp.eq.s32.totalorder %s15, 0
      %p35 = por %p33, %p34
      %p36 = scmp.ne.s32.totalorder %s25, %s28
      %p37 = scmp.eq.s32.totalorder %s20, 1
      %p38 = por %p36, %p37
      %p39 = scmp.ne.s32.totalorder %s28, %s29
      %p40 = scmp.eq.s32.totalorder %s20, 0
      %p41 = por %p39, %p40
      %p42 = scmp.ne.s32.totalorder %s28, %s29
      %p43 = scmp.eq.s32.totalorder %s21, 1
      %p44 = por %p42, %p43
      %p46 = scmp.ne.s32.totalorder %s29, %s45
      %p47 = scmp.eq.s32.totalorder %s21, 0
      %p48 = por %p46, %p47
      %s50 = sadd.s32 %s49, 1
      %p53 = scmp.eq.s32.totalorder %s15, 1
      %p54 = scmp.ne.s32.totalorder %s49, %s51
      %p55 = scmp.eq.s32.totalorder %s15, 0
      %p56 = por %p54, %p55
      %p57 = scmp.ne.s32.totalorder %s49, %s51
      %p58 = scmp.eq.s32.totalorder %s20, 1
      %p59 = por %p57, %p58
      %p60 = scmp.ne.s32.totalorder %s51, %s52
      %p61 = scmp.eq.s32.totalorder %s20, 0
      %p62 = por %p60, %p61
      %p63 = scmp.ne.s32.totalorder %s51, %s52
      %p64 = scmp.eq.s32.totalorder %s21, 1
      %p65 = por %p63, %p64
      %p67 = scmp.ne.s32.totalorder %s52, %s66
      %p68 = scmp.eq.s32.totalorder %s21, 0
      %p69 = por %p67, %p68
      %s71 = sadd.s32 %s70, 1
      %p74 = scmp.eq.s32.totalorder %s15, 1
      %p75 = scmp.ne.s32.totalorder %s70, %s72
      %p76 = scmp.eq.s32.totalorder %s15, 0
      %p77 = por %p75, %p76
      %p78 = scmp.ne.s32.totalorder %s70, %s72
      %p79 = scmp.eq.s32.totalorder %s20, 1
      %p80 = por %p78, %p79
      %p81 = scmp.ne.s32.totalorder %s72, %s73
      %p82 = scmp.eq.s32.totalorder %s20, 0
      %p83 = por %p81, %p82
      %p84 = scmp.ne.s32.totalorder %s72, %s73
      %p85 = scmp.eq.s32.totalorder %s21, 1
      %p86 = por %p84, %p85
      %p88 = scmp.ne.s32.totalorder %s73, %s87
      %p89 = scmp.eq.s32.totalorder %s21, 0
      %p90 = por %p88, %p89
      %s92 = sadd.s32 %s91, 1
      %p95 = scmp.eq.s32.totalorder %s15, 1
      %p96 = scmp.ne.s32.totalorder %s91, %s93
      %p97 = scmp.eq.s32.totalorder %s15, 0
      %p98 = por %p96, %p97
      %p99 = scmp.ne.s32.totalorder %s91, %s93
      %p100 = scmp.eq.s32.totalorder %s20, 1
      %p101 = por %p99, %p100
      %p102 = scmp.ne.s32.totalorder %s93, %s94
      %p103 = scmp.eq.s32.totalorder %s20, 0
      %p104 = por %p102, %p103
      %p105 = scmp.ne.s32.totalorder %s93, %s94
      %p106 = scmp.eq.s32.totalorder %s21, 1
      %p107 = por %p105, %p106
      %p109 = scmp.ne.s32.totalorder %s94, %s108
      %p110 = scmp.eq.s32.totalorder %s21, 0
      %p111 = por %p109, %p110
      %s113 = sadd.s32 %s112, 1
      %p116 = scmp.eq.s32.totalorder %s15, 1
      %p117 = scmp.ne.s32.totalorder %s112, %s114
      %p118 = scmp.eq.s32.totalorder %s15, 0
      %p119 = por %p117, %p118
      %p120 = scmp.ne.s32.totalorder %s112, %s114
      %p121 = scmp.eq.s32.totalorder %s20, 1
      %p122 = por %p120, %p121
      %p123 = scmp.ne.s32.totalorder %s114, %s115
      %p124 = scmp.eq.s32.totalorder %s20, 0
      %p125 = por %p123, %p124
      %p126 = scmp.ne.s32.totalorder %s114, %s115
      %p127 = scmp.eq.s32.totalorder %s21, 1
      %p128 = por %p126, %p127
      %p130 = scmp.ne.s32.totalorder %s115, %s129
      %p131 = scmp.eq.s32.totalorder %s21, 0
      %p132 = por %p130, %p131
      %s133 = ssub.s32 %s15, %s22
      %p134 = scmp.eq.s32.totalorder %s133, 0
      %s136 = sadd.s32 %s135, 1
      %s137 = scalar_select %p134, %s135, %s136
      %p140 = pneg %p134
      %p141 = scmp.eq.s32.totalorder %s15, 1
      %p142 = por %p140, %p141
      %p143 = scmp.ne.s32.totalorder %s135, %s138
      %p144 = scmp.eq.s32.totalorder %s15, 0
      %p145 = por %p143, %p144
      %p146 = scmp.ne.s32.totalorder %s135, %s138
      %p147 = scmp.eq.s32.totalorder %s20, 1
      %p148 = por %p146, %p147
      %p149 = scmp.ne.s32.totalorder %s138, %s139
      %p150 = scmp.eq.s32.totalorder %s20, 0
      %p151 = por %p149, %p150
      %p152 = scmp.ne.s32.totalorder %s138, %s139
      %p153 = scmp.eq.s32.totalorder %s21, 1
      %p154 = por %p152, %p153
      %p156 = scmp.ne.s32.totalorder %s139, %s155
      %p157 = scmp.eq.s32.totalorder %s21, 0
      %p158 = por %p156, %p157
      %s159 = ssub.s32 %s15, %s22
      %p160 = scmp.eq.s32.totalorder %s159, 0
      %s162 = sadd.s32 %s161, 1
      %s163 = scalar_select %p160, %s161, %s162
      %p166 = pneg %p160
      %p167 = scmp.eq.s32.totalorder %s15, 1
      %p168 = por %p166, %p167
      %p169 = scmp.ne.s32.totalorder %s161, %s164
      %p170 = scmp.eq.s32.totalorder %s15, 0
      %p171 = por %p169, %p170
      %p172 = scmp.ne.s32.totalorder %s161, %s164
      %p173 = scmp.eq.s32.totalorder %s20, 1
      %p174 = por %p172, %p173
      %p175 = scmp.ne.s32.totalorder %s164, %s165
      %p176 = scmp.eq.s32.totalorder %s20, 0
      %p177 = por %p175, %p176
      %p178 = scmp.ne.s32.totalorder %s164, %s165
      %p179 = scmp.eq.s32.totalorder %s21, 1
      %p180 = por %p178, %p179
      %p182 = scmp.ne.s32.totalorder %s165, %s181
      %p183 = scmp.eq.s32.totalorder %s21, 0
      %p184 = por %p182, %p183
      %s185 = ssub.s32 %s15, %s22
      %p186 = scmp.eq.s32.totalorder %s185, 0
      %s188 = sadd.s32 %s187, 1
      %s189 = scalar_select %p186, %s187, %s188
      %p192 = pneg %p186
      %p193 = scmp.eq.s32.totalorder %s15, 1
      %p194 = por %p192, %p193
      %p195 = scmp.ne.s32.totalorder %s187, %s190
      %p196 = scmp.eq.s32.totalorder %s15, 0
      %p197 = por %p195, %p196
      %p198 = scmp.ne.s32.totalorder %s187, %s190
      %p199 = scmp.eq.s32.totalorder %s20, 1
      %p200 = por %p198, %p199
      %p201 = scmp.ne.s32.totalorder %s190, %s191
      %p202 = scmp.eq.s32.totalorder %s20, 0
      %p203 = por %p201, %p202
      %p204 = scmp.ne.s32.totalorder %s190, %s191
      %p205 = scmp.eq.s32.totalorder %s21, 1
      %p206 = por %p204, %p205
      %p208 = scmp.ne.s32.totalorder %s191, %s207
      %p209 = scmp.eq.s32.totalorder %s21, 0
      %p210 = por %p208, %p209
      %s211 = ssub.s32 %s15, %s22
      %p212 = scmp.eq.s32.totalorder %s211, 0
      %s214 = sadd.s32 %s213, 1
      %s215 = scalar_select %p212, %s213, %s214
      %p218 = pneg %p212
      %p219 = scmp.eq.s32.totalorder %s15, 1
      %p220 = por %p218, %p219
      %p221 = scmp.ne.s32.totalorder %s213, %s216
      %p222 = scmp.eq.s32.totalorder %s15, 0
      %p223 = por %p221, %p222
      %p224 = scmp.ne.s32.totalorder %s213, %s216
      %p225 = scmp.eq.s32.totalorder %s20, 1
      %p226 = por %p224, %p225
      %p227 = scmp.ne.s32.totalorder %s216, %s217
      %p228 = scmp.eq.s32.totalorder %s20, 0
      %p229 = por %p227, %p228
      %p230 = scmp.ne.s32.totalorder %s216, %s217
      %p231 = scmp.eq.s32.totalorder %s21, 1
      %p232 = por %p230, %p231
      %p234 = scmp.ne.s32.totalorder %s217, %s233
      %p235 = scmp.eq.s32.totalorder %s21, 0
      %p236 = por %p234, %p235
      %p237 = scmp.le.s32.totalorder 1, %s15
      %p238 = scmp.lt.s32.totalorder %s15, 3
      %p239 = pnand %p237, %p238
      %p240 = pneg %p239
      // Predicated region
      $region9: #{_device_forward.7} parent=5 // pred_check
        _
      $region10: #{_device_forward.7} parent=5 // pred_check_branch
        %242 = sbr.rel (%p239) target = $region12
      $region11: #{_device_forward.7} parent=5 // pred_region
        %s243 = ssub.s32 %s15, 1
        // Predicated region
        $region13: #{_device_forward.7} parent=11 // pred_check
          %p244 = pneg %p62
        $region14: #{_device_forward.7} parent=11 // pred_check_branch
          %246 = sbr.rel (%p244) target = $region16
        $region15: #{_device_forward.7} parent=11 // pred_region
          _
        $region16: #{_device_forward.7} parent=11 // pred_fallthru
          _
        // Predicated region
        $region17: #{_device_forward.7} parent=11 // pred_check
          %p247 = pneg %p83
        $region18: #{_device_forward.7} parent=11 // pred_check_branch
          %249 = sbr.rel (%p247) target = $region20
        $region19: #{_device_forward.7} parent=11 // pred_region
          _
        $region20: #{_device_forward.7} parent=11 // pred_fallthru
          _
        // Predicated region
        $region21: #{_device_forward.7} parent=11 // pred_check
          %p250 = pneg %p104
        $region22: #{_device_forward.7} parent=11 // pred_check_branch
          %252 = sbr.rel (%p250) target = $region24
        $region23: #{_device_forward.7} parent=11 // pred_region
          _
        $region24: #{_device_forward.7} parent=11 // pred_fallthru
          _
        // Predicated region
        $region25: #{_device_forward.7} parent=11 // pred_check
          %p253 = pneg %p125
        $region26: #{_device_forward.7} parent=11 // pred_check_branch
          %255 = sbr.rel (%p253) target = $region28
        $region27: #{_device_forward.7} parent=11 // pred_region
          _
        $region28: #{_device_forward.7} parent=11 // pred_fallthru
          _
      $region12: #{_device_forward.7} parent=5 // pred_fallthru
        _
      %p256 = scmp.lt.s32.totalorder %s15, 2
      // Predicated region
      $region29: #{_device_forward.7} parent=5 // pred_check
        %p257 = pneg %p256
      $region30: #{_device_forward.7} parent=5 // pred_check_branch
        %259 = sbr.rel (%p257) target = $region32
      $region31: #{_device_forward.7} parent=5 // pred_region
        // Predicated region
        $region33: #{_device_forward.7} parent=31 // pred_check
          %p260 = pneg %p35
        $region34: #{_device_forward.7} parent=31 // pred_check_branch
          %262 = sbr.rel (%p260) target = $region36
        $region35: #{_device_forward.7} parent=31 // pred_region
          %s263 = sand.u32 %s25, 1
          %s264 = sand.u32 %s25, 1
          %s265 = smul.addr %s264, 32
          %s266 = scalar_lea.vmem [#allocation2], %s265
          %s267 = smul.addr %s15, 4
          %s268 = scalar_lea.vmem %s0, %s267
          // Predicated region
          $region37: #{_device_forward.7} parent=35 // pred_check
            _
          $region38: #{_device_forward.7} parent=35 // pred_check_branch
            %270 = sbr.rel (0) target = $region40
          $region39: #{_device_forward.7} parent=35 // pred_region
            // Predicated region
            $region41: #{_device_forward.7} parent=39 // pred_check
              _
            $region42: #{_device_forward.7} parent=39 // pred_check_branch
              %272 = sbr.rel target = $region44
            $region43: #{_device_forward.7} parent=39 // pred_region
              // Predicated region
              $region56: #{_device_forward.7} parent=43 // pred_check
                _
              $region57: #{_device_forward.7} parent=43 // pred_check_branch
                %302 = sbr.rel (0) target = $region59
              $region58: #{_device_forward.7} parent=43 // pred_region
                loop: start=0, step=1, limit=1
                $region60: #{_device_forward.7} parent=58 // loop_pre_header
                  _
                $region61: #{_device_forward.7} parent=58 // loop_header
                  %s304 = sphi 0, %s308
                  %p305 = scmp.ge.s32.totalorder %s304, 1
                  %s309 = sphi %s268, %s268
                  %s310 = sphi %s266, %s266
                $region62: #{_device_forward.7} parent=58 // loop_header_branch
                  %307 = sbr.rel (%p305) target = $region66
                $region63: #{_device_forward.7} parent=58 // loop_body
                  _
                $region64: #{_device_forward.7} parent=58 // loop_footer
                  %s308 = sadd.s32 1, %s304
                $region65: #{_device_forward.7} parent=58 // loop_footer_branch
                  %303 = sbr.rel target = $region61
                $region66: #{_device_forward.7} parent=58 // loop_exit
                  _
                %s312 = ssub.s32 16, 1
                loop: start=0, step=1, limit=1
                $region67: #{_device_forward.7} parent=58 // loop_pre_header
                  _
                $region68: #{_device_forward.7} parent=58 // loop_header
                  %s314 = sphi 0, %s318
                  %p315 = scmp.ge.s32.totalorder %s314, 1
                  %s319 = sphi %s268, %s268
                  %s320 = sphi %s266, %s266
                $region69: #{_device_forward.7} parent=58 // loop_header_branch
                  %317 = sbr.rel (%p315) target = $region73
                $region70: #{_device_forward.7} parent=58 // loop_body
                  %v321 = vld [vmem:[%s319] sm:%s312]
                  %322 = vst [vmem:[%s320] sm:%s312] %v321
                  %v323 = vld [vmem:[%s319 + $0x8] sm:%s312]
                  %324 = vst [vmem:[%s320 + $0x4] sm:%s312] %v323
                  %v325 = vld [vmem:[%s319 + $0x10] sm:%s312]
                  %326 = vst [vmem:[%s320 + $0x8] sm:%s312] %v325
                  %v327 = vld [vmem:[%s319 + $0x18] sm:%s312]
                  %328 = vst [vmem:[%s320 + $0xc] sm:%s312] %v327
                  %v329 = vld [vmem:[%s319 + $0x20] sm:%s312]
                  %330 = vst [vmem:[%s320 + $0x10] sm:%s312] %v329
                  %v331 = vld [vmem:[%s319 + $0x28] sm:%s312]
                  %332 = vst [vmem:[%s320 + $0x14] sm:%s312] %v331
                  %v333 = vld [vmem:[%s319 + $0x30] sm:%s312]
                  %334 = vst [vmem:[%s320 + $0x18] sm:%s312] %v333
                  %v335 = vld [vmem:[%s319 + $0x38] sm:%s312]
                  %336 = vst [vmem:[%s320 + $0x1c] sm:%s312] %v335
                $region71: #{_device_forward.7} parent=58 // loop_footer
                  %s318 = sadd.s32 1, %s314
                $region72: #{_device_forward.7} parent=58 // loop_footer_branch
                  %313 = sbr.rel target = $region68
                $region73: #{_device_forward.7} parent=58 // loop_exit
                  _
              $region59: #{_device_forward.7} parent=43 // pred_fallthru
                _
            $region44: #{_device_forward.7} parent=39 // pred_fallthru
              _
            // Predicated region
            $region45: #{_device_forward.7} parent=39 // pred_check
              _
            $region46: #{_device_forward.7} parent=39 // pred_check_branch
              %274 = sbr.rel (0) target = $region48
            $region47: #{_device_forward.7} parent=39 // pred_region
              %s276 = ssub.s32 16, 1
              loop: start=0, step=1, limit=1
              $region49: #{_device_forward.7} parent=47 // loop_pre_header
                _
              $region50: #{_device_forward.7} parent=47 // loop_header
                %s278 = sphi 0, %s282
                %p279 = scmp.ge.s32.totalorder %s278, 1
                %s283 = sphi %s268, %s268
                %s284 = sphi %s266, %s266
              $region51: #{_device_forward.7} parent=47 // loop_header_branch
                %281 = sbr.rel (%p279) target = $region55
              $region52: #{_device_forward.7} parent=47 // loop_body
                %v285 = vld [vmem:[%s283] sm:%s276]
                %286 = vst [vmem:[%s284] sm:%s276] %v285
                %v287 = vld [vmem:[%s283 + $0x8] sm:%s276]
                %288 = vst [vmem:[%s284 + $0x4] sm:%s276] %v287
                %v289 = vld [vmem:[%s283 + $0x10] sm:%s276]
                %290 = vst [vmem:[%s284 + $0x8] sm:%s276] %v289
                %v291 = vld [vmem:[%s283 + $0x18] sm:%s276]
                %292 = vst [vmem:[%s284 + $0xc] sm:%s276] %v291
                %v293 = vld [vmem:[%s283 + $0x20] sm:%s276]
                %294 = vst [vmem:[%s284 + $0x10] sm:%s276] %v293
                %v295 = vld [vmem:[%s283 + $0x28] sm:%s276]
                %296 = vst [vmem:[%s284 + $0x14] sm:%s276] %v295
                %v297 = vld [vmem:[%s283 + $0x30] sm:%s276]
                %298 = vst [vmem:[%s284 + $0x18] sm:%s276] %v297
                %v299 = vld [vmem:[%s283 + $0x38] sm:%s276]
                %300 = vst [vmem:[%s284 + $0x1c] sm:%s276] %v299
              $region53: #{_device_forward.7} parent=47 // loop_footer
                %s282 = sadd.s32 1, %s278
              $region54: #{_device_forward.7} parent=47 // loop_footer_branch
                %277 = sbr.rel target = $region50
              $region55: #{_device_forward.7} parent=47 // loop_exit
                _
            $region48: #{_device_forward.7} parent=39 // pred_fallthru
              _
          $region40: #{_device_forward.7} parent=35 // pred_fallthru
            _
          %337 = vnop
        $region36: #{_device_forward.7} parent=31 // pred_fallthru
          _
        // Predicated region
        $region74: #{_device_forward.7} parent=31 // pred_check
          %p338 = pneg %p145
        $region75: #{_device_forward.7} parent=31 // pred_check_branch
          %340 = sbr.rel (%p338) target = $region77
        $region76: #{_device_forward.7} parent=31 // pred_region
          %p341 = scmp.lt.s32.totalorder %s15, 1
          %s342 = scalar_select %p341, %s15, 1
          %s343 = smul.addr %s342, 4
          %s344 = scalar_lea.vmem %s5, %s343
        $region77: #{_device_forward.7} parent=31 // pred_fallthru
          _
      $region32: #{_device_forward.7} parent=5 // pred_fallthru
        _
      %p345 = scmp.le.s32.totalorder 1, %s15
      %p346 = scmp.lt.s32.totalorder %s15, 3
      %p347 = pnand %p345, %p346
      %p348 = pneg %p347
      // Predicated region
      $region78: #{_device_forward.7} parent=5 // pred_check
        _
      $region79: #{_device_forward.7} parent=5 // pred_check_branch
        %350 = sbr.rel (%p347) target = $region81
      $region80: #{_device_forward.7} parent=5 // pred_region
        %s351 = ssub.s32 %s15, 1
        %s352 = sand.u32 %s28, 1
        %s353 = sand.u32 %s28, 1
        %s354 = smul.addr %s353, 32
        %s355 = scalar_lea.vmem [#allocation2], %s354
        // Predicated region
        $region82: #{_device_forward.7} parent=80 // pred_check
          %p356 = pneg %p41
        $region83: #{_device_forward.7} parent=80 // pred_check_branch
          %358 = sbr.rel (%p356) target = $region85
        $region84: #{_device_forward.7} parent=80 // pred_region
          _
        $region85: #{_device_forward.7} parent=80 // pred_fallthru
          _
        %s359 = sand.u32 %s28, 1
        %s360 = sand.u32 %s28, 1
        %s361 = smul.addr %s360, 32
        %s362 = scalar_lea.vmem [#allocation2], %s361
        %p363 = pneg %p41
        %p364 = pneg %p38
        %p365 = pneg %p62
        %p366 = pneg %p59
        %p367 = pneg %p83
        %p368 = pneg %p80
        %p369 = pneg %p104
        %p370 = pneg %p101
        %p371 = pneg %p125
        %p372 = pneg %p122
        %p373 = scmp.lt.s32.totalorder %s20, 1
        %s374 = scalar_select %p373, %s20, 1
        %s375 = smul.addr %s374, 4
        %s376 = scalar_lea.vmem %s5, %s375
        %p377 = pneg %p151
        %p378 = pneg %p148
        %p379 = pneg %p177
        %p380 = pneg %p174
        %p381 = scmp.lt.s32.totalorder %s20, 1
        %s382 = scalar_select %p381, %s20, 1
        %s383 = smul.addr %s382, 2
        %s384 = scalar_lea.vmem %s6, %s383
        %p385 = pneg %p203
        %p386 = pneg %p200
        %p387 = scmp.lt.s32.totalorder %s20, 1
        %s388 = scalar_select %p387, %s20, 1
        %s389 = smul.addr %s388, 2
        %s390 = scalar_lea.vmem %s7, %s389
        %p391 = pneg %p229
        %p392 = pneg %p226
        %s393 = sand.u32 %s216, 1
        %s394 = sand.u32 %s216, 1
        %s395 = smul.addr %s394, 8
        %s396 = scalar_lea.vmem [#allocation3], %s395
        %p397 = scmp.lt.s32.totalorder %s20, 1
        %s398 = scalar_select %p397, %s20, 1
        %s399 = smul.addr %s398, 4
        %s400 = scalar_lea.vmem %s5, %s399
        %p401 = scmp.lt.s32.totalorder %s20, 1
        %s402 = scalar_select %p401, %s20, 1
        %s403 = smul.addr %s402, 2
        %s404 = scalar_lea.vmem %s6, %s403
        %p405 = scmp.lt.s32.totalorder %s20, 1
        %s406 = scalar_select %p405, %s20, 1
        %s407 = smul.addr %s406, 2
        %s408 = scalar_lea.vmem %s7, %s407
        %v410 = vld [vmem:[%s355] sm:$0xf]
        %v411 = vld [vmem:[%s355 + $0x4] sm:$0xf]
        %v412 = vld [vmem:[%s355 + $0x8] sm:$0xf]
        %v413 = vld [vmem:[%s355 + $0xc] sm:$0xf]
        %v414 = vunpack.c.l.bf16 %v410
        %v415 = vunpack.c.l.bf16 %v411
        %v416 = vunpack.c.l.bf16 %v412
        %v417 = vunpack.c.l.bf16 %v413
        %s418 = scalar_lea.vmem %s355, 16 [#allocation2]
        %v419 = vld [vmem:[%s418] sm:$0xf]
        %v420 = vld [vmem:[%s418 + $0x4] sm:$0xf]
        %v421 = vld [vmem:[%s418 + $0x8] sm:$0xf]
        %v422 = vld [vmem:[%s418 + $0xc] sm:$0xf]
        %v423 = vunpack.c.l.bf16 %v419
        %v424 = vunpack.c.l.bf16 %v420
        %v425 = vunpack.c.l.bf16 %v421
        %v426 = vunpack.c.l.bf16 %v422
        %v427 = vmul.f32 %v423, 0.5
        %v428 = vmul.f32 %v424, 0.5
        %v429 = vmul.f32 %v425, 0.5
        %v430 = vmul.f32 %v426, 0.5
        %v431 = vadd.f32 %v414, %v427
        %v432 = vadd.f32 %v415, %v428
        %v433 = vadd.f32 %v416, %v429
        %v434 = vadd.f32 %v417, %v430
        %v435 = vmax.f32 %v431, 0.0
        %v436 = vmax.f32 %v432, 0.0
        %v437 = vmax.f32 %v433, 0.0
        %v438 = vmax.f32 %v434, 0.0
        %v439 = vpack.c.bf16 %v436, %v435
        %v440 = vpack.c.bf16 %v438, %v437
        %v441 = vmul.f32 %v414, 0.5
        %v442 = vmul.f32 %v415, 0.5
        %v443 = vmul.f32 %v416, 0.5
        %v444 = vmul.f32 %v417, 0.5
        %v445 = vadd.f32 %v423, %v441
        %v446 = vadd.f32 %v424, %v442
        %v447 = vadd.f32 %v425, %v443
        %v448 = vadd.f32 %v426, %v444
        %v449 = vmax.f32 %v445, 0.0
        %v450 = vmax.f32 %v446, 0.0
        %v451 = vmax.f32 %v447, 0.0
        %v452 = vmax.f32 %v448, 0.0
        %v453 = vpack.c.bf16 %v450, %v449
        %v454 = vpack.c.bf16 %v452, %v451
        %v455 = vld [vmem:[%s1] sm:$0xf]
        %v456 = vld [vmem:[%s2] sm:$0xff]
        %458 = vset.pattern.permute.xlu0 0
        %459 = vperm.xlu0 %458, %v456
        %v460 = vpop.permute.xlu0 %459
        %vm462 = vcmask 261120
        %v464 = vsel %vm462, %v455, 0
        %466 = vmatprep.subr.bf16.mxu0 0
        %467 = vmatpush1.bf16.msra.mxu0 0
        %468 = vmatprep.subr.bf16.mxu0 0
        %469 = vmatpush1.bf16.msra.mxu0 0
        %470 = vmatprep.subr.bf16.mxu0 0
        %471 = vmatpush1.bf16.msra.mxu0 0
        %472 = vmatprep.subr.bf16.mxu0 0
        %473 = vmatpush1.bf16.msra.mxu0 0
        %474 = vmatprep.subr.bf16.mxu0 0
        %475 = vmatpush1.bf16.msra.mxu0 0
        %476 = vmatprep.subr.bf16.mxu0 0
        %477 = vmatpush1.bf16.msra.mxu0 0
        %478 = vmatprep.subr.bf16.mxu0 0
        %479 = vmatpush1.bf16.msra.mxu0 %v440
        %480 = vmatprep.subr.bf16.mxu0 0
        %481 = vmatpush1.bf16.msra.mxu0 %v439
        %482 = vmatprep.subr.bf16.mxu0 0
        %483 = vmatpush2.bf16.msra.mxu0 0
        %484 = vmatprep.subr.bf16.mxu0 0
        %485 = vmatpush2.bf16.msra.mxu0 0
        %486 = vmatprep.subr.bf16.mxu0 0
        %487 = vmatpush2.bf16.msra.mxu0 0
        %488 = vmatprep.subr.bf16.mxu0 0
        %489 = vmatpush2.bf16.msra.mxu0 0
        %490 = vmatprep.subr.bf16.mxu0 0
        %491 = vmatpush2.bf16.msra.mxu0 0
        %492 = vmatprep.subr.bf16.mxu0 0
        %493 = vmatpush2.bf16.msra.mxu0 0
        %494 = vmatprep.subr.bf16.mxu0 0
        %495 = vmatpush2.bf16.msra.mxu0 0
        %496 = vmatprep.subr.bf16.mxu0 0
        %497 = vmatpush2.bf16.msra.mxu0 0
        %498 = vmatprep.mubr.bf16.mxu0 0
        %499 = vmatmul.mubr.bf16.gmra.mxu0 %v464
        %v500 = vpop.f32.mrf.mxu0
        %v501 = vadd.f32 %v460, %v500
        %v502 = vpop.f32.mrf.mxu0
        %v503 = vpop.f32.mrf.mxu0
        %v504 = vpop.f32.mrf.mxu0
        %505 = vdwg.mxu0
        %v506 = vld [vmem:[%s3] sm:$0xf]
        %v507 = vld [vmem:[%s4] sm:$0xff]
        %509 = vset.pattern.permute.xlu0 0
        %510 = vperm.xlu0 %509, %v507
        %v511 = vpop.permute.xlu0 %510
        %v514 = vsel %vm462, %v506, 0
        %516 = vmatprep.subr.bf16.mxu0 0
        %517 = vmatpush1.bf16.msra.mxu0 0
        %518 = vmatprep.subr.bf16.mxu0 0
        %519 = vmatpush1.bf16.msra.mxu0 0
        %520 = vmatprep.subr.bf16.mxu0 0
        %521 = vmatpush1.bf16.msra.mxu0 0
        %522 = vmatprep.subr.bf16.mxu0 0
        %523 = vmatpush1.bf16.msra.mxu0 0
        %524 = vmatprep.subr.bf16.mxu0 0
        %525 = vmatpush1.bf16.msra.mxu0 0
        %526 = vmatprep.subr.bf16.mxu0 0
        %527 = vmatpush1.bf16.msra.mxu0 0
        %528 = vmatprep.subr.bf16.mxu0 0
        %529 = vmatpush1.bf16.msra.mxu0 %v454
        %530 = vmatprep.subr.bf16.mxu0 0
        %531 = vmatpush1.bf16.msra.mxu0 %v453
        %532 = vmatprep.subr.bf16.mxu0 0
        %533 = vmatpush2.bf16.msra.mxu0 0
        %534 = vmatprep.subr.bf16.mxu0 0
        %535 = vmatpush2.bf16.msra.mxu0 0
        %536 = vmatprep.subr.bf16.mxu0 0
        %537 = vmatpush2.bf16.msra.mxu0 0
        %538 = vmatprep.subr.bf16.mxu0 0
        %539 = vmatpush2.bf16.msra.mxu0 0
        %540 = vmatprep.subr.bf16.mxu0 0
        %541 = vmatpush2.bf16.msra.mxu0 0
        %542 = vmatprep.subr.bf16.mxu0 0
        %543 = vmatpush2.bf16.msra.mxu0 0
        %544 = vmatprep.subr.bf16.mxu0 0
        %545 = vmatpush2.bf16.msra.mxu0 0
        %546 = vmatprep.subr.bf16.mxu0 0
        %547 = vmatpush2.bf16.msra.mxu0 0
        %548 = vmatprep.mubr.bf16.mxu0 0
        %549 = vmatmul.mubr.bf16.gmra.mxu0 %v514
        %v550 = vpop.f32.mrf.mxu0
        %v551 = vadd.f32 %v511, %v550
        %v552 = vpop.f32.mrf.mxu0
        %v553 = vpop.f32.mrf.mxu0
        %v554 = vpop.f32.mrf.mxu0
        %555 = vdwg.mxu0
        %v556 = vld [vmem:[%s400] sm:$0xf]
        %v557 = vlaneseq
        %v558 = vshrl.u32 %v557, 7
        %v559 = vsub.s32 2, %v558
        %v560 = vrot.slane %v556, %v559
        %v561 = vmul.f32 %v560, %v501
        %v562 = vmul.f32 %v561, 1.442695
        %v563 = vpow.pop %v562
        %v565 = vrot.slane %v501, 7
        %vm567 = vcmp.gt.f32.partialorder %v501, %v565
        %v568 = vsel %vm567, 1, 0
        %v569 = vrot.slane %v501, 1
        %v571 = vmax.f32 %v501, %v569
        %v573 = vrot.slane %v571, 6
        %vm575 = vcmp.gt.f32.partialorder %v501, %v573
        %v576 = vrot.slane %v568, 7
        %v577 = vsel %vm575, 2, %v576
        %v578 = vrot.slane %v501, 2
        %v580 = vmax.f32 %v571, %v578
        %v581 = vxor.u32 %v580, 2147483648
        %v582 = vmul.f32 %v581, 1.442695
        %v583 = vpow.pop %v582
        %v584 = vadd.f32 %v583, 1.0
        %v585 = vrcp.pop %v584
        %v586 = vmul.f32 1.0, %v585
        %v587 = vxor.u32 %v501, 2147483648
        %v588 = vmul.f32 %v587, 1.442695
        %v589 = vpow.pop %v588
        %v590 = vadd.f32 %v589, 1.0
        %v591 = vrcp.pop %v590
        %v592 = vmul.f32 1.0, %v591
        %v594 = vrot.slane %v592, 3
        %v596 = vmul.f32 %v586, %v594
        %v597 = vrsqrt.pop %v596
        %v598 = vmul.f32 %v596, %v597
        %vm599 = vcmp.eq.f32.partialorder %v596, inf
        %v600 = vsel %vm599, %v596, %v598
        %vm601 = vcmp.eq.f32.partialorder %v596, 0.0
        %v602 = vand.u32 %v596, 2147483648
        %v603 = vsel %vm601, %v602, %v600
        %v605 = vrot.slane %v556, 3
        %v607 = vmul.f32 %v603, %v605
        %v608 = vadd.s32 %v577, 1
        %v610 = vrot.slane %v563, 4
        %v612 = vsub.f32 %v556, %v610
        %v613 = vrot.slane %v563, 6
        %v615 = vadd.f32 %v556, %v613
        %v617 = vrot.slane %v615, 6
        %vm619 = vcmask 1040384
        %vm620 = vcmask 1041408
        %v621 = vsel %vm620, %v612, %v617
        %vm622 = vcmask 1042432
        %v623 = vsel %vm622, %v621, %v617
        %v624 = vmul.f32 %v560, %v551
        %v625 = vmul.f32 %v624, 1.442695
        %v626 = vpow.pop %v625
        %v628 = vrot.slane %v551, 7
        %vm630 = vcmp.gt.f32.partialorder %v551, %v628
        %v631 = vsel %vm630, 1, 0
        %v632 = vrot.slane %v551, 1
        %v634 = vmax.f32 %v551, %v632
        %v636 = vrot.slane %v634, 6
        %vm638 = vcmp.gt.f32.partialorder %v551, %v636
        %v639 = vrot.slane %v631, 7
        %v640 = vsel %vm638, 2, %v639
        %v641 = vrot.slane %v551, 2
        %v643 = vmax.f32 %v634, %v641
        %v644 = vxor.u32 %v643, 2147483648
        %v645 = vmul.f32 %v644, 1.442695
        %v646 = vpow.pop %v645
        %v647 = vadd.f32 %v646, 1.0
        %v648 = vrcp.pop %v647
        %v649 = vmul.f32 1.0, %v648
        %v650 = vxor.u32 %v551, 2147483648
        %v651 = vmul.f32 %v650, 1.442695
        %v652 = vpow.pop %v651
        %v653 = vadd.f32 %v652, 1.0
        %v654 = vrcp.pop %v653
        %v655 = vmul.f32 1.0, %v654
        %v657 = vrot.slane %v655, 3
        %v659 = vmul.f32 %v649, %v657
        %v660 = vrsqrt.pop %v659
        %v661 = vmul.f32 %v659, %v660
        %vm662 = vcmp.eq.f32.partialorder %v659, inf
        %v663 = vsel %vm662, %v659, %v661
        %vm664 = vcmp.eq.f32.partialorder %v659, 0.0
        %v665 = vand.u32 %v659, 2147483648
        %v666 = vsel %vm664, %v665, %v663
        %v667 = vmul.f32 %v666, %v605
        %v668 = vadd.s32 %v640, 1
        %v670 = vrot.slane %v626, 4
        %v672 = vsub.f32 %v556, %v670
        %v673 = vrot.slane %v626, 6
        %v675 = vadd.f32 %v556, %v673
        %v677 = vrot.slane %v675, 6
        %v679 = vsel %vm620, %v672, %v677
        %v680 = vsel %vm622, %v679, %v677
        %v682 = vrot.slane %v667, 7
        %v684 = vsel %vm619, %v607, %v682
        %685 = vst [vmem:[%s404] sm:$0x3] %v684
        %v686 = vrot.slane %v608, 2
        %v687 = vrot.slane %v668, 1
        %v688 = vsel %vm619, %v686, %v687
        %689 = vst [vmem:[%s408] sm:$0x3] %v688
        %690 = vst [vmem:[%s396] sm:$0xf] %v623
        %691 = vst [vmem:[%s396 + $0x4] sm:$0xf] %v680
        %p692 = scmp.lt.s32.totalorder %s20, 1
        %s693 = scalar_select %p692, %s20, 1
        %s694 = smul.addr %s693, 2
        %s695 = scalar_lea.vmem %s6, %s694
        %p696 = scmp.lt.s32.totalorder %s20, 1
        %s697 = scalar_select %p696, %s20, 1
        %s698 = smul.addr %s697, 2
        %s699 = scalar_lea.vmem %s7, %s698
        %s700 = sand.u32 %s216, 1
        %s701 = sand.u32 %s216, 1
        %s702 = smul.addr %s701, 8
        %s703 = scalar_lea.vmem [#allocation3], %s702
        // Predicated region
        $region86: #{_device_forward.7} parent=80 // pred_check
          %p704 = pneg %p174
        $region87: #{_device_forward.7} parent=80 // pred_check_branch
          %706 = sbr.rel (%p704) target = $region89
        $region88: #{_device_forward.7} parent=80 // pred_region
          _
        $region89: #{_device_forward.7} parent=80 // pred_fallthru
          _
        // Predicated region
        $region90: #{_device_forward.7} parent=80 // pred_check
          %p707 = pneg %p200
        $region91: #{_device_forward.7} parent=80 // pred_check_branch
          %709 = sbr.rel (%p707) target = $region93
        $region92: #{_device_forward.7} parent=80 // pred_region
          _
        $region93: #{_device_forward.7} parent=80 // pred_fallthru
          _
        // Predicated region
        $region94: #{_device_forward.7} parent=80 // pred_check
          %p710 = pneg %p226
        $region95: #{_device_forward.7} parent=80 // pred_check_branch
          %712 = sbr.rel (%p710) target = $region97
        $region96: #{_device_forward.7} parent=80 // pred_region
          %s713 = smul.addr %s20, 4
          %s714 = scalar_lea.vmem %s8, %s713
          // Predicated region
          $region98: #{_device_forward.7} parent=96 // pred_check
            _
          $region99: #{_device_forward.7} parent=96 // pred_check_branch
            %716 = sbr.rel (0) target = $region101
          $region100: #{_device_forward.7} parent=96 // pred_region
            // Predicated region
            $region102: #{_device_forward.7} parent=100 // pred_check
              _
            $region103: #{_device_forward.7} parent=100 // pred_check_branch
              %718 = sbr.rel target = $region105
            $region104: #{_device_forward.7} parent=100 // pred_region
              // Predicated region
              $region117: #{_device_forward.7} parent=104 // pred_check
                _
              $region118: #{_device_forward.7} parent=104 // pred_check_branch
                %736 = sbr.rel (0) target = $region120
              $region119: #{_device_forward.7} parent=104 // pred_region
                loop: start=0, step=1, limit=1
                $region121: #{_device_forward.7} parent=119 // loop_pre_header
                  _
                $region122: #{_device_forward.7} parent=119 // loop_header
                  %s738 = sphi 0, %s742
                  %p739 = scmp.ge.s32.totalorder %s738, 1
                  %s743 = sphi %s703, %s703
                  %s744 = sphi %s714, %s714
                $region123: #{_device_forward.7} parent=119 // loop_header_branch
                  %741 = sbr.rel (%p739) target = $region127
                $region124: #{_device_forward.7} parent=119 // loop_body
                  _
                $region125: #{_device_forward.7} parent=119 // loop_footer
                  %s742 = sadd.s32 1, %s738
                $region126: #{_device_forward.7} parent=119 // loop_footer_branch
                  %737 = sbr.rel target = $region122
                $region127: #{_device_forward.7} parent=119 // loop_exit
                  _
                %s746 = ssub.s32 16, 1
                loop: start=0, step=1, limit=1
                $region128: #{_device_forward.7} parent=119 // loop_pre_header
                  _
                $region129: #{_device_forward.7} parent=119 // loop_header
                  %s748 = sphi 0, %s752
                  %p749 = scmp.ge.s32.totalorder %s748, 1
                  %s753 = sphi %s703, %s703
                  %s754 = sphi %s714, %s714
                $region130: #{_device_forward.7} parent=119 // loop_header_branch
                  %751 = sbr.rel (%p749) target = $region134
                $region131: #{_device_forward.7} parent=119 // loop_body
                  %v755 = vld [vmem:[%s753] sm:%s746]
                  %756 = vst [vmem:[%s754] sm:%s746] %v755
                  %v757 = vld [vmem:[%s753 + $0x4] sm:%s746]
                  %758 = vst [vmem:[%s754 + $0x8] sm:%s746] %v757
                $region132: #{_device_forward.7} parent=119 // loop_footer
                  %s752 = sadd.s32 1, %s748
                $region133: #{_device_forward.7} parent=119 // loop_footer_branch
                  %747 = sbr.rel target = $region129
                $region134: #{_device_forward.7} parent=119 // loop_exit
                  _
              $region120: #{_device_forward.7} parent=104 // pred_fallthru
                _
            $region105: #{_device_forward.7} parent=100 // pred_fallthru
              _
            // Predicated region
            $region106: #{_device_forward.7} parent=100 // pred_check
              _
            $region107: #{_device_forward.7} parent=100 // pred_check_branch
              %720 = sbr.rel (0) target = $region109
            $region108: #{_device_forward.7} parent=100 // pred_region
              %s722 = ssub.s32 16, 1
              loop: start=0, step=1, limit=1
              $region110: #{_device_forward.7} parent=108 // loop_pre_header
                _
              $region111: #{_device_forward.7} parent=108 // loop_header
                %s724 = sphi 0, %s728
                %p725 = scmp.ge.s32.totalorder %s724, 1
                %s729 = sphi %s703, %s703
                %s730 = sphi %s714, %s714
              $region112: #{_device_forward.7} parent=108 // loop_header_branch
                %727 = sbr.rel (%p725) target = $region116
              $region113: #{_device_forward.7} parent=108 // loop_body
                %v731 = vld [vmem:[%s729] sm:%s722]
                %732 = vst [vmem:[%s730] sm:%s722] %v731
                %v733 = vld [vmem:[%s729 + $0x4] sm:%s722]
                %734 = vst [vmem:[%s730 + $0x8] sm:%s722] %v733
              $region114: #{_device_forward.7} parent=108 // loop_footer
                %s728 = sadd.s32 1, %s724
              $region115: #{_device_forward.7} parent=108 // loop_footer_branch
                %723 = sbr.rel target = $region111
              $region116: #{_device_forward.7} parent=108 // loop_exit
                _
            $region109: #{_device_forward.7} parent=100 // pred_fallthru
              _
          $region101: #{_device_forward.7} parent=96 // pred_fallthru
            _
          %759 = vnop
        $region97: #{_device_forward.7} parent=80 // pred_fallthru
          _
      $region81: #{_device_forward.7} parent=5 // pred_fallthru
        _
      %p760 = scmp.le.s32.totalorder 2, %s15
      // Predicated region
      $region135: #{_device_forward.7} parent=5 // pred_check
        %p761 = pneg %p760
      $region136: #{_device_forward.7} parent=5 // pred_check_branch
        %763 = sbr.rel (%p761) target = $region138
      $region137: #{_device_forward.7} parent=5 // pred_region
        %s764 = ssub.s32 %s15, 2
        // Predicated region
        $region139: #{_device_forward.7} parent=137 // pred_check
          %p765 = pneg %p180
        $region140: #{_device_forward.7} parent=137 // pred_check_branch
          %767 = sbr.rel (%p765) target = $region142
        $region141: #{_device_forward.7} parent=137 // pred_region
          %p768 = scmp.lt.s32.totalorder %s21, 1
          %s769 = scalar_select %p768, %s21, 1
          %s770 = smul.addr %s769, 2
          %s771 = scalar_lea.vmem %s6, %s770
        $region142: #{_device_forward.7} parent=137 // pred_fallthru
          _
        // Predicated region
        $region143: #{_device_forward.7} parent=137 // pred_check
          %p772 = pneg %p206
        $region144: #{_device_forward.7} parent=137 // pred_check_branch
          %774 = sbr.rel (%p772) target = $region146
        $region145: #{_device_forward.7} parent=137 // pred_region
          %p775 = scmp.lt.s32.totalorder %s21, 1
          %s776 = scalar_select %p775, %s21, 1
          %s777 = smul.addr %s776, 2
          %s778 = scalar_lea.vmem %s7, %s777
        $region146: #{_device_forward.7} parent=137 // pred_fallthru
          _
        // Predicated region
        $region147: #{_device_forward.7} parent=137 // pred_check
          %p779 = pneg %p232
        $region148: #{_device_forward.7} parent=137 // pred_check_branch
          %781 = sbr.rel (%p779) target = $region150
        $region149: #{_device_forward.7} parent=137 // pred_region
          %s782 = sand.u32 %s217, 1
          %s783 = sand.u32 %s217, 1
          %s784 = smul.addr %s783, 8
          %s785 = scalar_lea.vmem [#allocation3], %s784
        $region150: #{_device_forward.7} parent=137 // pred_fallthru
          _
      $region138: #{_device_forward.7} parent=5 // pred_fallthru
        _
    $region6: #{_device_forward.7} parent=1 // loop_footer
      %s19 = sadd.s32 1, %s15
    $region7: #{_device_forward.7} parent=1 // loop_footer_branch
      %14 = sbr.rel target = $region3
    $region8: #{_device_forward.7} parent=1 // loop_exit
      _

// kernel: squeeze.26
$region0: #{squeeze.26}
  %s0 = inlined_call_operand.vmem [shape: f32[1,4,128], index: 0, kind: input, shape index: {}]
  %s1 = inlined_call_operand.vmem [shape: f32[4,2,64], index: 1, kind: output, shape index: {}]
  $region1: #{squeeze.26} parent=0
    #allocation0 [shape = 'u8[16384]{0}', space=vmem, size = 0x4000, scoped, tag = 'scoped mem for output reshape']
    #allocation1 [shape = 'u8[4096]{0}', space=vmem, size = 0x1000, scoped, tag = 'scoped mem for input reshape']
    %s3 = sshll.u32 1, 4
    %s4 = ssub.s32 %s3, 1
    %v5 = vld [vmem:[%s0] sm:%s4]
    %6 = vst [vmem:[#allocation1] sm:%s4] %v5
    %v7 = vld [vmem:[#allocation1] sm:$0xf]
    %vm8 = vcmask 523264
    %9 = vst.msk [vmem:[#allocation0] ss:$8 sm:$0xf] %vm8, %v7
    %v10 = vld [vmem:[#allocation1] sm:$0xf]
    %11 = vrot.lane.b32.xlu0 %v10, 64
    %v12 = vpop.permute.xlu0 %11
    %vm13 = vcmask 523264
    %s14 = scalar_lea.vmem [#allocation0], 1
    %15 = vst.msk [vmem:[%s14] ss:$8 sm:$0xf] %vm13, %v12
    %s17 = sshll.u32 1, 2
    %s18 = ssub.s32 %s17, 1
    %v20 = vld [vmem:[#allocation0] sm:%s18]
    %s21 = sshll.u32 1, 2
    %s22 = ssub.s32 %s21, 1
    %23 = vst [vmem:[%s1] sm:%s22] %v20
    %s24 = scalar_lea.vmem [#allocation0], 8
    %v25 = vld [vmem:[%s24] sm:%s18]
    %s26 = sshll.u32 1, 2
    %s27 = ssub.s32 %s26, 1
    %s28 = scalar_lea.vmem %s1, 2
    %29 = vst [vmem:[%s28] sm:%s27] %v25
    %s30 = scalar_lea.vmem [#allocation0], 16
    %v31 = vld [vmem:[%s30] sm:%s18]
    %s32 = sshll.u32 1, 2
    %s33 = ssub.s32 %s32, 1
    %s34 = smul.addr 2, 2
    %s35 = scalar_lea.vmem %s1, %s34
    %36 = vst [vmem:[%s35] sm:%s33] %v31
    %s37 = scalar_lea.vmem [#allocation0], 24
    %v38 = vld [vmem:[%s37] sm:%s18]
    %s39 = sshll.u32 1, 2
    %s40 = ssub.s32 %s39, 1
    %s41 = smul.addr 2, 3
    %s42 = scalar_lea.vmem %s1, %s41
    %43 = vst [vmem:[%s42] sm:%s40] %v38

// kernel: squeeze.29
$region0: #{squeeze.29}
  %s0 = inlined_call_operand.vmem [shape: f32[1,4,32], index: 0, kind: input, shape index: {}]
  %s1 = inlined_call_operand.vmem [shape: f32[4,2,16], index: 1, kind: output, shape index: {}]
  $region1: #{squeeze.29} parent=0
    #allocation0 [shape = 'u8[16384]{0}', space=vmem, size = 0x4000, scoped, tag = 'scoped mem for output reshape']
    #allocation1 [shape = 'u8[4096]{0}', space=vmem, size = 0x1000, scoped, tag = 'scoped mem for input reshape']
    %s3 = sshll.u32 1, 4
    %s4 = ssub.s32 %s3, 1
    %v5 = vld [vmem:[%s0] sm:%s4]
    %6 = vst [vmem:[#allocation1] sm:%s4] %v5
    %v7 = vld [vmem:[#allocation1] sm:$0xf]
    %vm8 = vcmask 130048
    %9 = vst.msk [vmem:[#allocation0] ss:$8 sm:$0xf] %vm8, %v7
    %v10 = vld [vmem:[#allocation1] sm:$0xf]
    %11 = vrot.lane.b32.xlu0 %v10, 112
    %v12 = vpop.permute.xlu0 %11
    %vm13 = vcmask 130048
    %s14 = scalar_lea.vmem [#allocation0], 1
    %15 = vst.msk [vmem:[%s14] ss:$8 sm:$0xf] %vm13, %v12
    %s17 = sshll.u32 1, 2
    %s18 = ssub.s32 %s17, 1
    %v20 = vld [vmem:[#allocation0] sm:%s18]
    %s21 = sshll.u32 1, 2
    %s22 = ssub.s32 %s21, 1
    %23 = vst [vmem:[%s1] sm:%s22] %v20
    %s24 = scalar_lea.vmem [#allocation0], 8
    %v25 = vld [vmem:[%s24] sm:%s18]
    %s26 = sshll.u32 1, 2
    %s27 = ssub.s32 %s26, 1
    %s28 = scalar_lea.vmem %s1, 2
    %29 = vst [vmem:[%s28] sm:%s27] %v25
    %s30 = scalar_lea.vmem [#allocation0], 16
    %v31 = vld [vmem:[%s30] sm:%s18]
    %s32 = sshll.u32 1, 2
    %s33 = ssub.s32 %s32, 1
    %s34 = smul.addr 2, 2
    %s35 = scalar_lea.vmem %s1, %s34
    %36 = vst [vmem:[%s35] sm:%s33] %v31
    %s37 = scalar_lea.vmem [#allocation0], 24
    %v38 = vld [vmem:[%s37] sm:%s18]
    %s39 = sshll.u32 1, 2
    %s40 = ssub.s32 %s39, 1
    %s41 = smul.addr 2, 3
    %s42 = scalar_lea.vmem %s1, %s41
    %43 = vst [vmem:[%s42] sm:%s40] %v38

// kernel: squeeze.32
$region0: #{squeeze.32}
  %s0 = inlined_call_operand.vmem [shape: f32[1,4,8], index: 0, kind: input, shape index: {}]
  %s1 = inlined_call_operand.vmem [shape: f32[4,2,4], index: 1, kind: output, shape index: {}]
  $region1: #{squeeze.32} parent=0
    #allocation0 [shape = 'u8[16384]{0}', space=vmem, size = 0x4000, scoped, tag = 'scoped mem for output reshape']
    #allocation1 [shape = 'u8[4096]{0}', space=vmem, size = 0x1000, scoped, tag = 'scoped mem for input reshape']
    %s3 = sshll.u32 1, 4
    %s4 = ssub.s32 %s3, 1
    %v5 = vld [vmem:[%s0] sm:%s4]
    %6 = vst [vmem:[#allocation1] sm:%s4] %v5
    %v7 = vld [vmem:[#allocation1] sm:$0xf]
    %vm8 = vcmask 31744
    %9 = vst.msk [vmem:[#allocation0] ss:$8 sm:$0xf] %vm8, %v7
    %v10 = vld [vmem:[#allocation1] sm:$0xf]
    %11 = vrot.lane.b32.xlu0 %v10, 124
    %v12 = vpop.permute.xlu0 %11
    %vm13 = vcmask 31744
    %s14 = scalar_lea.vmem [#allocation0], 1
    %15 = vst.msk [vmem:[%s14] ss:$8 sm:$0xf] %vm13, %v12
    %s17 = sshll.u32 1, 2
    %s18 = ssub.s32 %s17, 1
    %v20 = vld [vmem:[#allocation0] sm:%s18]
    %s21 = sshll.u32 1, 2
    %s22 = ssub.s32 %s21, 1
    %23 = vst [vmem:[%s1] sm:%s22] %v20
    %s24 = scalar_lea.vmem [#allocation0], 8
    %v25 = vld [vmem:[%s24] sm:%s18]
    %s26 = sshll.u32 1, 2
    %s27 = ssub.s32 %s26, 1
    %s28 = scalar_lea.vmem %s1, 2
    %29 = vst [vmem:[%s28] sm:%s27] %v25
    %s30 = scalar_lea.vmem [#allocation0], 16
    %v31 = vld [vmem:[%s30] sm:%s18]
    %s32 = sshll.u32 1, 2
    %s33 = ssub.s32 %s32, 1
    %s34 = smul.addr 2, 2
    %s35 = scalar_lea.vmem %s1, %s34
    %36 = vst [vmem:[%s35] sm:%s33] %v31
    %s37 = scalar_lea.vmem [#allocation0], 24
    %v38 = vld [vmem:[%s37] sm:%s18]
    %s39 = sshll.u32 1, 2
    %s40 = ssub.s32 %s39, 1
    %s41 = smul.addr 2, 3
    %s42 = scalar_lea.vmem %s1, %s41
    %43 = vst [vmem:[%s42] sm:%s40] %v38

</llo_original>
